<compile_context>
chip_gen: v7x
topology: tpu7x:2x2x1
jax: 0.10.0
libtpu: 0.0.40
codegen_flags: <defaults>
</compile_context>

<pallas_src>
import math

import jax
import jax.numpy as jnp
from jax.experimental import pallas as pl
from jax.experimental.pallas import tpu as pltpu


# ------------------------------ model config -------------------------------
ATOMS = 51
ACTION_SPACE = 4
HIDDEN = 32
HISTORY = 4                        # args.history_length
NOISY_STD = 0.5                    # args.noisy_std
VMAX = 10.0                        # args.V_max
TNH_SLOPE = (0.5, 2.0)             # args.tnh_slope
MAX_TNH_SHIFT = 0.1                # args.max_tnh_shift

CONV1_OUT = 32
CONV2_OUT = 64
CONV1_KDIM = HISTORY * 5 * 5       # 100 (im2col K of conv1)
CONV1_KDIM_PAD = 128               # padded to a lane multiple
SPATIAL2 = 9                       # conv2 output spatial positions (3x3)
CONV_OUTPUT_SIZE = CONV2_OUT * SPATIAL2   # 576 (data-efficient architecture)
N_KPOS2 = 25                       # conv2 kernel positions (5x5)

ZV_PAD = 64                        # padded lane width of the value head (51 used)
HID_PAD = 128                      # padded lane width of fused hidden (32 v | 32 a used)
Q_PAD = 256                        # padded lane width of q output (204 used)


# ------------------------------- Pallas kernel -------------------------------

def _vector_dqn_kernel(p1_ref, w1_ref, b1_ref, w2_ref, b2_ref,
                       wh_ref, bh_ref, wzv_ref, bzv_ref, wza_ref, bza_ref,
                       shv_ref, sha_ref, mavg_ref, mtile_ref,
                       q_ref, f2_ref, feat_ref):
    """Whole vector_DQN forward in one kernel (B=2: everything fits in ~1.2 MiB VMEM)."""
    f32 = jnp.float32
    batch = q_ref.shape[0]
    gpad = f2_ref.shape[0]              # 9*batch padded up to a sublane multiple (24 @ B=2)
    csize = 5 * gpad                    # conv1 patch rows per outer chunk (5 kernel positions)

    w1 = w1_ref[...]                                              # [128, 32]
    b1 = jnp.broadcast_to(b1_ref[...], (csize, CONV1_OUT))        # hoisted (no per-iter broadcast)
    acc2 = jnp.broadcast_to(b2_ref[...], (gpad, CONV2_OUT))       # conv2 bias folded into init

    # ---- conv1 (im2col GEMM, fused bias+ReLU) + conv2, interleaved.
    # p1 rows are pre-ordered (p=(kh2,kw2), s=(OH,OW), b); w2 rows are pre-ordered
    # (kh2, kw2, ci), so chunk p of the conv1 output multiplies w2 block p directly.
    for g in range(5):
        x_g = p1_ref[g * csize:(g + 1) * csize, :]                # [5*gpad, 128]
        h_g = jnp.maximum(jnp.dot(x_g, w1, preferred_element_type=f32) + b1, 0.0)
        for i in range(5):
            p = g * 5 + i
            acc2 = acc2 + jnp.dot(h_g[i * gpad:(i + 1) * gpad, :],
                                  w2_ref[p * CONV1_OUT:(p + 1) * CONV1_OUT, :],
                                  preferred_element_type=f32)

    f2_ref[...] = jnp.maximum(acc2, 0.0)                          # [gpad, 64], rows = s*B + b

    # ---- regroup conv features to the FC layout feat[b, s*64 + co] (static offsets).
    for s in range(SPATIAL2):
        feat_ref[:, s * CONV2_OUT:(s + 1) * CONV2_OUT] = f2_ref[s * batch:(s + 1) * batch, :]
    feat = feat_ref[...]                                          # [B, 576]

    # ---- NoisyLinear hidden layers (value|advantage fused, 128-lane padded): ONE dot.
    hidden = jnp.maximum(jnp.dot(feat, wh_ref[...], preferred_element_type=f32)
                         + bh_ref[...], 0.0)                      # [B, 128]

    # ---- NoisyLinear output layers; tanh slopes are folded into wz*/bz* at init.
    z_v = jnp.dot(hidden, wzv_ref[...], preferred_element_type=f32) + bzv_ref[...]   # [B, 64]
    z_a = jnp.dot(hidden, wza_ref[...], preferred_element_type=f32) + bza_ref[...]   # [B, 256]
    t_v = VMAX * jnp.tanh(z_v) + shv_ref[...]
    t_a = VMAX * jnp.tanh(z_a) + sha_ref[...]

    # ---- dueling combine q = v + a - mean_a(a) via two constant matmuls; the final
    # store is a lane-dense 256-wide write (204 real lanes, zero padding).
    a_mean = jnp.dot(t_a, mavg_ref[...], preferred_element_type=f32)                 # [B, 64]
    q_ref[...] = t_a + jnp.dot(t_v - a_mean, mtile_ref[...], preferred_element_type=f32)


def pallas_vector_dqn(p1, kp, batch, gpad):
    """Single pallas_call for the whole forward. No grid: whole-array VMEM blocks."""
    args = (p1, kp['w1'], kp['b1'], kp['w2'], kp['b2'], kp['wh'], kp['bh'],
            kp['wzv'], kp['bzv'], kp['wza'], kp['bza'], kp['shv'], kp['sha'],
            kp['mavg'], kp['mtile'])
    vmem = pltpu.MemorySpace.VMEM
    # TODO(synk): at training batch sizes, tile the conv1 M / batch dims with a
    # parallel grid (megacore on v7x), cast conv weights/activations to bf16 on
    # v6e/v7x, and cap block sizes for v7x's 64 MiB VMEM.  At B=2 a single
    # whole-array call is optimal (launch/DMA-bound, <1.2 MiB working set).
    return pl.pallas_call(
        _vector_dqn_kernel,
        out_shape=jax.ShapeDtypeStruct((batch, Q_PAD), jnp.float32),
        in_specs=[pl.BlockSpec(memory_space=vmem) for _ in args],
        out_specs=pl.BlockSpec(memory_space=vmem),
        scratch_shapes=[pltpu.VMEM((gpad, CONV2_OUT), jnp.float32),          # conv2 feature rows
                        pltpu.VMEM((batch, CONV_OUTPUT_SIZE), jnp.float32)], # lane-dense feat
    )(*args)


# ---------------------------- im2col glue (JAX) -----------------------------

def build_conv1_patches(x, gpad):
    """NCHW x -> conv1 im2col patches, rows ordered (conv2 kernel pos, conv2 out pos, batch).

    Row index = p*gpad + s*B + b with p=(kh2*5+kw2), s=(OH*3+OW); each p-group is
    zero-padded from 9*B to gpad rows; patch contents are (ci, kh1, kw1) padded
    100 -> 128 lanes.  All of this fuses into one cheap XLA copy on the input.
    """
    b, c, h, w = x.shape
    x6 = x.reshape(b, c, 3, 5, 5, 3, 5, 5)            # (b, ci, OH, kh2, kh1, OW, kw2, kw1)
    xp = x6.transpose(3, 6, 2, 5, 0, 1, 4, 7)         # (kh2, kw2, OH, OW, b, ci, kh1, kw1)
    xp = xp.reshape(N_KPOS2, SPATIAL2 * b, c * 25)    # [25, 9B, 100]
    xp = jnp.pad(xp, ((0, 0), (0, gpad - SPATIAL2 * b), (0, CONV1_KDIM_PAD - c * 25)))
    return xp.reshape(N_KPOS2 * gpad, CONV1_KDIM_PAD)


def conv_patches_nchw(x, k):
    """(reference path) non-overlapping kxk patches (stride == kernel) from NCHW."""
    b, c, h, w = x.shape
    oh, ow = h // k, w // k
    p = x.reshape(b, c, oh, k, ow, k).transpose(0, 2, 4, 1, 3, 5)
    return p.reshape(b * oh * ow, c * k * k), (oh, ow)


def conv_patches_nhwc(x, k):
    """(reference path) NHWC -> [B*oh*ow, C*k*k] patches, (C,kh,kw) order."""
    b, h, w, c = x.shape
    oh, ow = h // k, w // k
    p = x.reshape(b, oh, k, ow, k, c).transpose(0, 1, 3, 5, 2, 4)
    return p.reshape(b * oh * ow, c * k * k), (oh, ow)


# ------------------------- deterministic parameters -------------------------

def noisy_linear_params(key, in_f, out_f, std_init):
    """Effective (training-mode) NoisyLinear weights: mu + sigma * factorized eps."""
    k1, k2, k3, k4 = jax.random.split(key, 4)
    mu_range = 1.0 / math.sqrt(in_f)
    w_mu = jax.random.uniform(k1, (out_f, in_f), minval=-mu_range, maxval=mu_range)
    b_mu = jax.random.uniform(k2, (out_f,), minval=-mu_range, maxval=mu_range)
    w_sigma = jnp.full((out_f, in_f), std_init / math.sqrt(in_f))
    b_sigma = jnp.full((out_f,), std_init / math.sqrt(out_f))

    def scale_noise(k, n):
        e = jax.random.normal(k, (n,))
        return jnp.sign(e) * jnp.sqrt(jnp.abs(e))

    eps_in = scale_noise(k3, in_f)
    eps_out = scale_noise(k4, out_f)
    w = (w_mu + w_sigma * jnp.outer(eps_out, eps_in)).astype(jnp.float32)   # [out, in]
    b = (b_mu + b_sigma * eps_out).astype(jnp.float32)
    return w.T, b.reshape(1, out_f)                                          # matmul-ready


def conv_params(key, cin, cout, k):
    k1, k2 = jax.random.split(key)
    fan_in = cin * k * k
    bound = 1.0 / math.sqrt(fan_in)
    w = jax.random.uniform(k1, (cout, cin, k, k), minval=-bound, maxval=bound)
    b = jax.random.uniform(k2, (cout,), minval=-bound, maxval=bound)
    w_mat = w.reshape(cout, cin * k * k).T.astype(jnp.float32)   # [Cin*k*k, Cout], (ci,kh,kw) rows
    return w_mat, b.reshape(1, cout).astype(jnp.float32)


def init_params(key):
    """Canonical (PyTorch-layout) parameters; used directly by the reference."""
    keys = jax.random.split(key, 10)
    p = {}
    p['conv1_w'], p['conv1_b'] = conv_params(keys[0], HISTORY, CONV1_OUT, 5)
    p['conv2_w'], p['conv2_b'] = conv_params(keys[1], CONV1_OUT, CONV2_OUT, 5)
    p['fc_h_v_w'], p['fc_h_v_b'] = noisy_linear_params(keys[2], CONV_OUTPUT_SIZE, HIDDEN, NOISY_STD)
    p['fc_h_a_w'], p['fc_h_a_b'] = noisy_linear_params(keys[3], CONV_OUTPUT_SIZE, HIDDEN, NOISY_STD)
    p['fc_z_v_w'], p['fc_z_v_b'] = noisy_linear_params(keys[4], HIDDEN, ATOMS, NOISY_STD)
    p['fc_z_a_w'], p['fc_z_a_b'] = noisy_linear_params(keys[5], HIDDEN, ACTION_SPACE * ATOMS, NOISY_STD)
    lo, hi = math.log(TNH_SLOPE[0]), math.log(TNH_SLOPE[1])
    p['slopes_v'] = jnp.exp(jax.random.uniform(keys[6], (1, ATOMS)) * (hi - lo) + lo)
    p['slopes_a'] = jnp.exp(jax.random.uniform(keys[7], (1, ATOMS * ACTION_SPACE)) * (hi - lo) + lo)
    p['shifts_v'] = jax.random.uniform(keys[8], (1, ATOMS)) * 2 * MAX_TNH_SHIFT - MAX_TNH_SHIFT
    p['shifts_a'] = jax.random.uniform(keys[9], (1, ATOMS * ACTION_SPACE)) * 2 * MAX_TNH_SHIFT - MAX_TNH_SHIFT
    # Note: the PyTorch module's Q_biases buffer is never used in forward.
    return p


def make_kernel_params(p):
    """One-time re-layout / zero-padding of parameters for the fused Pallas kernel."""
    kp = {}
    # conv1: pad K rows 100 -> 128 with zeros (patch lanes are zero-padded to match).
    kp['w1'] = jnp.pad(p['conv1_w'], ((0, CONV1_KDIM_PAD - CONV1_KDIM), (0, 0)))   # [128, 32]
    kp['b1'] = p['conv1_b']
    # conv2: reorder rows (ci,kh,kw) -> (kh,kw,ci) so block p matches the in-kernel chunk p.
    kp['w2'] = p['conv2_w'].reshape(CONV1_OUT, 5, 5, CONV2_OUT) \
                           .transpose(1, 2, 0, 3).reshape(N_KPOS2 * CONV1_OUT, CONV2_OUT)
    kp['b2'] = p['conv2_b']

    # fc_h: permute rows from torch NCHW flatten (co*9+s) to the kernel feat layout
    # (s*64+co); fuse value/advantage columns; zero-pad to 128 output lanes.
    def chw_to_hwc_rows(w):
        return w.reshape(CONV2_OUT, SPATIAL2, HIDDEN).transpose(1, 0, 2) \
                .reshape(CONV_OUTPUT_SIZE, HIDDEN)

    wh = jnp.concatenate([chw_to_hwc_rows(p['fc_h_v_w']),
                          chw_to_hwc_rows(p['fc_h_a_w'])], axis=1)          # [576, 64]
    kp['wh'] = jnp.pad(wh, ((0, 0), (0, HID_PAD - 2 * HIDDEN)))             # [576, 128]
    bh = jnp.concatenate([p['fc_h_v_b'], p['fc_h_a_b']], axis=1)
    kp['bh'] = jnp.pad(bh, ((0, 0), (0, HID_PAD - 2 * HIDDEN)))             # [1, 128]

    # fc_z: fold tanh slopes into weights/biases; place on the v/a halves of hidden;
    # zero-pad to 64 / 256 lanes (padded region: tanh(0) + 0 shift = 0).
    n_a = ACTION_SPACE * ATOMS
    wzv = jnp.zeros((HID_PAD, ZV_PAD), jnp.float32)
    kp['wzv'] = wzv.at[:HIDDEN, :ATOMS].set(p['fc_z_v_w'] * p['slopes_v'])
    wza = jnp.zeros((HID_PAD, Q_PAD), jnp.float32)
    kp['wza'] = wza.at[HIDDEN:2 * HIDDEN, :n_a].set(p['fc_z_a_w'] * p['slopes_a'])
    kp['bzv'] = jnp.pad(p['fc_z_v_b'] * p['slopes_v'], ((0, 0), (0, ZV_PAD - ATOMS)))
    kp['bza'] = jnp.pad(p['fc_z_a_b'] * p['slopes_a'], ((0, 0), (0, Q_PAD - n_a)))
    kp['shv'] = jnp.pad(p['shifts_v'], ((0, 0), (0, ZV_PAD - ATOMS)))
    kp['sha'] = jnp.pad(p['shifts_a'], ((0, 0), (0, Q_PAD - n_a)))

    # Dueling-combine constants (mean over actions, tile back), zero-padded lane-dense.
    eye = jnp.eye(ATOMS, dtype=jnp.float32)
    mavg = jnp.zeros((Q_PAD, ZV_PAD), jnp.float32)
    kp['mavg'] = mavg.at[:n_a, :ATOMS].set(jnp.tile(eye, (ACTION_SPACE, 1)) / ACTION_SPACE)
    mtile = jnp.zeros((ZV_PAD, Q_PAD), jnp.float32)
    kp['mtile'] = mtile.at[:ATOMS, :n_a].set(jnp.tile(eye, (1, ACTION_SPACE)))
    return kp


# --------------------------------- forward ----------------------------------

def vector_dqn_forward(x, kp):
    """x: [B, HISTORY, 75, 75] float32 (NCHW) -> q: [B, ACTION_SPACE, ATOMS]."""
    batch = x.shape[0]
    gpad = ((SPATIAL2 * batch + 7) // 8) * 8          # per-kernel-position row group, 8-aligned
    p1 = build_conv1_patches(x, gpad)                 # [25*gpad, 128]  (XLA-side im2col only)
    q = pallas_vector_dqn(p1, kp, batch, gpad)        # [B, 256] lane-dense
    return q[:, :ACTION_SPACE * ATOMS].reshape(batch, ACTION_SPACE, ATOMS)


# ---------------------------- pure-JAX reference ----------------------------

def reference_forward(x, p):
    hp = jax.lax.Precision.HIGHEST
    batch = x.shape[0]
    p1, (oh1, ow1) = conv_patches_nchw(x, 5)
    h1 = jnp.maximum(jnp.dot(p1, p['conv1_w'], precision=hp) + p['conv1_b'], 0.0)
    h1 = h1.reshape(batch, oh1, ow1, CONV1_OUT)
    p2, (oh2, ow2) = conv_patches_nhwc(h1, 5)
    h2 = jnp.maximum(jnp.dot(p2, p['conv2_w'], precision=hp) + p['conv2_b'], 0.0)
    feat = h2.reshape(batch, oh2, ow2, CONV2_OUT).transpose(0, 3, 1, 2) \
             .reshape(batch, CONV_OUTPUT_SIZE)
    hv = jnp.maximum(jnp.dot(feat, p['fc_h_v_w'], precision=hp) + p['fc_h_v_b'], 0.0)
    ha = jnp.maximum(jnp.dot(feat, p['fc_h_a_w'], precision=hp) + p['fc_h_a_b'], 0.0)
    v = jnp.dot(hv, p['fc_z_v_w'], precision=hp) + p['fc_z_v_b']
    a = jnp.dot(ha, p['fc_z_a_w'], precision=hp) + p['fc_z_a_b']
    v = VMAX * jnp.tanh(v * p['slopes_v']) + p['shifts_v']
    a = VMAX * jnp.tanh(a * p['slopes_a']) + p['shifts_a']
    v = v.reshape(-1, 1, ATOMS)
    a = a.reshape(-1, ACTION_SPACE, ATOMS)
    return v + a - a.mean(axis=1, keepdims=True)


# ----------------------------------- main ------------------------------------

if __name__ == "__main__":
    key = jax.random.PRNGKey(0)
    pkey, xkey = jax.random.split(key)
    params = init_params(pkey)
    kparams = make_kernel_params(params)
    # data-efficient architecture: 75x75 input -> two stride-5 convs -> 3x3x64 = 576
    x = jax.random.normal(xkey, (2, HISTORY, 75, 75), dtype=jnp.float32)

    fwd = jax.jit(vector_dqn_forward)
    q = jax.block_until_ready(fwd(x, kparams))

    assert q.shape == (2, ACTION_SPACE, ATOMS), q.shape
    assert bool(jnp.all(jnp.isfinite(q)))

    q_ref = reference_forward(x, params)
    err = float(jnp.max(jnp.abs(q - q_ref)))
    assert err < 1e-2, f"mismatch vs reference: {err}"

    print("KERNEL_OK")
</pallas_src>

<mosaic_0001>
module attributes {stable_mosaic.version = 11 : i64} {
  func.func @_vector_dqn_kernel(%arg0: memref<600x128xf32, #tpu.memory_space<vmem>>, %arg1: memref<128x32xf32, #tpu.memory_space<vmem>>, %arg2: memref<1x32xf32, #tpu.memory_space<vmem>>, %arg3: memref<800x64xf32, #tpu.memory_space<vmem>>, %arg4: memref<1x64xf32, #tpu.memory_space<vmem>>, %arg5: memref<576x128xf32, #tpu.memory_space<vmem>>, %arg6: memref<1x128xf32, #tpu.memory_space<vmem>>, %arg7: memref<128x64xf32, #tpu.memory_space<vmem>>, %arg8: memref<1x64xf32, #tpu.memory_space<vmem>>, %arg9: memref<128x256xf32, #tpu.memory_space<vmem>>, %arg10: memref<1x256xf32, #tpu.memory_space<vmem>>, %arg11: memref<1x64xf32, #tpu.memory_space<vmem>>, %arg12: memref<1x256xf32, #tpu.memory_space<vmem>>, %arg13: memref<256x64xf32, #tpu.memory_space<vmem>>, %arg14: memref<64x256xf32, #tpu.memory_space<vmem>>, %arg15: memref<2x256xf32, #tpu.memory_space<vmem>>, %arg16: memref<24x64xf32, #tpu.memory_space<vmem>>, %arg17: memref<2x576xf32, #tpu.memory_space<vmem>>) attributes {dimension_semantics = [], scalar_prefetch = 0 : i64, scratch_operands = 2 : i64, tpu.core_type = #tpu.core_type<tc>} {
    %c0 = arith.constant 0 : index
    %c0_0 = arith.constant 0 : index
    %0 = vector.load %arg1[%c0, %c0_0] : memref<128x32xf32, #tpu.memory_space<vmem>>, vector<128x32xf32>
    %c0_1 = arith.constant 0 : index
    %c0_2 = arith.constant 0 : index
    %1 = vector.load %arg2[%c0_1, %c0_2] : memref<1x32xf32, #tpu.memory_space<vmem>>, vector<1x32xf32>
    %2 = vector.shape_cast %1 : vector<1x32xf32> to vector<1x32xf32>
    %3 = vector.broadcast %2 : vector<1x32xf32> to vector<120x32xf32>
    %c0_3 = arith.constant 0 : index
    %c0_4 = arith.constant 0 : index
    %4 = vector.load %arg4[%c0_3, %c0_4] : memref<1x64xf32, #tpu.memory_space<vmem>>, vector<1x64xf32>
    %5 = vector.shape_cast %4 : vector<1x64xf32> to vector<1x64xf32>
    %6 = vector.broadcast %5 : vector<1x64xf32> to vector<24x64xf32>
    %c0_5 = arith.constant 0 : index
    %c0_6 = arith.constant 0 : index
    %7 = vector.load %arg0[%c0_5, %c0_6] : memref<600x128xf32, #tpu.memory_space<vmem>>, vector<120x128xf32>
    %cst = arith.constant dense<0.000000e+00> : vector<120x32xf32>
    %8 = tpu.matmul %7, %0, %cst {dimension_numbers = #tpu.dot_dimension_numbers<[1], [0], [0], [1], [0, 0, 1, 1], [], []>} : vector<120x128xf32>, vector<128x32xf32>, vector<120x32xf32> -> vector<120x32xf32>
    %9 = arith.addf %8, %3 : vector<120x32xf32>
    %cst_7 = arith.constant 0.000000e+00 : f32
    %10 = vector.broadcast %cst_7 : f32 to vector<120x32xf32>
    %11 = arith.maximumf %9, %10 : vector<120x32xf32>
    %12 = vector.extract_strided_slice %11 {offsets = [0, 0], sizes = [24, 32], strides = [1, 1]} : vector<120x32xf32> to vector<24x32xf32>
    %c0_8 = arith.constant 0 : index
    %c0_9 = arith.constant 0 : index
    %13 = vector.load %arg3[%c0_8, %c0_9] : memref<800x64xf32, #tpu.memory_space<vmem>>, vector<32x64xf32>
    %cst_10 = arith.constant dense<0.000000e+00> : vector<24x64xf32>
    %14 = tpu.matmul %12, %13, %cst_10 {dimension_numbers = #tpu.dot_dimension_numbers<[1], [0], [0], [1], [0, 0, 1, 1], [], []>} : vector<24x32xf32>, vector<32x64xf32>, vector<24x64xf32> -> vector<24x64xf32>
    %15 = arith.addf %6, %14 : vector<24x64xf32>
    %16 = vector.extract_strided_slice %11 {offsets = [24, 0], sizes = [24, 32], strides = [1, 1]} : vector<120x32xf32> to vector<24x32xf32>
    %c32 = arith.constant 32 : index
    %c0_11 = arith.constant 0 : index
    %17 = vector.load %arg3[%c32, %c0_11] : memref<800x64xf32, #tpu.memory_space<vmem>>, vector<32x64xf32>
    %cst_12 = arith.constant dense<0.000000e+00> : vector<24x64xf32>
    %18 = tpu.matmul %16, %17, %cst_12 {dimension_numbers = #tpu.dot_dimension_numbers<[1], [0], [0], [1], [0, 0, 1, 1], [], []>} : vector<24x32xf32>, vector<32x64xf32>, vector<24x64xf32> -> vector<24x64xf32>
    %19 = arith.addf %15, %18 : vector<24x64xf32>
    %20 = vector.extract_strided_slice %11 {offsets = [48, 0], sizes = [24, 32], strides = [1, 1]} : vector<120x32xf32> to vector<24x32xf32>
    %c64 = arith.constant 64 : index
    %c0_13 = arith.constant 0 : index
    %21 = vector.load %arg3[%c64, %c0_13] : memref<800x64xf32, #tpu.memory_space<vmem>>, vector<32x64xf32>
    %cst_14 = arith.constant dense<0.000000e+00> : vector<24x64xf32>
    %22 = tpu.matmul %20, %21, %cst_14 {dimension_numbers = #tpu.dot_dimension_numbers<[1], [0], [0], [1], [0, 0, 1, 1], [], []>} : vector<24x32xf32>, vector<32x64xf32>, vector<24x64xf32> -> vector<24x64xf32>
    %23 = arith.addf %19, %22 : vector<24x64xf32>
    %24 = vector.extract_strided_slice %11 {offsets = [72, 0], sizes = [24, 32], strides = [1, 1]} : vector<120x32xf32> to vector<24x32xf32>
    %c96 = arith.constant 96 : index
    %c0_15 = arith.constant 0 : index
    %25 = vector.load %arg3[%c96, %c0_15] : memref<800x64xf32, #tpu.memory_space<vmem>>, vector<32x64xf32>
    %cst_16 = arith.constant dense<0.000000e+00> : vector<24x64xf32>
    %26 = tpu.matmul %24, %25, %cst_16 {dimension_numbers = #tpu.dot_dimension_numbers<[1], [0], [0], [1], [0, 0, 1, 1], [], []>} : vector<24x32xf32>, vector<32x64xf32>, vector<24x64xf32> -> vector<24x64xf32>
    %27 = arith.addf %23, %26 : vector<24x64xf32>
    %28 = vector.extract_strided_slice %11 {offsets = [96, 0], sizes = [24, 32], strides = [1, 1]} : vector<120x32xf32> to vector<24x32xf32>
    %c128 = arith.constant 128 : index
    %c0_17 = arith.constant 0 : index
    %29 = vector.load %arg3[%c128, %c0_17] : memref<800x64xf32, #tpu.memory_space<vmem>>, vector<32x64xf32>
    %cst_18 = arith.constant dense<0.000000e+00> : vector<24x64xf32>
    %30 = tpu.matmul %28, %29, %cst_18 {dimension_numbers = #tpu.dot_dimension_numbers<[1], [0], [0], [1], [0, 0, 1, 1], [], []>} : vector<24x32xf32>, vector<32x64xf32>, vector<24x64xf32> -> vector<24x64xf32>
    %31 = arith.addf %27, %30 : vector<24x64xf32>
    %c120 = arith.constant 120 : index
    %c0_19 = arith.constant 0 : index
    %32 = vector.load %arg0[%c120, %c0_19] : memref<600x128xf32, #tpu.memory_space<vmem>>, vector<120x128xf32>
    %cst_20 = arith.constant dense<0.000000e+00> : vector<120x32xf32>
    %33 = tpu.matmul %32, %0, %cst_20 {dimension_numbers = #tpu.dot_dimension_numbers<[1], [0], [0], [1], [0, 0, 1, 1], [], []>} : vector<120x128xf32>, vector<128x32xf32>, vector<120x32xf32> -> vector<120x32xf32>
    %34 = arith.addf %33, %3 : vector<120x32xf32>
    %cst_21 = arith.constant 0.000000e+00 : f32
    %35 = vector.broadcast %cst_21 : f32 to vector<120x32xf32>
    %36 = arith.maximumf %34, %35 : vector<120x32xf32>
    %37 = vector.extract_strided_slice %36 {offsets = [0, 0], sizes = [24, 32], strides = [1, 1]} : vector<120x32xf32> to vector<24x32xf32>
    %c160 = arith.constant 160 : index
    %c0_22 = arith.constant 0 : index
    %38 = vector.load %arg3[%c160, %c0_22] : memref<800x64xf32, #tpu.memory_space<vmem>>, vector<32x64xf32>
    %cst_23 = arith.constant dense<0.000000e+00> : vector<24x64xf32>
    %39 = tpu.matmul %37, %38, %cst_23 {dimension_numbers = #tpu.dot_dimension_numbers<[1], [0], [0], [1], [0, 0, 1, 1], [], []>} : vector<24x32xf32>, vector<32x64xf32>, vector<24x64xf32> -> vector<24x64xf32>
    %40 = arith.addf %31, %39 : vector<24x64xf32>
    %41 = vector.extract_strided_slice %36 {offsets = [24, 0], sizes = [24, 32], strides = [1, 1]} : vector<120x32xf32> to vector<24x32xf32>
    %c192 = arith.constant 192 : index
    %c0_24 = arith.constant 0 : index
    %42 = vector.load %arg3[%c192, %c0_24] : memref<800x64xf32, #tpu.memory_space<vmem>>, vector<32x64xf32>
    %cst_25 = arith.constant dense<0.000000e+00> : vector<24x64xf32>
    %43 = tpu.matmul %41, %42, %cst_25 {dimension_numbers = #tpu.dot_dimension_numbers<[1], [0], [0], [1], [0, 0, 1, 1], [], []>} : vector<24x32xf32>, vector<32x64xf32>, vector<24x64xf32> -> vector<24x64xf32>
    %44 = arith.addf %40, %43 : vector<24x64xf32>
    %45 = vector.extract_strided_slice %36 {offsets = [48, 0], sizes = [24, 32], strides = [1, 1]} : vector<120x32xf32> to vector<24x32xf32>
    %c224 = arith.constant 224 : index
    %c0_26 = arith.constant 0 : index
    %46 = vector.load %arg3[%c224, %c0_26] : memref<800x64xf32, #tpu.memory_space<vmem>>, vector<32x64xf32>
    %cst_27 = arith.constant dense<0.000000e+00> : vector<24x64xf32>
    %47 = tpu.matmul %45, %46, %cst_27 {dimension_numbers = #tpu.dot_dimension_numbers<[1], [0], [0], [1], [0, 0, 1, 1], [], []>} : vector<24x32xf32>, vector<32x64xf32>, vector<24x64xf32> -> vector<24x64xf32>
    %48 = arith.addf %44, %47 : vector<24x64xf32>
    %49 = vector.extract_strided_slice %36 {offsets = [72, 0], sizes = [24, 32], strides = [1, 1]} : vector<120x32xf32> to vector<24x32xf32>
    %c256 = arith.constant 256 : index
    %c0_28 = arith.constant 0 : index
    %50 = vector.load %arg3[%c256, %c0_28] : memref<800x64xf32, #tpu.memory_space<vmem>>, vector<32x64xf32>
    %cst_29 = arith.constant dense<0.000000e+00> : vector<24x64xf32>
    %51 = tpu.matmul %49, %50, %cst_29 {dimension_numbers = #tpu.dot_dimension_numbers<[1], [0], [0], [1], [0, 0, 1, 1], [], []>} : vector<24x32xf32>, vector<32x64xf32>, vector<24x64xf32> -> vector<24x64xf32>
    %52 = arith.addf %48, %51 : vector<24x64xf32>
    %53 = vector.extract_strided_slice %36 {offsets = [96, 0], sizes = [24, 32], strides = [1, 1]} : vector<120x32xf32> to vector<24x32xf32>
    %c288 = arith.constant 288 : index
    %c0_30 = arith.constant 0 : index
    %54 = vector.load %arg3[%c288, %c0_30] : memref<800x64xf32, #tpu.memory_space<vmem>>, vector<32x64xf32>
    %cst_31 = arith.constant dense<0.000000e+00> : vector<24x64xf32>
    %55 = tpu.matmul %53, %54, %cst_31 {dimension_numbers = #tpu.dot_dimension_numbers<[1], [0], [0], [1], [0, 0, 1, 1], [], []>} : vector<24x32xf32>, vector<32x64xf32>, vector<24x64xf32> -> vector<24x64xf32>
    %56 = arith.addf %52, %55 : vector<24x64xf32>
    %c240 = arith.constant 240 : index
    %c0_32 = arith.constant 0 : index
    %57 = vector.load %arg0[%c240, %c0_32] : memref<600x128xf32, #tpu.memory_space<vmem>>, vector<120x128xf32>
    %cst_33 = arith.constant dense<0.000000e+00> : vector<120x32xf32>
    %58 = tpu.matmul %57, %0, %cst_33 {dimension_numbers = #tpu.dot_dimension_numbers<[1], [0], [0], [1], [0, 0, 1, 1], [], []>} : vector<120x128xf32>, vector<128x32xf32>, vector<120x32xf32> -> vector<120x32xf32>
    %59 = arith.addf %58, %3 : vector<120x32xf32>
    %cst_34 = arith.constant 0.000000e+00 : f32
    %60 = vector.broadcast %cst_34 : f32 to vector<120x32xf32>
    %61 = arith.maximumf %59, %60 : vector<120x32xf32>
    %62 = vector.extract_strided_slice %61 {offsets = [0, 0], sizes = [24, 32], strides = [1, 1]} : vector<120x32xf32> to vector<24x32xf32>
    %c320 = arith.constant 320 : index
    %c0_35 = arith.constant 0 : index
    %63 = vector.load %arg3[%c320, %c0_35] : memref<800x64xf32, #tpu.memory_space<vmem>>, vector<32x64xf32>
    %cst_36 = arith.constant dense<0.000000e+00> : vector<24x64xf32>
    %64 = tpu.matmul %62, %63, %cst_36 {dimension_numbers = #tpu.dot_dimension_numbers<[1], [0], [0], [1], [0, 0, 1, 1], [], []>} : vector<24x32xf32>, vector<32x64xf32>, vector<24x64xf32> -> vector<24x64xf32>
    %65 = arith.addf %56, %64 : vector<24x64xf32>
    %66 = vector.extract_strided_slice %61 {offsets = [24, 0], sizes = [24, 32], strides = [1, 1]} : vector<120x32xf32> to vector<24x32xf32>
    %c352 = arith.constant 352 : index
    %c0_37 = arith.constant 0 : index
    %67 = vector.load %arg3[%c352, %c0_37] : memref<800x64xf32, #tpu.memory_space<vmem>>, vector<32x64xf32>
    %cst_38 = arith.constant dense<0.000000e+00> : vector<24x64xf32>
    %68 = tpu.matmul %66, %67, %cst_38 {dimension_numbers = #tpu.dot_dimension_numbers<[1], [0], [0], [1], [0, 0, 1, 1], [], []>} : vector<24x32xf32>, vector<32x64xf32>, vector<24x64xf32> -> vector<24x64xf32>
    %69 = arith.addf %65, %68 : vector<24x64xf32>
    %70 = vector.extract_strided_slice %61 {offsets = [48, 0], sizes = [24, 32], strides = [1, 1]} : vector<120x32xf32> to vector<24x32xf32>
    %c384 = arith.constant 384 : index
    %c0_39 = arith.constant 0 : index
    %71 = vector.load %arg3[%c384, %c0_39] : memref<800x64xf32, #tpu.memory_space<vmem>>, vector<32x64xf32>
    %cst_40 = arith.constant dense<0.000000e+00> : vector<24x64xf32>
    %72 = tpu.matmul %70, %71, %cst_40 {dimension_numbers = #tpu.dot_dimension_numbers<[1], [0], [0], [1], [0, 0, 1, 1], [], []>} : vector<24x32xf32>, vector<32x64xf32>, vector<24x64xf32> -> vector<24x64xf32>
    %73 = arith.addf %69, %72 : vector<24x64xf32>
    %74 = vector.extract_strided_slice %61 {offsets = [72, 0], sizes = [24, 32], strides = [1, 1]} : vector<120x32xf32> to vector<24x32xf32>
    %c416 = arith.constant 416 : index
    %c0_41 = arith.constant 0 : index
    %75 = vector.load %arg3[%c416, %c0_41] : memref<800x64xf32, #tpu.memory_space<vmem>>, vector<32x64xf32>
    %cst_42 = arith.constant dense<0.000000e+00> : vector<24x64xf32>
    %76 = tpu.matmul %74, %75, %cst_42 {dimension_numbers = #tpu.dot_dimension_numbers<[1], [0], [0], [1], [0, 0, 1, 1], [], []>} : vector<24x32xf32>, vector<32x64xf32>, vector<24x64xf32> -> vector<24x64xf32>
    %77 = arith.addf %73, %76 : vector<24x64xf32>
    %78 = vector.extract_strided_slice %61 {offsets = [96, 0], sizes = [24, 32], strides = [1, 1]} : vector<120x32xf32> to vector<24x32xf32>
    %c448 = arith.constant 448 : index
    %c0_43 = arith.constant 0 : index
    %79 = vector.load %arg3[%c448, %c0_43] : memref<800x64xf32, #tpu.memory_space<vmem>>, vector<32x64xf32>
    %cst_44 = arith.constant dense<0.000000e+00> : vector<24x64xf32>
    %80 = tpu.matmul %78, %79, %cst_44 {dimension_numbers = #tpu.dot_dimension_numbers<[1], [0], [0], [1], [0, 0, 1, 1], [], []>} : vector<24x32xf32>, vector<32x64xf32>, vector<24x64xf32> -> vector<24x64xf32>
    %81 = arith.addf %77, %80 : vector<24x64xf32>
    %c360 = arith.constant 360 : index
    %c0_45 = arith.constant 0 : index
    %82 = vector.load %arg0[%c360, %c0_45] : memref<600x128xf32, #tpu.memory_space<vmem>>, vector<120x128xf32>
    %cst_46 = arith.constant dense<0.000000e+00> : vector<120x32xf32>
    %83 = tpu.matmul %82, %0, %cst_46 {dimension_numbers = #tpu.dot_dimension_numbers<[1], [0], [0], [1], [0, 0, 1, 1], [], []>} : vector<120x128xf32>, vector<128x32xf32>, vector<120x32xf32> -> vector<120x32xf32>
    %84 = arith.addf %83, %3 : vector<120x32xf32>
    %cst_47 = arith.constant 0.000000e+00 : f32
    %85 = vector.broadcast %cst_47 : f32 to vector<120x32xf32>
    %86 = arith.maximumf %84, %85 : vector<120x32xf32>
    %87 = vector.extract_strided_slice %86 {offsets = [0, 0], sizes = [24, 32], strides = [1, 1]} : vector<120x32xf32> to vector<24x32xf32>
    %c480 = arith.constant 480 : index
    %c0_48 = arith.constant 0 : index
    %88 = vector.load %arg3[%c480, %c0_48] : memref<800x64xf32, #tpu.memory_space<vmem>>, vector<32x64xf32>
    %cst_49 = arith.constant dense<0.000000e+00> : vector<24x64xf32>
    %89 = tpu.matmul %87, %88, %cst_49 {dimension_numbers = #tpu.dot_dimension_numbers<[1], [0], [0], [1], [0, 0, 1, 1], [], []>} : vector<24x32xf32>, vector<32x64xf32>, vector<24x64xf32> -> vector<24x64xf32>
    %90 = arith.addf %81, %89 : vector<24x64xf32>
    %91 = vector.extract_strided_slice %86 {offsets = [24, 0], sizes = [24, 32], strides = [1, 1]} : vector<120x32xf32> to vector<24x32xf32>
    %c512 = arith.constant 512 : index
    %c0_50 = arith.constant 0 : index
    %92 = vector.load %arg3[%c512, %c0_50] : memref<800x64xf32, #tpu.memory_space<vmem>>, vector<32x64xf32>
    %cst_51 = arith.constant dense<0.000000e+00> : vector<24x64xf32>
    %93 = tpu.matmul %91, %92, %cst_51 {dimension_numbers = #tpu.dot_dimension_numbers<[1], [0], [0], [1], [0, 0, 1, 1], [], []>} : vector<24x32xf32>, vector<32x64xf32>, vector<24x64xf32> -> vector<24x64xf32>
    %94 = arith.addf %90, %93 : vector<24x64xf32>
    %95 = vector.extract_strided_slice %86 {offsets = [48, 0], sizes = [24, 32], strides = [1, 1]} : vector<120x32xf32> to vector<24x32xf32>
    %c544 = arith.constant 544 : index
    %c0_52 = arith.constant 0 : index
    %96 = vector.load %arg3[%c544, %c0_52] : memref<800x64xf32, #tpu.memory_space<vmem>>, vector<32x64xf32>
    %cst_53 = arith.constant dense<0.000000e+00> : vector<24x64xf32>
    %97 = tpu.matmul %95, %96, %cst_53 {dimension_numbers = #tpu.dot_dimension_numbers<[1], [0], [0], [1], [0, 0, 1, 1], [], []>} : vector<24x32xf32>, vector<32x64xf32>, vector<24x64xf32> -> vector<24x64xf32>
    %98 = arith.addf %94, %97 : vector<24x64xf32>
    %99 = vector.extract_strided_slice %86 {offsets = [72, 0], sizes = [24, 32], strides = [1, 1]} : vector<120x32xf32> to vector<24x32xf32>
    %c576 = arith.constant 576 : index
    %c0_54 = arith.constant 0 : index
    %100 = vector.load %arg3[%c576, %c0_54] : memref<800x64xf32, #tpu.memory_space<vmem>>, vector<32x64xf32>
    %cst_55 = arith.constant dense<0.000000e+00> : vector<24x64xf32>
    %101 = tpu.matmul %99, %100, %cst_55 {dimension_numbers = #tpu.dot_dimension_numbers<[1], [0], [0], [1], [0, 0, 1, 1], [], []>} : vector<24x32xf32>, vector<32x64xf32>, vector<24x64xf32> -> vector<24x64xf32>
    %102 = arith.addf %98, %101 : vector<24x64xf32>
    %103 = vector.extract_strided_slice %86 {offsets = [96, 0], sizes = [24, 32], strides = [1, 1]} : vector<120x32xf32> to vector<24x32xf32>
    %c608 = arith.constant 608 : index
    %c0_56 = arith.constant 0 : index
    %104 = vector.load %arg3[%c608, %c0_56] : memref<800x64xf32, #tpu.memory_space<vmem>>, vector<32x64xf32>
    %cst_57 = arith.constant dense<0.000000e+00> : vector<24x64xf32>
    %105 = tpu.matmul %103, %104, %cst_57 {dimension_numbers = #tpu.dot_dimension_numbers<[1], [0], [0], [1], [0, 0, 1, 1], [], []>} : vector<24x32xf32>, vector<32x64xf32>, vector<24x64xf32> -> vector<24x64xf32>
    %106 = arith.addf %102, %105 : vector<24x64xf32>
    %c480_58 = arith.constant 480 : index
    %c0_59 = arith.constant 0 : index
    %107 = vector.load %arg0[%c480_58, %c0_59] : memref<600x128xf32, #tpu.memory_space<vmem>>, vector<120x128xf32>
    %cst_60 = arith.constant dense<0.000000e+00> : vector<120x32xf32>
    %108 = tpu.matmul %107, %0, %cst_60 {dimension_numbers = #tpu.dot_dimension_numbers<[1], [0], [0], [1], [0, 0, 1, 1], [], []>} : vector<120x128xf32>, vector<128x32xf32>, vector<120x32xf32> -> vector<120x32xf32>
    %109 = arith.addf %108, %3 : vector<120x32xf32>
    %cst_61 = arith.constant 0.000000e+00 : f32
    %110 = vector.broadcast %cst_61 : f32 to vector<120x32xf32>
    %111 = arith.maximumf %109, %110 : vector<120x32xf32>
    %112 = vector.extract_strided_slice %111 {offsets = [0, 0], sizes = [24, 32], strides = [1, 1]} : vector<120x32xf32> to vector<24x32xf32>
    %c640 = arith.constant 640 : index
    %c0_62 = arith.constant 0 : index
    %113 = vector.load %arg3[%c640, %c0_62] : memref<800x64xf32, #tpu.memory_space<vmem>>, vector<32x64xf32>
    %cst_63 = arith.constant dense<0.000000e+00> : vector<24x64xf32>
    %114 = tpu.matmul %112, %113, %cst_63 {dimension_numbers = #tpu.dot_dimension_numbers<[1], [0], [0], [1], [0, 0, 1, 1], [], []>} : vector<24x32xf32>, vector<32x64xf32>, vector<24x64xf32> -> vector<24x64xf32>
    %115 = arith.addf %106, %114 : vector<24x64xf32>
    %116 = vector.extract_strided_slice %111 {offsets = [24, 0], sizes = [24, 32], strides = [1, 1]} : vector<120x32xf32> to vector<24x32xf32>
    %c672 = arith.constant 672 : index
    %c0_64 = arith.constant 0 : index
    %117 = vector.load %arg3[%c672, %c0_64] : memref<800x64xf32, #tpu.memory_space<vmem>>, vector<32x64xf32>
    %cst_65 = arith.constant dense<0.000000e+00> : vector<24x64xf32>
    %118 = tpu.matmul %116, %117, %cst_65 {dimension_numbers = #tpu.dot_dimension_numbers<[1], [0], [0], [1], [0, 0, 1, 1], [], []>} : vector<24x32xf32>, vector<32x64xf32>, vector<24x64xf32> -> vector<24x64xf32>
    %119 = arith.addf %115, %118 : vector<24x64xf32>
    %120 = vector.extract_strided_slice %111 {offsets = [48, 0], sizes = [24, 32], strides = [1, 1]} : vector<120x32xf32> to vector<24x32xf32>
    %c704 = arith.constant 704 : index
    %c0_66 = arith.constant 0 : index
    %121 = vector.load %arg3[%c704, %c0_66] : memref<800x64xf32, #tpu.memory_space<vmem>>, vector<32x64xf32>
    %cst_67 = arith.constant dense<0.000000e+00> : vector<24x64xf32>
    %122 = tpu.matmul %120, %121, %cst_67 {dimension_numbers = #tpu.dot_dimension_numbers<[1], [0], [0], [1], [0, 0, 1, 1], [], []>} : vector<24x32xf32>, vector<32x64xf32>, vector<24x64xf32> -> vector<24x64xf32>
    %123 = arith.addf %119, %122 : vector<24x64xf32>
    %124 = vector.extract_strided_slice %111 {offsets = [72, 0], sizes = [24, 32], strides = [1, 1]} : vector<120x32xf32> to vector<24x32xf32>
    %c736 = arith.constant 736 : index
    %c0_68 = arith.constant 0 : index
    %125 = vector.load %arg3[%c736, %c0_68] : memref<800x64xf32, #tpu.memory_space<vmem>>, vector<32x64xf32>
    %cst_69 = arith.constant dense<0.000000e+00> : vector<24x64xf32>
    %126 = tpu.matmul %124, %125, %cst_69 {dimension_numbers = #tpu.dot_dimension_numbers<[1], [0], [0], [1], [0, 0, 1, 1], [], []>} : vector<24x32xf32>, vector<32x64xf32>, vector<24x64xf32> -> vector<24x64xf32>
    %127 = arith.addf %123, %126 : vector<24x64xf32>
    %128 = vector.extract_strided_slice %111 {offsets = [96, 0], sizes = [24, 32], strides = [1, 1]} : vector<120x32xf32> to vector<24x32xf32>
    %c768 = arith.constant 768 : index
    %c0_70 = arith.constant 0 : index
    %129 = vector.load %arg3[%c768, %c0_70] : memref<800x64xf32, #tpu.memory_space<vmem>>, vector<32x64xf32>
    %cst_71 = arith.constant dense<0.000000e+00> : vector<24x64xf32>
    %130 = tpu.matmul %128, %129, %cst_71 {dimension_numbers = #tpu.dot_dimension_numbers<[1], [0], [0], [1], [0, 0, 1, 1], [], []>} : vector<24x32xf32>, vector<32x64xf32>, vector<24x64xf32> -> vector<24x64xf32>
    %131 = arith.addf %127, %130 : vector<24x64xf32>
    %cst_72 = arith.constant 0.000000e+00 : f32
    %132 = vector.broadcast %cst_72 : f32 to vector<24x64xf32>
    %133 = arith.maximumf %131, %132 : vector<24x64xf32>
    %c0_73 = arith.constant 0 : index
    %c0_74 = arith.constant 0 : index
    %134 = vector.load %arg16[%c0_73, %c0_74] : memref<24x64xf32, #tpu.memory_space<vmem>>, vector<24x64xf32>
    tpu.vector_store %arg16[%c0_73, %c0_74], %133 {strides = array<i32>} : memref<24x64xf32, #tpu.memory_space<vmem>>, vector<24x64xf32>,
    %c0_75 = arith.constant 0 : index
    %c0_76 = arith.constant 0 : index
    %135 = vector.load %arg16[%c0_75, %c0_76] : memref<24x64xf32, #tpu.memory_space<vmem>>, vector<2x64xf32>
    %c0_77 = arith.constant 0 : index
    %c0_78 = arith.constant 0 : index
    %136 = vector.load %arg17[%c0_77, %c0_78] : memref<2x576xf32, #tpu.memory_space<vmem>>, vector<2x64xf32>
    tpu.vector_store %arg17[%c0_77, %c0_78], %135 {strides = array<i32>} : memref<2x576xf32, #tpu.memory_space<vmem>>, vector<2x64xf32>,
    %c2 = arith.constant 2 : index
    %c0_79 = arith.constant 0 : index
    %137 = vector.load %arg16[%c2, %c0_79] : memref<24x64xf32, #tpu.memory_space<vmem>>, vector<2x64xf32>
    %c0_80 = arith.constant 0 : index
    %c64_81 = arith.constant 64 : index
    %138 = vector.load %arg17[%c0_80, %c64_81] : memref<2x576xf32, #tpu.memory_space<vmem>>, vector<2x64xf32>
    tpu.vector_store %arg17[%c0_80, %c64_81], %137 {strides = array<i32>} : memref<2x576xf32, #tpu.memory_space<vmem>>, vector<2x64xf32>,
    %c4 = arith.constant 4 : index
    %c0_82 = arith.constant 0 : index
    %139 = vector.load %arg16[%c4, %c0_82] : memref<24x64xf32, #tpu.memory_space<vmem>>, vector<2x64xf32>
    %c0_83 = arith.constant 0 : index
    %c128_84 = arith.constant 128 : index
    %140 = vector.load %arg17[%c0_83, %c128_84] : memref<2x576xf32, #tpu.memory_space<vmem>>, vector<2x64xf32>
    tpu.vector_store %arg17[%c0_83, %c128_84], %139 {strides = array<i32>} : memref<2x576xf32, #tpu.memory_space<vmem>>, vector<2x64xf32>,
    %c6 = arith.constant 6 : index
    %c0_85 = arith.constant 0 : index
    %141 = vector.load %arg16[%c6, %c0_85] : memref<24x64xf32, #tpu.memory_space<vmem>>, vector<2x64xf32>
    %c0_86 = arith.constant 0 : index
    %c192_87 = arith.constant 192 : index
    %142 = vector.load %arg17[%c0_86, %c192_87] : memref<2x576xf32, #tpu.memory_space<vmem>>, vector<2x64xf32>
    tpu.vector_store %arg17[%c0_86, %c192_87], %141 {strides = array<i32>} : memref<2x576xf32, #tpu.memory_space<vmem>>, vector<2x64xf32>,
    %c8 = arith.constant 8 : index
    %c0_88 = arith.constant 0 : index
    %143 = vector.load %arg16[%c8, %c0_88] : memref<24x64xf32, #tpu.memory_space<vmem>>, vector<2x64xf32>
    %c0_89 = arith.constant 0 : index
    %c256_90 = arith.constant 256 : index
    %144 = vector.load %arg17[%c0_89, %c256_90] : memref<2x576xf32, #tpu.memory_space<vmem>>, vector<2x64xf32>
    tpu.vector_store %arg17[%c0_89, %c256_90], %143 {strides = array<i32>} : memref<2x576xf32, #tpu.memory_space<vmem>>, vector<2x64xf32>,
    %c10 = arith.constant 10 : index
    %c0_91 = arith.constant 0 : index
    %145 = vector.load %arg16[%c10, %c0_91] : memref<24x64xf32, #tpu.memory_space<vmem>>, vector<2x64xf32>
    %c0_92 = arith.constant 0 : index
    %c320_93 = arith.constant 320 : index
    %146 = vector.load %arg17[%c0_92, %c320_93] : memref<2x576xf32, #tpu.memory_space<vmem>>, vector<2x64xf32>
    tpu.vector_store %arg17[%c0_92, %c320_93], %145 {strides = array<i32>} : memref<2x576xf32, #tpu.memory_space<vmem>>, vector<2x64xf32>,
    %c12 = arith.constant 12 : index
    %c0_94 = arith.constant 0 : index
    %147 = vector.load %arg16[%c12, %c0_94] : memref<24x64xf32, #tpu.memory_space<vmem>>, vector<2x64xf32>
    %c0_95 = arith.constant 0 : index
    %c384_96 = arith.constant 384 : index
    %148 = vector.load %arg17[%c0_95, %c384_96] : memref<2x576xf32, #tpu.memory_space<vmem>>, vector<2x64xf32>
    tpu.vector_store %arg17[%c0_95, %c384_96], %147 {strides = array<i32>} : memref<2x576xf32, #tpu.memory_space<vmem>>, vector<2x64xf32>,
    %c14 = arith.constant 14 : index
    %c0_97 = arith.constant 0 : index
    %149 = vector.load %arg16[%c14, %c0_97] : memref<24x64xf32, #tpu.memory_space<vmem>>, vector<2x64xf32>
    %c0_98 = arith.constant 0 : index
    %c448_99 = arith.constant 448 : index
    %150 = vector.load %arg17[%c0_98, %c448_99] : memref<2x576xf32, #tpu.memory_space<vmem>>, vector<2x64xf32>
    tpu.vector_store %arg17[%c0_98, %c448_99], %149 {strides = array<i32>} : memref<2x576xf32, #tpu.memory_space<vmem>>, vector<2x64xf32>,
    %c16 = arith.constant 16 : index
    %c0_100 = arith.constant 0 : index
    %151 = vector.load %arg16[%c16, %c0_100] : memref<24x64xf32, #tpu.memory_space<vmem>>, vector<2x64xf32>
    %c0_101 = arith.constant 0 : index
    %c512_102 = arith.constant 512 : index
    %152 = vector.load %arg17[%c0_101, %c512_102] : memref<2x576xf32, #tpu.memory_space<vmem>>, vector<2x64xf32>
    tpu.vector_store %arg17[%c0_101, %c512_102], %151 {strides = array<i32>} : memref<2x576xf32, #tpu.memory_space<vmem>>, vector<2x64xf32>,
    %c0_103 = arith.constant 0 : index
    %c0_104 = arith.constant 0 : index
    %153 = vector.load %arg17[%c0_103, %c0_104] : memref<2x576xf32, #tpu.memory_space<vmem>>, vector<2x576xf32>
    %c0_105 = arith.constant 0 : index
    %c0_106 = arith.constant 0 : index
    %154 = vector.load %arg5[%c0_105, %c0_106] : memref<576x128xf32, #tpu.memory_space<vmem>>, vector<576x128xf32>
    %cst_107 = arith.constant dense<0.000000e+00> : vector<2x128xf32>
    %155 = tpu.matmul %153, %154, %cst_107 {dimension_numbers = #tpu.dot_dimension_numbers<[1], [0], [0], [1], [0, 0, 1, 1], [], []>} : vector<2x576xf32>, vector<576x128xf32>, vector<2x128xf32> -> vector<2x128xf32>
    %c0_108 = arith.constant 0 : index
    %c0_109 = arith.constant 0 : index
    %156 = vector.load %arg6[%c0_108, %c0_109] : memref<1x128xf32, #tpu.memory_space<vmem>>, vector<1x128xf32>
    %157 = vector.broadcast %156 : vector<1x128xf32> to vector<2x128xf32>
    %158 = arith.addf %155, %157 : vector<2x128xf32>
    %cst_110 = arith.constant 0.000000e+00 : f32
    %159 = vector.broadcast %cst_110 : f32 to vector<2x128xf32>
    %160 = arith.maximumf %158, %159 : vector<2x128xf32>
    %c0_111 = arith.constant 0 : index
    %c0_112 = arith.constant 0 : index
    %161 = vector.load %arg7[%c0_111, %c0_112] : memref<128x64xf32, #tpu.memory_space<vmem>>, vector<128x64xf32>
    %cst_113 = arith.constant dense<0.000000e+00> : vector<2x64xf32>
    %162 = tpu.matmul %160, %161, %cst_113 {dimension_numbers = #tpu.dot_dimension_numbers<[1], [0], [0], [1], [0, 0, 1, 1], [], []>} : vector<2x128xf32>, vector<128x64xf32>, vector<2x64xf32> -> vector<2x64xf32>
    %c0_114 = arith.constant 0 : index
    %c0_115 = arith.constant 0 : index
    %163 = vector.load %arg8[%c0_114, %c0_115] : memref<1x64xf32, #tpu.memory_space<vmem>>, vector<1x64xf32>
    %164 = vector.broadcast %163 : vector<1x64xf32> to vector<2x64xf32>
    %165 = arith.addf %162, %164 : vector<2x64xf32>
    %c0_116 = arith.constant 0 : index
    %c0_117 = arith.constant 0 : index
    %166 = vector.load %arg9[%c0_116, %c0_117] : memref<128x256xf32, #tpu.memory_space<vmem>>, vector<128x256xf32>
    %cst_118 = arith.constant dense<0.000000e+00> : vector<2x256xf32>
    %167 = tpu.matmul %160, %166, %cst_118 {dimension_numbers = #tpu.dot_dimension_numbers<[1], [0], [0], [1], [0, 0, 1, 1], [], []>} : vector<2x128xf32>, vector<128x256xf32>, vector<2x256xf32> -> vector<2x256xf32>
    %c0_119 = arith.constant 0 : index
    %c0_120 = arith.constant 0 : index
    %168 = vector.load %arg10[%c0_119, %c0_120] : memref<1x256xf32, #tpu.memory_space<vmem>>, vector<1x256xf32>
    %169 = vector.broadcast %168 : vector<1x256xf32> to vector<2x256xf32>
    %170 = arith.addf %167, %169 : vector<2x256xf32>
    %171 = math.tanh %165 : vector<2x64xf32>
    %cst_121 = arith.constant 1.000000e+01 : f32
    %172 = vector.broadcast %cst_121 : f32 to vector<2x64xf32>
    %173 = arith.mulf %172, %171 : vector<2x64xf32>
    %c0_122 = arith.constant 0 : index
    %c0_123 = arith.constant 0 : index
    %174 = vector.load %arg11[%c0_122, %c0_123] : memref<1x64xf32, #tpu.memory_space<vmem>>, vector<1x64xf32>
    %175 = vector.broadcast %174 : vector<1x64xf32> to vector<2x64xf32>
    %176 = arith.addf %173, %175 : vector<2x64xf32>
    %177 = math.tanh %170 : vector<2x256xf32>
    %cst_124 = arith.constant 1.000000e+01 : f32
    %178 = vector.broadcast %cst_124 : f32 to vector<2x256xf32>
    %179 = arith.mulf %178, %177 : vector<2x256xf32>
    %c0_125 = arith.constant 0 : index
    %c0_126 = arith.constant 0 : index
    %180 = vector.load %arg12[%c0_125, %c0_126] : memref<1x256xf32, #tpu.memory_space<vmem>>, vector<1x256xf32>
    %181 = vector.broadcast %180 : vector<1x256xf32> to vector<2x256xf32>
    %182 = arith.addf %179, %181 : vector<2x256xf32>
    %c0_127 = arith.constant 0 : index
    %c0_128 = arith.constant 0 : index
    %183 = vector.load %arg13[%c0_127, %c0_128] : memref<256x64xf32, #tpu.memory_space<vmem>>, vector<256x64xf32>
    %cst_129 = arith.constant dense<0.000000e+00> : vector<2x64xf32>
    %184 = tpu.matmul %182, %183, %cst_129 {dimension_numbers = #tpu.dot_dimension_numbers<[1], [0], [0], [1], [0, 0, 1, 1], [], []>} : vector<2x256xf32>, vector<256x64xf32>, vector<2x64xf32> -> vector<2x64xf32>
    %185 = arith.subf %176, %184 : vector<2x64xf32>
    %c0_130 = arith.constant 0 : index
    %c0_131 = arith.constant 0 : index
    %186 = vector.load %arg14[%c0_130, %c0_131] : memref<64x256xf32, #tpu.memory_space<vmem>>, vector<64x256xf32>
    %cst_132 = arith.constant dense<0.000000e+00> : vector<2x256xf32>
    %187 = tpu.matmul %185, %186, %cst_132 {dimension_numbers = #tpu.dot_dimension_numbers<[1], [0], [0], [1], [0, 0, 1, 1], [], []>} : vector<2x64xf32>, vector<64x256xf32>, vector<2x256xf32> -> vector<2x256xf32>
    %188 = arith.addf %182, %187 : vector<2x256xf32>
    %c0_133 = arith.constant 0 : index
    %c0_134 = arith.constant 0 : index
    %189 = vector.load %arg15[%c0_133, %c0_134] : memref<2x256xf32, #tpu.memory_space<vmem>>, vector<2x256xf32>
    tpu.vector_store %arg15[%c0_133, %c0_134], %188 {strides = array<i32>} : memref<2x256xf32, #tpu.memory_space<vmem>>, vector<2x256xf32>,
    return
  }
}

</mosaic_0001>

<llo_original>
// kernel: vector_dqn_forward.1
$region0: #{vector_dqn_forward.1}
  #allocation0 [shape = 'u32[]', space=smem, size = 0x4, offset = 0x4, fixed_abs, tag = 'smem constant byte address 0x4 - core index']
  #allocation1 [shape = 'u32[144,128]{1,0:T(1,128)}', space=vmem, size = 0x12000, scoped, tag = 'internal scratch']
  #allocation2 [shape = 'f32[24,64]{1,0:T(8,128)}', space=vmem, size = 0x3000, scoped, tag = 'scratch operand']
  #allocation3 [shape = 'f32[2,576]{1,0:T(2,128)}', space=vmem, size = 0x1400, scoped, tag = 'scratch operand']
  %s0 = inlined_call_operand.vmem [shape: f32[600,128], index: 0, kind: input, shape index: {}]
  %s1 = inlined_call_operand.vmem [shape: f32[128,32], index: 1, kind: input, shape index: {}]
  %s2 = inlined_call_operand.vmem [shape: f32[1,32], index: 2, kind: input, shape index: {}]
  %s3 = inlined_call_operand.vmem [shape: f32[800,64], index: 3, kind: input, shape index: {}]
  %s4 = inlined_call_operand.vmem [shape: f32[1,64], index: 4, kind: input, shape index: {}]
  %s5 = inlined_call_operand.vmem [shape: f32[576,128], index: 5, kind: input, shape index: {}]
  %s6 = inlined_call_operand.vmem [shape: f32[1,128], index: 6, kind: input, shape index: {}]
  %s7 = inlined_call_operand.vmem [shape: f32[128,64], index: 7, kind: input, shape index: {}]
  %s8 = inlined_call_operand.vmem [shape: f32[1,64], index: 8, kind: input, shape index: {}]
  %s9 = inlined_call_operand.vmem [shape: f32[128,256], index: 9, kind: input, shape index: {}]
  %s10 = inlined_call_operand.vmem [shape: f32[1,256], index: 10, kind: input, shape index: {}]
  %s11 = inlined_call_operand.vmem [shape: f32[1,64], index: 11, kind: input, shape index: {}]
  %s12 = inlined_call_operand.vmem [shape: f32[1,256], index: 12, kind: input, shape index: {}]
  %s13 = inlined_call_operand.vmem [shape: f32[256,64], index: 13, kind: input, shape index: {}]
  %s14 = inlined_call_operand.vmem [shape: f32[64,256], index: 14, kind: input, shape index: {}]
  %s15 = inlined_call_operand.vmem [shape: f32[2,256], index: 15, kind: output, shape index: {}]
  %s16 = sld [smem:[#allocation0]]
  $region70: #{vector_dqn_forward.1} parent=0
    _
  %s18 = ssub.s32 1, %s16
  %s19 = scalar_select 0, %s18, %s16
  // Predicated region
  $region2: #{vector_dqn_forward.1} parent=0 // pred_check
    _
  $region3: #{vector_dqn_forward.1} parent=0 // pred_check_branch
    %21 = sbr.rel (0) target = $region5
  $region4: #{vector_dqn_forward.1} parent=0 // pred_region
    _
  $region5: #{vector_dqn_forward.1} parent=0 // pred_fallthru
    _
  // Predicated region
  $region6: #{vector_dqn_forward.1} parent=0 // pred_check
    _
  $region7: #{vector_dqn_forward.1} parent=0 // pred_check_branch
    %23 = sbr.rel (0) target = $region9
  $region8: #{vector_dqn_forward.1} parent=0 // pred_region
    _
  $region9: #{vector_dqn_forward.1} parent=0 // pred_fallthru
    _
  // Predicated region
  $region10: #{vector_dqn_forward.1} parent=0 // pred_check
    _
  $region11: #{vector_dqn_forward.1} parent=0 // pred_check_branch
    %25 = sbr.rel (0) target = $region13
  $region12: #{vector_dqn_forward.1} parent=0 // pred_region
    _
  $region13: #{vector_dqn_forward.1} parent=0 // pred_fallthru
    _
  // Predicated region
  $region14: #{vector_dqn_forward.1} parent=0 // pred_check
    _
  $region15: #{vector_dqn_forward.1} parent=0 // pred_check_branch
    %27 = sbr.rel (0) target = $region17
  $region16: #{vector_dqn_forward.1} parent=0 // pred_region
    _
  $region17: #{vector_dqn_forward.1} parent=0 // pred_fallthru
    _
  // Predicated region
  $region18: #{vector_dqn_forward.1} parent=0 // pred_check
    _
  $region19: #{vector_dqn_forward.1} parent=0 // pred_check_branch
    %29 = sbr.rel (0) target = $region21
  $region20: #{vector_dqn_forward.1} parent=0 // pred_region
    _
  $region21: #{vector_dqn_forward.1} parent=0 // pred_fallthru
    _
  // Predicated region
  $region22: #{vector_dqn_forward.1} parent=0 // pred_check
    _
  $region23: #{vector_dqn_forward.1} parent=0 // pred_check_branch
    %31 = sbr.rel (0) target = $region25
  $region24: #{vector_dqn_forward.1} parent=0 // pred_region
    _
  $region25: #{vector_dqn_forward.1} parent=0 // pred_fallthru
    _
  // Predicated region
  $region26: #{vector_dqn_forward.1} parent=0 // pred_check
    _
  $region27: #{vector_dqn_forward.1} parent=0 // pred_check_branch
    %33 = sbr.rel (0) target = $region29
  $region28: #{vector_dqn_forward.1} parent=0 // pred_region
    _
  $region29: #{vector_dqn_forward.1} parent=0 // pred_fallthru
    _
  // Predicated region
  $region30: #{vector_dqn_forward.1} parent=0 // pred_check
    _
  $region31: #{vector_dqn_forward.1} parent=0 // pred_check_branch
    %35 = sbr.rel (0) target = $region33
  $region32: #{vector_dqn_forward.1} parent=0 // pred_region
    _
  $region33: #{vector_dqn_forward.1} parent=0 // pred_fallthru
    _
  // Predicated region
  $region34: #{vector_dqn_forward.1} parent=0 // pred_check
    _
  $region35: #{vector_dqn_forward.1} parent=0 // pred_check_branch
    %37 = sbr.rel (0) target = $region37
  $region36: #{vector_dqn_forward.1} parent=0 // pred_region
    _
  $region37: #{vector_dqn_forward.1} parent=0 // pred_fallthru
    _
  // Predicated region
  $region38: #{vector_dqn_forward.1} parent=0 // pred_check
    _
  $region39: #{vector_dqn_forward.1} parent=0 // pred_check_branch
    %39 = sbr.rel (0) target = $region41
  $region40: #{vector_dqn_forward.1} parent=0 // pred_region
    _
  $region41: #{vector_dqn_forward.1} parent=0 // pred_fallthru
    _
  // Predicated region
  $region42: #{vector_dqn_forward.1} parent=0 // pred_check
    _
  $region43: #{vector_dqn_forward.1} parent=0 // pred_check_branch
    %41 = sbr.rel (0) target = $region45
  $region44: #{vector_dqn_forward.1} parent=0 // pred_region
    _
  $region45: #{vector_dqn_forward.1} parent=0 // pred_fallthru
    _
  // Predicated region
  $region46: #{vector_dqn_forward.1} parent=0 // pred_check
    _
  $region47: #{vector_dqn_forward.1} parent=0 // pred_check_branch
    %43 = sbr.rel (0) target = $region49
  $region48: #{vector_dqn_forward.1} parent=0 // pred_region
    _
  $region49: #{vector_dqn_forward.1} parent=0 // pred_fallthru
    _
  // Predicated region
  $region50: #{vector_dqn_forward.1} parent=0 // pred_check
    _
  $region51: #{vector_dqn_forward.1} parent=0 // pred_check_branch
    %45 = sbr.rel (0) target = $region53
  $region52: #{vector_dqn_forward.1} parent=0 // pred_region
    _
  $region53: #{vector_dqn_forward.1} parent=0 // pred_fallthru
    _
  // Predicated region
  $region54: #{vector_dqn_forward.1} parent=0 // pred_check
    _
  $region55: #{vector_dqn_forward.1} parent=0 // pred_check_branch
    %47 = sbr.rel (0) target = $region57
  $region56: #{vector_dqn_forward.1} parent=0 // pred_region
    _
  $region57: #{vector_dqn_forward.1} parent=0 // pred_fallthru
    _
  // Predicated region
  $region58: #{vector_dqn_forward.1} parent=0 // pred_check
    _
  $region59: #{vector_dqn_forward.1} parent=0 // pred_check_branch
    %49 = sbr.rel (0) target = $region61
  $region60: #{vector_dqn_forward.1} parent=0 // pred_region
    _
  $region61: #{vector_dqn_forward.1} parent=0 // pred_fallthru
    _
  %v50 = vld [vmem:[%s1] sm:$0xff]
  %v51 = vld [vmem:[%s1 + $0x8] sm:$0xff]
  %v52 = vld [vmem:[%s1 + $0x10] sm:$0xff]
  %v53 = vld [vmem:[%s1 + $0x18] sm:$0xff]
  %v54 = vld [vmem:[%s1 + $0x20] sm:$0xff]
  %v55 = vld [vmem:[%s1 + $0x28] sm:$0xff]
  %v56 = vld [vmem:[%s1 + $0x30] sm:$0xff]
  %v57 = vld [vmem:[%s1 + $0x38] sm:$0xff]
  %v58 = vld [vmem:[%s1 + $0x40] sm:$0xff]
  %v59 = vld [vmem:[%s1 + $0x48] sm:$0xff]
  %v60 = vld [vmem:[%s1 + $0x50] sm:$0xff]
  %v61 = vld [vmem:[%s1 + $0x58] sm:$0xff]
  %v62 = vld [vmem:[%s1 + $0x60] sm:$0xff]
  %v63 = vld [vmem:[%s1 + $0x68] sm:$0xff]
  %v64 = vld [vmem:[%s1 + $0x70] sm:$0xff]
  %v65 = vld [vmem:[%s1 + $0x78] sm:$0xff]
  %v66 = vld [vmem:[%s2] sm:$0x1]
  %v68 = vlaneseq
  %v69 = vshrl.u32 %v68, 7
  %v70 = vsub.s32 0, %v69
  %v71 = vrot.slane %v66, %v70
  %v73 = vld [vmem:[%s4] sm:$0x1]
  %v75 = vlaneseq
  %v76 = vshrl.u32 %v75, 7
  %v77 = vsub.s32 0, %v76
  %v78 = vrot.slane %v73, %v77
  %v80 = vld [vmem:[%s0] sm:$0xff]
  %v81 = vld [vmem:[%s0 + $0x8] sm:$0xff]
  %v82 = vld [vmem:[%s0 + $0x10] sm:$0xff]
  %v83 = vld [vmem:[%s0 + $0x18] sm:$0xff]
  %v84 = vld [vmem:[%s0 + $0x20] sm:$0xff]
  %v85 = vld [vmem:[%s0 + $0x28] sm:$0xff]
  %v86 = vld [vmem:[%s0 + $0x30] sm:$0xff]
  %v87 = vld [vmem:[%s0 + $0x38] sm:$0xff]
  %v88 = vld [vmem:[%s0 + $0x40] sm:$0xff]
  %v89 = vld [vmem:[%s0 + $0x48] sm:$0xff]
  %v90 = vld [vmem:[%s0 + $0x50] sm:$0xff]
  %v91 = vld [vmem:[%s0 + $0x58] sm:$0xff]
  %v92 = vld [vmem:[%s0 + $0x60] sm:$0xff]
  %v93 = vld [vmem:[%s0 + $0x68] sm:$0xff]
  %v94 = vld [vmem:[%s0 + $0x70] sm:$0xff]
  %95 = vmatprep.subr.mxu0 0.0
  %96 = vmatpush1.msra.mxu0 %v50
  %97 = vmatprep.subr.mxu0 0.0
  %98 = vmatpush1.msra.mxu0 %v51
  %99 = vmatprep.subr.mxu0 0.0
  %100 = vmatpush1.msra.mxu0 %v52
  %101 = vmatprep.subr.mxu0 0.0
  %102 = vmatpush1.msra.mxu0 %v53
  %103 = vmatprep.subr.mxu0 0.0
  %104 = vmatpush1.msra.mxu0 %v54
  %105 = vmatprep.subr.mxu0 0.0
  %106 = vmatpush1.msra.mxu0 %v55
  %107 = vmatprep.subr.mxu0 0.0
  %108 = vmatpush1.msra.mxu0 %v56
  %109 = vmatprep.subr.mxu0 0.0
  %110 = vmatpush1.msra.mxu0 %v57
  %111 = vmatprep.subr.mxu0 0.0
  %112 = vmatpush1.msra.mxu0 %v58
  %113 = vmatprep.subr.mxu0 0.0
  %114 = vmatpush1.msra.mxu0 %v59
  %115 = vmatprep.subr.mxu0 0.0
  %116 = vmatpush1.msra.mxu0 %v60
  %117 = vmatprep.subr.mxu0 0.0
  %118 = vmatpush1.msra.mxu0 %v61
  %119 = vmatprep.subr.mxu0 0.0
  %120 = vmatpush1.msra.mxu0 %v62
  %121 = vmatprep.subr.mxu0 0.0
  %122 = vmatpush1.msra.mxu0 %v63
  %123 = vmatprep.subr.mxu0 0.0
  %124 = vmatpush1.msra.mxu0 %v64
  %125 = vmatprep.subr.mxu0 0.0
  %126 = vmatpush1.msra.mxu0 %v65
  %127 = vmatprep.subr.mxu0 0.0
  %128 = vmatpush1.msra.mxu0 0.0
  %129 = vmatprep.subr.mxu0 0.0
  %130 = vmatpush1.msra.mxu0 0.0
  %131 = vmatprep.subr.mxu0 0.0
  %132 = vmatpush1.msra.mxu0 0.0
  %133 = vmatprep.subr.mxu0 0.0
  %134 = vmatpush1.msra.mxu0 0.0
  %135 = vmatprep.subr.mxu0 0.0
  %136 = vmatpush1.msra.mxu0 0.0
  %137 = vmatprep.subr.mxu0 0.0
  %138 = vmatpush1.msra.mxu0 0.0
  %139 = vmatprep.subr.mxu0 0.0
  %140 = vmatpush1.msra.mxu0 0.0
  %141 = vmatprep.subr.mxu0 0.0
  %142 = vmatpush1.msra.mxu0 0.0
  %143 = vmatprep.subr.mxu0 0.0
  %144 = vmatpush1.msra.mxu0 0.0
  %145 = vmatprep.subr.mxu0 0.0
  %146 = vmatpush1.msra.mxu0 0.0
  %147 = vmatprep.subr.mxu0 0.0
  %148 = vmatpush1.msra.mxu0 0.0
  %149 = vmatprep.subr.mxu0 0.0
  %150 = vmatpush1.msra.mxu0 0.0
  %151 = vmatprep.subr.mxu0 0.0
  %152 = vmatpush1.msra.mxu0 0.0
  %153 = vmatprep.subr.mxu0 0.0
  %154 = vmatpush1.msra.mxu0 0.0
  %155 = vmatprep.subr.mxu0 0.0
  %156 = vmatpush1.msra.mxu0 0.0
  %157 = vmatprep.subr.mxu0 0.0
  %158 = vmatpush1.msra.mxu0 0.0
  %159 = vmatprep.mubr.f32.mxu0 0.0
  %160 = vmatmul.mubr.f32.gmra.mrb[0].mxu0 %v80
  %v161 = vpop.f32.mrb[0].mxu0
  %v162 = vadd.f32 %v71, %v161
  %v163 = vpop.f32.mrb[0].mxu0
  %164 = vmatprep.mubr.f32.mxu0 0.0
  %165 = vmatmul.mubr.f32.gmra.mrb[0].mxu0 %v81
  %v166 = vpop.f32.mrb[0].mxu0
  %v167 = vadd.f32 %v71, %v166
  %v168 = vpop.f32.mrb[0].mxu0
  %169 = vmatprep.mubr.f32.mxu0 0.0
  %170 = vmatmul.mubr.f32.gmra.mrb[0].mxu0 %v82
  %v171 = vpop.f32.mrb[0].mxu0
  %v172 = vadd.f32 %v71, %v171
  %v173 = vpop.f32.mrb[0].mxu0
  %174 = vmatprep.mubr.f32.mxu0 0.0
  %175 = vmatmul.mubr.f32.gmra.mrb[0].mxu0 %v83
  %v176 = vpop.f32.mrb[0].mxu0
  %v177 = vadd.f32 %v71, %v176
  %v178 = vpop.f32.mrb[0].mxu0
  %179 = vmatprep.mubr.f32.mxu0 0.0
  %180 = vmatmul.mubr.f32.gmra.mrb[0].mxu0 %v84
  %v181 = vpop.f32.mrb[0].mxu0
  %v182 = vadd.f32 %v71, %v181
  %v183 = vpop.f32.mrb[0].mxu0
  %184 = vmatprep.mubr.f32.mxu0 0.0
  %185 = vmatmul.mubr.f32.gmra.mrb[0].mxu0 %v85
  %v186 = vpop.f32.mrb[0].mxu0
  %v187 = vadd.f32 %v71, %v186
  %v188 = vpop.f32.mrb[0].mxu0
  %189 = vmatprep.mubr.f32.mxu0 0.0
  %190 = vmatmul.mubr.f32.gmra.mrb[0].mxu0 %v86
  %v191 = vpop.f32.mrb[0].mxu0
  %v192 = vadd.f32 %v71, %v191
  %v193 = vpop.f32.mrb[0].mxu0
  %194 = vmatprep.mubr.f32.mxu0 0.0
  %195 = vmatmul.mubr.f32.gmra.mrb[0].mxu0 %v87
  %v196 = vpop.f32.mrb[0].mxu0
  %v197 = vadd.f32 %v71, %v196
  %v198 = vpop.f32.mrb[0].mxu0
  %199 = vmatprep.mubr.f32.mxu0 0.0
  %200 = vmatmul.mubr.f32.gmra.mrb[0].mxu0 %v88
  %v201 = vpop.f32.mrb[0].mxu0
  %v202 = vadd.f32 %v71, %v201
  %v203 = vpop.f32.mrb[0].mxu0
  %204 = vmatprep.mubr.f32.mxu0 0.0
  %205 = vmatmul.mubr.f32.gmra.mrb[0].mxu0 %v89
  %v206 = vpop.f32.mrb[0].mxu0
  %v207 = vadd.f32 %v71, %v206
  %v208 = vpop.f32.mrb[0].mxu0
  %209 = vmatprep.mubr.f32.mxu0 0.0
  %210 = vmatmul.mubr.f32.gmra.mrb[0].mxu0 %v90
  %v211 = vpop.f32.mrb[0].mxu0
  %v212 = vadd.f32 %v71, %v211
  %v213 = vpop.f32.mrb[0].mxu0
  %214 = vmatprep.mubr.f32.mxu0 0.0
  %215 = vmatmul.mubr.f32.gmra.mrb[0].mxu0 %v91
  %v216 = vpop.f32.mrb[0].mxu0
  %v217 = vadd.f32 %v71, %v216
  %v218 = vpop.f32.mrb[0].mxu0
  %219 = vmatprep.mubr.f32.mxu0 0.0
  %220 = vmatmul.mubr.f32.gmra.mrb[0].mxu0 %v92
  %v221 = vpop.f32.mrb[0].mxu0
  %v222 = vadd.f32 %v71, %v221
  %v223 = vpop.f32.mrb[0].mxu0
  %224 = vmatprep.mubr.f32.mxu0 0.0
  %225 = vmatmul.mubr.f32.gmra.mrb[0].mxu0 %v93
  %v226 = vpop.f32.mrb[0].mxu0
  %v227 = vadd.f32 %v71, %v226
  %v228 = vpop.f32.mrb[0].mxu0
  %229 = vmatprep.mubr.f32.mxu0 0.0
  %230 = vmatmul.mubr.f32.gmra.mrb[0].mxu0 %v94
  %v231 = vpop.f32.mrb[0].mxu0
  %v232 = vadd.f32 %v71, %v231
  %v233 = vpop.f32.mrb[0].mxu0
  %234 = vdwg.mxu0
  %v235 = vmax.f32 %v162, 0.0
  %v236 = vmax.f32 %v167, 0.0
  %v237 = vmax.f32 %v172, 0.0
  %v238 = vmax.f32 %v177, 0.0
  %v239 = vmax.f32 %v182, 0.0
  %v240 = vmax.f32 %v187, 0.0
  %v241 = vmax.f32 %v192, 0.0
  %v242 = vmax.f32 %v197, 0.0
  %v243 = vmax.f32 %v202, 0.0
  %v244 = vmax.f32 %v207, 0.0
  %v245 = vmax.f32 %v212, 0.0
  %v246 = vmax.f32 %v217, 0.0
  %v247 = vmax.f32 %v222, 0.0
  %v248 = vmax.f32 %v227, 0.0
  %v249 = vmax.f32 %v232, 0.0
  %v250 = vld [vmem:[%s3] sm:$0xff]
  %v251 = vld [vmem:[%s3 + $0x8] sm:$0xff]
  %v252 = vld [vmem:[%s3 + $0x10] sm:$0xff]
  %v253 = vld [vmem:[%s3 + $0x18] sm:$0xff]
  %vm254 = vcmask 261120
  %v256 = vsel %vm254, %v235, 0
  %v259 = vsel %vm254, %v236, 0
  %v262 = vsel %vm254, %v237, 0
  %264 = vmatprep.subr.mxu0 0.0
  %265 = vmatpush1.msra.mxu0 %v250
  %266 = vmatprep.subr.mxu0 0.0
  %267 = vmatpush1.msra.mxu0 %v251
  %268 = vmatprep.subr.mxu0 0.0
  %269 = vmatpush1.msra.mxu0 %v252
  %270 = vmatprep.subr.mxu0 0.0
  %271 = vmatpush1.msra.mxu0 %v253
  %272 = vmatprep.subr.mxu0 0.0
  %273 = vmatpush1.msra.mxu0 0.0
  %274 = vmatprep.subr.mxu0 0.0
  %275 = vmatpush1.msra.mxu0 0.0
  %276 = vmatprep.subr.mxu0 0.0
  %277 = vmatpush1.msra.mxu0 0.0
  %278 = vmatprep.subr.mxu0 0.0
  %279 = vmatpush1.msra.mxu0 0.0
  %280 = vmatprep.subr.mxu0 0.0
  %281 = vmatpush1.msra.mxu0 0.0
  %282 = vmatprep.subr.mxu0 0.0
  %283 = vmatpush1.msra.mxu0 0.0
  %284 = vmatprep.subr.mxu0 0.0
  %285 = vmatpush1.msra.mxu0 0.0
  %286 = vmatprep.subr.mxu0 0.0
  %287 = vmatpush1.msra.mxu0 0.0
  %288 = vmatprep.subr.mxu0 0.0
  %289 = vmatpush1.msra.mxu0 0.0
  %290 = vmatprep.subr.mxu0 0.0
  %291 = vmatpush1.msra.mxu0 0.0
  %292 = vmatprep.subr.mxu0 0.0
  %293 = vmatpush1.msra.mxu0 0.0
  %294 = vmatprep.subr.mxu0 0.0
  %295 = vmatpush1.msra.mxu0 0.0
  %296 = vmatprep.subr.mxu0 0.0
  %297 = vmatpush1.msra.mxu0 0.0
  %298 = vmatprep.subr.mxu0 0.0
  %299 = vmatpush1.msra.mxu0 0.0
  %300 = vmatprep.subr.mxu0 0.0
  %301 = vmatpush1.msra.mxu0 0.0
  %302 = vmatprep.subr.mxu0 0.0
  %303 = vmatpush1.msra.mxu0 0.0
  %304 = vmatprep.subr.mxu0 0.0
  %305 = vmatpush1.msra.mxu0 0.0
  %306 = vmatprep.subr.mxu0 0.0
  %307 = vmatpush1.msra.mxu0 0.0
  %308 = vmatprep.subr.mxu0 0.0
  %309 = vmatpush1.msra.mxu0 0.0
  %310 = vmatprep.subr.mxu0 0.0
  %311 = vmatpush1.msra.mxu0 0.0
  %312 = vmatprep.subr.mxu0 0.0
  %313 = vmatpush1.msra.mxu0 0.0
  %314 = vmatprep.subr.mxu0 0.0
  %315 = vmatpush1.msra.mxu0 0.0
  %316 = vmatprep.subr.mxu0 0.0
  %317 = vmatpush1.msra.mxu0 0.0
  %318 = vmatprep.subr.mxu0 0.0
  %319 = vmatpush1.msra.mxu0 0.0
  %320 = vmatprep.subr.mxu0 0.0
  %321 = vmatpush1.msra.mxu0 0.0
  %322 = vmatprep.subr.mxu0 0.0
  %323 = vmatpush1.msra.mxu0 0.0
  %324 = vmatprep.subr.mxu0 0.0
  %325 = vmatpush1.msra.mxu0 0.0
  %326 = vmatprep.subr.mxu0 0.0
  %327 = vmatpush1.msra.mxu0 0.0
  %328 = vmatprep.mubr.f32.mxu0 0.0
  %329 = vmatmul.mubr.f32.gmra.mrb[0].mxu0 %v256
  %v330 = vpop.f32.mrb[0].mxu0
  %v331 = vadd.f32 0.0, %v330
  %v332 = vpop.f32.mrb[0].mxu0
  %333 = vmatprep.mubr.f32.mxu0 0.0
  %334 = vmatmul.mubr.f32.gmra.mrb[0].mxu0 %v259
  %v335 = vpop.f32.mrb[0].mxu0
  %v336 = vadd.f32 0.0, %v335
  %v337 = vpop.f32.mrb[0].mxu0
  %338 = vmatprep.mubr.f32.mxu0 0.0
  %339 = vmatmul.mubr.f32.gmra.mrb[0].mxu0 %v262
  %v340 = vpop.f32.mrb[0].mxu0
  %v341 = vadd.f32 0.0, %v340
  %v342 = vpop.f32.mrb[0].mxu0
  %343 = vdwg.mxu0
  %v344 = vadd.f32 %v78, %v331
  %v345 = vadd.f32 %v78, %v336
  %v346 = vadd.f32 %v78, %v341
  %v347 = vld [vmem:[%s3 + $0x20] sm:$0xff]
  %v348 = vld [vmem:[%s3 + $0x28] sm:$0xff]
  %v349 = vld [vmem:[%s3 + $0x30] sm:$0xff]
  %v350 = vld [vmem:[%s3 + $0x38] sm:$0xff]
  %v352 = vsel %vm254, %v238, 0
  %v355 = vsel %vm254, %v239, 0
  %v358 = vsel %vm254, %v240, 0
  %360 = vmatprep.subr.mxu0 0.0
  %361 = vmatpush1.msra.mxu0 %v347
  %362 = vmatprep.subr.mxu0 0.0
  %363 = vmatpush1.msra.mxu0 %v348
  %364 = vmatprep.subr.mxu0 0.0
  %365 = vmatpush1.msra.mxu0 %v349
  %366 = vmatprep.subr.mxu0 0.0
  %367 = vmatpush1.msra.mxu0 %v350
  %368 = vmatprep.subr.mxu0 0.0
  %369 = vmatpush1.msra.mxu0 0.0
  %370 = vmatprep.subr.mxu0 0.0
  %371 = vmatpush1.msra.mxu0 0.0
  %372 = vmatprep.subr.mxu0 0.0
  %373 = vmatpush1.msra.mxu0 0.0
  %374 = vmatprep.subr.mxu0 0.0
  %375 = vmatpush1.msra.mxu0 0.0
  %376 = vmatprep.subr.mxu0 0.0
  %377 = vmatpush1.msra.mxu0 0.0
  %378 = vmatprep.subr.mxu0 0.0
  %379 = vmatpush1.msra.mxu0 0.0
  %380 = vmatprep.subr.mxu0 0.0
  %381 = vmatpush1.msra.mxu0 0.0
  %382 = vmatprep.subr.mxu0 0.0
  %383 = vmatpush1.msra.mxu0 0.0
  %384 = vmatprep.subr.mxu0 0.0
  %385 = vmatpush1.msra.mxu0 0.0
  %386 = vmatprep.subr.mxu0 0.0
  %387 = vmatpush1.msra.mxu0 0.0
  %388 = vmatprep.subr.mxu0 0.0
  %389 = vmatpush1.msra.mxu0 0.0
  %390 = vmatprep.subr.mxu0 0.0
  %391 = vmatpush1.msra.mxu0 0.0
  %392 = vmatprep.subr.mxu0 0.0
  %393 = vmatpush1.msra.mxu0 0.0
  %394 = vmatprep.subr.mxu0 0.0
  %395 = vmatpush1.msra.mxu0 0.0
  %396 = vmatprep.subr.mxu0 0.0
  %397 = vmatpush1.msra.mxu0 0.0
  %398 = vmatprep.subr.mxu0 0.0
  %399 = vmatpush1.msra.mxu0 0.0
  %400 = vmatprep.subr.mxu0 0.0
  %401 = vmatpush1.msra.mxu0 0.0
  %402 = vmatprep.subr.mxu0 0.0
  %403 = vmatpush1.msra.mxu0 0.0
  %404 = vmatprep.subr.mxu0 0.0
  %405 = vmatpush1.msra.mxu0 0.0
  %406 = vmatprep.subr.mxu0 0.0
  %407 = vmatpush1.msra.mxu0 0.0
  %408 = vmatprep.subr.mxu0 0.0
  %409 = vmatpush1.msra.mxu0 0.0
  %410 = vmatprep.subr.mxu0 0.0
  %411 = vmatpush1.msra.mxu0 0.0
  %412 = vmatprep.subr.mxu0 0.0
  %413 = vmatpush1.msra.mxu0 0.0
  %414 = vmatprep.subr.mxu0 0.0
  %415 = vmatpush1.msra.mxu0 0.0
  %416 = vmatprep.subr.mxu0 0.0
  %417 = vmatpush1.msra.mxu0 0.0
  %418 = vmatprep.subr.mxu0 0.0
  %419 = vmatpush1.msra.mxu0 0.0
  %420 = vmatprep.subr.mxu0 0.0
  %421 = vmatpush1.msra.mxu0 0.0
  %422 = vmatprep.subr.mxu0 0.0
  %423 = vmatpush1.msra.mxu0 0.0
  %424 = vmatprep.mubr.f32.mxu0 0.0
  %425 = vmatmul.mubr.f32.gmra.mrb[0].mxu0 %v352
  %v426 = vpop.f32.mrb[0].mxu0
  %v427 = vadd.f32 0.0, %v426
  %v428 = vpop.f32.mrb[0].mxu0
  %429 = vmatprep.mubr.f32.mxu0 0.0
  %430 = vmatmul.mubr.f32.gmra.mrb[0].mxu0 %v355
  %v431 = vpop.f32.mrb[0].mxu0
  %v432 = vadd.f32 0.0, %v431
  %v433 = vpop.f32.mrb[0].mxu0
  %434 = vmatprep.mubr.f32.mxu0 0.0
  %435 = vmatmul.mubr.f32.gmra.mrb[0].mxu0 %v358
  %v436 = vpop.f32.mrb[0].mxu0
  %v437 = vadd.f32 0.0, %v436
  %v438 = vpop.f32.mrb[0].mxu0
  %439 = vdwg.mxu0
  %v440 = vadd.f32 %v344, %v427
  %v441 = vadd.f32 %v345, %v432
  %v442 = vadd.f32 %v346, %v437
  %v443 = vld [vmem:[%s3 + $0x40] sm:$0xff]
  %v444 = vld [vmem:[%s3 + $0x48] sm:$0xff]
  %v445 = vld [vmem:[%s3 + $0x50] sm:$0xff]
  %v446 = vld [vmem:[%s3 + $0x58] sm:$0xff]
  %v448 = vsel %vm254, %v241, 0
  %v451 = vsel %vm254, %v242, 0
  %v454 = vsel %vm254, %v243, 0
  %456 = vmatprep.subr.mxu0 0.0
  %457 = vmatpush1.msra.mxu0 %v443
  %458 = vmatprep.subr.mxu0 0.0
  %459 = vmatpush1.msra.mxu0 %v444
  %460 = vmatprep.subr.mxu0 0.0
  %461 = vmatpush1.msra.mxu0 %v445
  %462 = vmatprep.subr.mxu0 0.0
  %463 = vmatpush1.msra.mxu0 %v446
  %464 = vmatprep.subr.mxu0 0.0
  %465 = vmatpush1.msra.mxu0 0.0
  %466 = vmatprep.subr.mxu0 0.0
  %467 = vmatpush1.msra.mxu0 0.0
  %468 = vmatprep.subr.mxu0 0.0
  %469 = vmatpush1.msra.mxu0 0.0
  %470 = vmatprep.subr.mxu0 0.0
  %471 = vmatpush1.msra.mxu0 0.0
  %472 = vmatprep.subr.mxu0 0.0
  %473 = vmatpush1.msra.mxu0 0.0
  %474 = vmatprep.subr.mxu0 0.0
  %475 = vmatpush1.msra.mxu0 0.0
  %476 = vmatprep.subr.mxu0 0.0
  %477 = vmatpush1.msra.mxu0 0.0
  %478 = vmatprep.subr.mxu0 0.0
  %479 = vmatpush1.msra.mxu0 0.0
  %480 = vmatprep.subr.mxu0 0.0
  %481 = vmatpush1.msra.mxu0 0.0
  %482 = vmatprep.subr.mxu0 0.0
  %483 = vmatpush1.msra.mxu0 0.0
  %484 = vmatprep.subr.mxu0 0.0
  %485 = vmatpush1.msra.mxu0 0.0
  %486 = vmatprep.subr.mxu0 0.0
  %487 = vmatpush1.msra.mxu0 0.0
  %488 = vmatprep.subr.mxu0 0.0
  %489 = vmatpush1.msra.mxu0 0.0
  %490 = vmatprep.subr.mxu0 0.0
  %491 = vmatpush1.msra.mxu0 0.0
  %492 = vmatprep.subr.mxu0 0.0
  %493 = vmatpush1.msra.mxu0 0.0
  %494 = vmatprep.subr.mxu0 0.0
  %495 = vmatpush1.msra.mxu0 0.0
  %496 = vmatprep.subr.mxu0 0.0
  %497 = vmatpush1.msra.mxu0 0.0
  %498 = vmatprep.subr.mxu0 0.0
  %499 = vmatpush1.msra.mxu0 0.0
  %500 = vmatprep.subr.mxu0 0.0
  %501 = vmatpush1.msra.mxu0 0.0
  %502 = vmatprep.subr.mxu0 0.0
  %503 = vmatpush1.msra.mxu0 0.0
  %504 = vmatprep.subr.mxu0 0.0
  %505 = vmatpush1.msra.mxu0 0.0
  %506 = vmatprep.subr.mxu0 0.0
  %507 = vmatpush1.msra.mxu0 0.0
  %508 = vmatprep.subr.mxu0 0.0
  %509 = vmatpush1.msra.mxu0 0.0
  %510 = vmatprep.subr.mxu0 0.0
  %511 = vmatpush1.msra.mxu0 0.0
  %512 = vmatprep.subr.mxu0 0.0
  %513 = vmatpush1.msra.mxu0 0.0
  %514 = vmatprep.subr.mxu0 0.0
  %515 = vmatpush1.msra.mxu0 0.0
  %516 = vmatprep.subr.mxu0 0.0
  %517 = vmatpush1.msra.mxu0 0.0
  %518 = vmatprep.subr.mxu0 0.0
  %519 = vmatpush1.msra.mxu0 0.0
  %520 = vmatprep.mubr.f32.mxu0 0.0
  %521 = vmatmul.mubr.f32.gmra.mrb[0].mxu0 %v448
  %v522 = vpop.f32.mrb[0].mxu0
  %v523 = vadd.f32 0.0, %v522
  %v524 = vpop.f32.mrb[0].mxu0
  %525 = vmatprep.mubr.f32.mxu0 0.0
  %526 = vmatmul.mubr.f32.gmra.mrb[0].mxu0 %v451
  %v527 = vpop.f32.mrb[0].mxu0
  %v528 = vadd.f32 0.0, %v527
  %v529 = vpop.f32.mrb[0].mxu0
  %530 = vmatprep.mubr.f32.mxu0 0.0
  %531 = vmatmul.mubr.f32.gmra.mrb[0].mxu0 %v454
  %v532 = vpop.f32.mrb[0].mxu0
  %v533 = vadd.f32 0.0, %v532
  %v534 = vpop.f32.mrb[0].mxu0
  %535 = vdwg.mxu0
  %v536 = vadd.f32 %v440, %v523
  %v537 = vadd.f32 %v441, %v528
  %v538 = vadd.f32 %v442, %v533
  %v539 = vld [vmem:[%s3 + $0x60] sm:$0xff]
  %v540 = vld [vmem:[%s3 + $0x68] sm:$0xff]
  %v541 = vld [vmem:[%s3 + $0x70] sm:$0xff]
  %v542 = vld [vmem:[%s3 + $0x78] sm:$0xff]
  %v544 = vsel %vm254, %v244, 0
  %v547 = vsel %vm254, %v245, 0
  %v550 = vsel %vm254, %v246, 0
  %552 = vmatprep.subr.mxu0 0.0
  %553 = vmatpush1.msra.mxu0 %v539
  %554 = vmatprep.subr.mxu0 0.0
  %555 = vmatpush1.msra.mxu0 %v540
  %556 = vmatprep.subr.mxu0 0.0
  %557 = vmatpush1.msra.mxu0 %v541
  %558 = vmatprep.subr.mxu0 0.0
  %559 = vmatpush1.msra.mxu0 %v542
  %560 = vmatprep.subr.mxu0 0.0
  %561 = vmatpush1.msra.mxu0 0.0
  %562 = vmatprep.subr.mxu0 0.0
  %563 = vmatpush1.msra.mxu0 0.0
  %564 = vmatprep.subr.mxu0 0.0
  %565 = vmatpush1.msra.mxu0 0.0
  %566 = vmatprep.subr.mxu0 0.0
  %567 = vmatpush1.msra.mxu0 0.0
  %568 = vmatprep.subr.mxu0 0.0
  %569 = vmatpush1.msra.mxu0 0.0
  %570 = vmatprep.subr.mxu0 0.0
  %571 = vmatpush1.msra.mxu0 0.0
  %572 = vmatprep.subr.mxu0 0.0
  %573 = vmatpush1.msra.mxu0 0.0
  %574 = vmatprep.subr.mxu0 0.0
  %575 = vmatpush1.msra.mxu0 0.0
  %576 = vmatprep.subr.mxu0 0.0
  %577 = vmatpush1.msra.mxu0 0.0
  %578 = vmatprep.subr.mxu0 0.0
  %579 = vmatpush1.msra.mxu0 0.0
  %580 = vmatprep.subr.mxu0 0.0
  %581 = vmatpush1.msra.mxu0 0.0
  %582 = vmatprep.subr.mxu0 0.0
  %583 = vmatpush1.msra.mxu0 0.0
  %584 = vmatprep.subr.mxu0 0.0
  %585 = vmatpush1.msra.mxu0 0.0
  %586 = vmatprep.subr.mxu0 0.0
  %587 = vmatpush1.msra.mxu0 0.0
  %588 = vmatprep.subr.mxu0 0.0
  %589 = vmatpush1.msra.mxu0 0.0
  %590 = vmatprep.subr.mxu0 0.0
  %591 = vmatpush1.msra.mxu0 0.0
  %592 = vmatprep.subr.mxu0 0.0
  %593 = vmatpush1.msra.mxu0 0.0
  %594 = vmatprep.subr.mxu0 0.0
  %595 = vmatpush1.msra.mxu0 0.0
  %596 = vmatprep.subr.mxu0 0.0
  %597 = vmatpush1.msra.mxu0 0.0
  %598 = vmatprep.subr.mxu0 0.0
  %599 = vmatpush1.msra.mxu0 0.0
  %600 = vmatprep.subr.mxu0 0.0
  %601 = vmatpush1.msra.mxu0 0.0
  %602 = vmatprep.subr.mxu0 0.0
  %603 = vmatpush1.msra.mxu0 0.0
  %604 = vmatprep.subr.mxu0 0.0
  %605 = vmatpush1.msra.mxu0 0.0
  %606 = vmatprep.subr.mxu0 0.0
  %607 = vmatpush1.msra.mxu0 0.0
  %608 = vmatprep.subr.mxu0 0.0
  %609 = vmatpush1.msra.mxu0 0.0
  %610 = vmatprep.subr.mxu0 0.0
  %611 = vmatpush1.msra.mxu0 0.0
  %612 = vmatprep.subr.mxu0 0.0
  %613 = vmatpush1.msra.mxu0 0.0
  %614 = vmatprep.subr.mxu0 0.0
  %615 = vmatpush1.msra.mxu0 0.0
  %616 = vmatprep.mubr.f32.mxu0 0.0
  %617 = vmatmul.mubr.f32.gmra.mrb[0].mxu0 %v544
  %v618 = vpop.f32.mrb[0].mxu0
  %v619 = vadd.f32 0.0, %v618
  %v620 = vpop.f32.mrb[0].mxu0
  %621 = vmatprep.mubr.f32.mxu0 0.0
  %622 = vmatmul.mubr.f32.gmra.mrb[0].mxu0 %v547
  %v623 = vpop.f32.mrb[0].mxu0
  %v624 = vadd.f32 0.0, %v623
  %v625 = vpop.f32.mrb[0].mxu0
  %626 = vmatprep.mubr.f32.mxu0 0.0
  %627 = vmatmul.mubr.f32.gmra.mrb[0].mxu0 %v550
  %v628 = vpop.f32.mrb[0].mxu0
  %v629 = vadd.f32 0.0, %v628
  %v630 = vpop.f32.mrb[0].mxu0
  %631 = vdwg.mxu0
  %v632 = vadd.f32 %v536, %v619
  %v633 = vadd.f32 %v537, %v624
  %v634 = vadd.f32 %v538, %v629
  %v635 = vld [vmem:[%s3 + $0x80] sm:$0xff]
  %v636 = vld [vmem:[%s3 + $0x88] sm:$0xff]
  %v637 = vld [vmem:[%s3 + $0x90] sm:$0xff]
  %v638 = vld [vmem:[%s3 + $0x98] sm:$0xff]
  %v640 = vsel %vm254, %v247, 0
  %v643 = vsel %vm254, %v248, 0
  %v646 = vsel %vm254, %v249, 0
  %648 = vmatprep.subr.mxu0 0.0
  %649 = vmatpush1.msra.mxu0 %v635
  %650 = vmatprep.subr.mxu0 0.0
  %651 = vmatpush1.msra.mxu0 %v636
  %652 = vmatprep.subr.mxu0 0.0
  %653 = vmatpush1.msra.mxu0 %v637
  %654 = vmatprep.subr.mxu0 0.0
  %655 = vmatpush1.msra.mxu0 %v638
  %656 = vmatprep.subr.mxu0 0.0
  %657 = vmatpush1.msra.mxu0 0.0
  %658 = vmatprep.subr.mxu0 0.0
  %659 = vmatpush1.msra.mxu0 0.0
  %660 = vmatprep.subr.mxu0 0.0
  %661 = vmatpush1.msra.mxu0 0.0
  %662 = vmatprep.subr.mxu0 0.0
  %663 = vmatpush1.msra.mxu0 0.0
  %664 = vmatprep.subr.mxu0 0.0
  %665 = vmatpush1.msra.mxu0 0.0
  %666 = vmatprep.subr.mxu0 0.0
  %667 = vmatpush1.msra.mxu0 0.0
  %668 = vmatprep.subr.mxu0 0.0
  %669 = vmatpush1.msra.mxu0 0.0
  %670 = vmatprep.subr.mxu0 0.0
  %671 = vmatpush1.msra.mxu0 0.0
  %672 = vmatprep.subr.mxu0 0.0
  %673 = vmatpush1.msra.mxu0 0.0
  %674 = vmatprep.subr.mxu0 0.0
  %675 = vmatpush1.msra.mxu0 0.0
  %676 = vmatprep.subr.mxu0 0.0
  %677 = vmatpush1.msra.mxu0 0.0
  %678 = vmatprep.subr.mxu0 0.0
  %679 = vmatpush1.msra.mxu0 0.0
  %680 = vmatprep.subr.mxu0 0.0
  %681 = vmatpush1.msra.mxu0 0.0
  %682 = vmatprep.subr.mxu0 0.0
  %683 = vmatpush1.msra.mxu0 0.0
  %684 = vmatprep.subr.mxu0 0.0
  %685 = vmatpush1.msra.mxu0 0.0
  %686 = vmatprep.subr.mxu0 0.0
  %687 = vmatpush1.msra.mxu0 0.0
  %688 = vmatprep.subr.mxu0 0.0
  %689 = vmatpush1.msra.mxu0 0.0
  %690 = vmatprep.subr.mxu0 0.0
  %691 = vmatpush1.msra.mxu0 0.0
  %692 = vmatprep.subr.mxu0 0.0
  %693 = vmatpush1.msra.mxu0 0.0
  %694 = vmatprep.subr.mxu0 0.0
  %695 = vmatpush1.msra.mxu0 0.0
  %696 = vmatprep.subr.mxu0 0.0
  %697 = vmatpush1.msra.mxu0 0.0
  %698 = vmatprep.subr.mxu0 0.0
  %699 = vmatpush1.msra.mxu0 0.0
  %700 = vmatprep.subr.mxu0 0.0
  %701 = vmatpush1.msra.mxu0 0.0
  %702 = vmatprep.subr.mxu0 0.0
  %703 = vmatpush1.msra.mxu0 0.0
  %704 = vmatprep.subr.mxu0 0.0
  %705 = vmatpush1.msra.mxu0 0.0
  %706 = vmatprep.subr.mxu0 0.0
  %707 = vmatpush1.msra.mxu0 0.0
  %708 = vmatprep.subr.mxu0 0.0
  %709 = vmatpush1.msra.mxu0 0.0
  %710 = vmatprep.subr.mxu0 0.0
  %711 = vmatpush1.msra.mxu0 0.0
  %712 = vmatprep.mubr.f32.mxu0 0.0
  %713 = vmatmul.mubr.f32.gmra.mrb[0].mxu0 %v640
  %v714 = vpop.f32.mrb[0].mxu0
  %v715 = vadd.f32 0.0, %v714
  %v716 = vpop.f32.mrb[0].mxu0
  %717 = vmatprep.mubr.f32.mxu0 0.0
  %718 = vmatmul.mubr.f32.gmra.mrb[0].mxu0 %v643
  %v719 = vpop.f32.mrb[0].mxu0
  %v720 = vadd.f32 0.0, %v719
  %v721 = vpop.f32.mrb[0].mxu0
  %722 = vmatprep.mubr.f32.mxu0 0.0
  %723 = vmatmul.mubr.f32.gmra.mrb[0].mxu0 %v646
  %v724 = vpop.f32.mrb[0].mxu0
  %v725 = vadd.f32 0.0, %v724
  %v726 = vpop.f32.mrb[0].mxu0
  %727 = vdwg.mxu0
  %v728 = vadd.f32 %v632, %v715
  %v729 = vadd.f32 %v633, %v720
  %v730 = vadd.f32 %v634, %v725
  %v731 = vld [vmem:[%s0 + $0x78] sm:$0xff]
  %v732 = vld [vmem:[%s0 + $0x80] sm:$0xff]
  %v733 = vld [vmem:[%s0 + $0x88] sm:$0xff]
  %v734 = vld [vmem:[%s0 + $0x90] sm:$0xff]
  %v735 = vld [vmem:[%s0 + $0x98] sm:$0xff]
  %v736 = vld [vmem:[%s0 + $0xa0] sm:$0xff]
  %v737 = vld [vmem:[%s0 + $0xa8] sm:$0xff]
  %v738 = vld [vmem:[%s0 + $0xb0] sm:$0xff]
  %v739 = vld [vmem:[%s0 + $0xb8] sm:$0xff]
  %v740 = vld [vmem:[%s0 + $0xc0] sm:$0xff]
  %v741 = vld [vmem:[%s0 + $0xc8] sm:$0xff]
  %v742 = vld [vmem:[%s0 + $0xd0] sm:$0xff]
  %v743 = vld [vmem:[%s0 + $0xd8] sm:$0xff]
  %v744 = vld [vmem:[%s0 + $0xe0] sm:$0xff]
  %v745 = vld [vmem:[%s0 + $0xe8] sm:$0xff]
  %746 = vmatprep.subr.mxu0 0.0
  %747 = vmatpush1.msra.mxu0 %v50
  %748 = vmatprep.subr.mxu0 0.0
  %749 = vmatpush1.msra.mxu0 %v51
  %750 = vmatprep.subr.mxu0 0.0
  %751 = vmatpush1.msra.mxu0 %v52
  %752 = vmatprep.subr.mxu0 0.0
  %753 = vmatpush1.msra.mxu0 %v53
  %754 = vmatprep.subr.mxu0 0.0
  %755 = vmatpush1.msra.mxu0 %v54
  %756 = vmatprep.subr.mxu0 0.0
  %757 = vmatpush1.msra.mxu0 %v55
  %758 = vmatprep.subr.mxu0 0.0
  %759 = vmatpush1.msra.mxu0 %v56
  %760 = vmatprep.subr.mxu0 0.0
  %761 = vmatpush1.msra.mxu0 %v57
  %762 = vmatprep.subr.mxu0 0.0
  %763 = vmatpush1.msra.mxu0 %v58
  %764 = vmatprep.subr.mxu0 0.0
  %765 = vmatpush1.msra.mxu0 %v59
  %766 = vmatprep.subr.mxu0 0.0
  %767 = vmatpush1.msra.mxu0 %v60
  %768 = vmatprep.subr.mxu0 0.0
  %769 = vmatpush1.msra.mxu0 %v61
  %770 = vmatprep.subr.mxu0 0.0
  %771 = vmatpush1.msra.mxu0 %v62
  %772 = vmatprep.subr.mxu0 0.0
  %773 = vmatpush1.msra.mxu0 %v63
  %774 = vmatprep.subr.mxu0 0.0
  %775 = vmatpush1.msra.mxu0 %v64
  %776 = vmatprep.subr.mxu0 0.0
  %777 = vmatpush1.msra.mxu0 %v65
  %778 = vmatprep.subr.mxu0 0.0
  %779 = vmatpush1.msra.mxu0 0.0
  %780 = vmatprep.subr.mxu0 0.0
  %781 = vmatpush1.msra.mxu0 0.0
  %782 = vmatprep.subr.mxu0 0.0
  %783 = vmatpush1.msra.mxu0 0.0
  %784 = vmatprep.subr.mxu0 0.0
  %785 = vmatpush1.msra.mxu0 0.0
  %786 = vmatprep.subr.mxu0 0.0
  %787 = vmatpush1.msra.mxu0 0.0
  %788 = vmatprep.subr.mxu0 0.0
  %789 = vmatpush1.msra.mxu0 0.0
  %790 = vmatprep.subr.mxu0 0.0
  %791 = vmatpush1.msra.mxu0 0.0
  %792 = vmatprep.subr.mxu0 0.0
  %793 = vmatpush1.msra.mxu0 0.0
  %794 = vmatprep.subr.mxu0 0.0
  %795 = vmatpush1.msra.mxu0 0.0
  %796 = vmatprep.subr.mxu0 0.0
  %797 = vmatpush1.msra.mxu0 0.0
  %798 = vmatprep.subr.mxu0 0.0
  %799 = vmatpush1.msra.mxu0 0.0
  %800 = vmatprep.subr.mxu0 0.0
  %801 = vmatpush1.msra.mxu0 0.0
  %802 = vmatprep.subr.mxu0 0.0
  %803 = vmatpush1.msra.mxu0 0.0
  %804 = vmatprep.subr.mxu0 0.0
  %805 = vmatpush1.msra.mxu0 0.0
  %806 = vmatprep.subr.mxu0 0.0
  %807 = vmatpush1.msra.mxu0 0.0
  %808 = vmatprep.subr.mxu0 0.0
  %809 = vmatpush1.msra.mxu0 0.0
  %810 = vmatprep.mubr.f32.mxu0 0.0
  %811 = vmatmul.mubr.f32.gmra.mrb[0].mxu0 %v731
  %v812 = vpop.f32.mrb[0].mxu0
  %v813 = vadd.f32 %v71, %v812
  %v814 = vpop.f32.mrb[0].mxu0
  %815 = vmatprep.mubr.f32.mxu0 0.0
  %816 = vmatmul.mubr.f32.gmra.mrb[0].mxu0 %v732
  %v817 = vpop.f32.mrb[0].mxu0
  %v818 = vadd.f32 %v71, %v817
  %v819 = vpop.f32.mrb[0].mxu0
  %820 = vmatprep.mubr.f32.mxu0 0.0
  %821 = vmatmul.mubr.f32.gmra.mrb[0].mxu0 %v733
  %v822 = vpop.f32.mrb[0].mxu0
  %v823 = vadd.f32 %v71, %v822
  %v824 = vpop.f32.mrb[0].mxu0
  %825 = vmatprep.mubr.f32.mxu0 0.0
  %826 = vmatmul.mubr.f32.gmra.mrb[0].mxu0 %v734
  %v827 = vpop.f32.mrb[0].mxu0
  %v828 = vadd.f32 %v71, %v827
  %v829 = vpop.f32.mrb[0].mxu0
  %830 = vmatprep.mubr.f32.mxu0 0.0
  %831 = vmatmul.mubr.f32.gmra.mrb[0].mxu0 %v735
  %v832 = vpop.f32.mrb[0].mxu0
  %v833 = vadd.f32 %v71, %v832
  %v834 = vpop.f32.mrb[0].mxu0
  %835 = vmatprep.mubr.f32.mxu0 0.0
  %836 = vmatmul.mubr.f32.gmra.mrb[0].mxu0 %v736
  %v837 = vpop.f32.mrb[0].mxu0
  %v838 = vadd.f32 %v71, %v837
  %v839 = vpop.f32.mrb[0].mxu0
  %840 = vmatprep.mubr.f32.mxu0 0.0
  %841 = vmatmul.mubr.f32.gmra.mrb[0].mxu0 %v737
  %v842 = vpop.f32.mrb[0].mxu0
  %v843 = vadd.f32 %v71, %v842
  %v844 = vpop.f32.mrb[0].mxu0
  %845 = vmatprep.mubr.f32.mxu0 0.0
  %846 = vmatmul.mubr.f32.gmra.mrb[0].mxu0 %v738
  %v847 = vpop.f32.mrb[0].mxu0
  %v848 = vadd.f32 %v71, %v847
  %v849 = vpop.f32.mrb[0].mxu0
  %850 = vmatprep.mubr.f32.mxu0 0.0
  %851 = vmatmul.mubr.f32.gmra.mrb[0].mxu0 %v739
  %v852 = vpop.f32.mrb[0].mxu0
  %v853 = vadd.f32 %v71, %v852
  %v854 = vpop.f32.mrb[0].mxu0
  %855 = vmatprep.mubr.f32.mxu0 0.0
  %856 = vmatmul.mubr.f32.gmra.mrb[0].mxu0 %v740
  %v857 = vpop.f32.mrb[0].mxu0
  %v858 = vadd.f32 %v71, %v857
  %v859 = vpop.f32.mrb[0].mxu0
  %860 = vmatprep.mubr.f32.mxu0 0.0
  %861 = vmatmul.mubr.f32.gmra.mrb[0].mxu0 %v741
  %v862 = vpop.f32.mrb[0].mxu0
  %v863 = vadd.f32 %v71, %v862
  %v864 = vpop.f32.mrb[0].mxu0
  %865 = vmatprep.mubr.f32.mxu0 0.0
  %866 = vmatmul.mubr.f32.gmra.mrb[0].mxu0 %v742
  %v867 = vpop.f32.mrb[0].mxu0
  %v868 = vadd.f32 %v71, %v867
  %v869 = vpop.f32.mrb[0].mxu0
  %870 = vmatprep.mubr.f32.mxu0 0.0
  %871 = vmatmul.mubr.f32.gmra.mrb[0].mxu0 %v743
  %v872 = vpop.f32.mrb[0].mxu0
  %v873 = vadd.f32 %v71, %v872
  %v874 = vpop.f32.mrb[0].mxu0
  %875 = vmatprep.mubr.f32.mxu0 0.0
  %876 = vmatmul.mubr.f32.gmra.mrb[0].mxu0 %v744
  %v877 = vpop.f32.mrb[0].mxu0
  %v878 = vadd.f32 %v71, %v877
  %v879 = vpop.f32.mrb[0].mxu0
  %880 = vmatprep.mubr.f32.mxu0 0.0
  %881 = vmatmul.mubr.f32.gmra.mrb[0].mxu0 %v745
  %v882 = vpop.f32.mrb[0].mxu0
  %v883 = vadd.f32 %v71, %v882
  %v884 = vpop.f32.mrb[0].mxu0
  %885 = vdwg.mxu0
  %v886 = vmax.f32 %v813, 0.0
  %v887 = vmax.f32 %v818, 0.0
  %v888 = vmax.f32 %v823, 0.0
  %v889 = vmax.f32 %v828, 0.0
  %v890 = vmax.f32 %v833, 0.0
  %v891 = vmax.f32 %v838, 0.0
  %v892 = vmax.f32 %v843, 0.0
  %v893 = vmax.f32 %v848, 0.0
  %v894 = vmax.f32 %v853, 0.0
  %v895 = vmax.f32 %v858, 0.0
  %v896 = vmax.f32 %v863, 0.0
  %v897 = vmax.f32 %v868, 0.0
  %v898 = vmax.f32 %v873, 0.0
  %v899 = vmax.f32 %v878, 0.0
  %v900 = vmax.f32 %v883, 0.0
  %v901 = vld [vmem:[%s3 + $0xa0] sm:$0xff]
  %v902 = vld [vmem:[%s3 + $0xa8] sm:$0xff]
  %v903 = vld [vmem:[%s3 + $0xb0] sm:$0xff]
  %v904 = vld [vmem:[%s3 + $0xb8] sm:$0xff]
  %v906 = vsel %vm254, %v886, 0
  %v909 = vsel %vm254, %v887, 0
  %v912 = vsel %vm254, %v888, 0
  %914 = vmatprep.subr.mxu0 0.0
  %915 = vmatpush1.msra.mxu0 %v901
  %916 = vmatprep.subr.mxu0 0.0
  %917 = vmatpush1.msra.mxu0 %v902
  %918 = vmatprep.subr.mxu0 0.0
  %919 = vmatpush1.msra.mxu0 %v903
  %920 = vmatprep.subr.mxu0 0.0
  %921 = vmatpush1.msra.mxu0 %v904
  %922 = vmatprep.subr.mxu0 0.0
  %923 = vmatpush1.msra.mxu0 0.0
  %924 = vmatprep.subr.mxu0 0.0
  %925 = vmatpush1.msra.mxu0 0.0
  %926 = vmatprep.subr.mxu0 0.0
  %927 = vmatpush1.msra.mxu0 0.0
  %928 = vmatprep.subr.mxu0 0.0
  %929 = vmatpush1.msra.mxu0 0.0
  %930 = vmatprep.subr.mxu0 0.0
  %931 = vmatpush1.msra.mxu0 0.0
  %932 = vmatprep.subr.mxu0 0.0
  %933 = vmatpush1.msra.mxu0 0.0
  %934 = vmatprep.subr.mxu0 0.0
  %935 = vmatpush1.msra.mxu0 0.0
  %936 = vmatprep.subr.mxu0 0.0
  %937 = vmatpush1.msra.mxu0 0.0
  %938 = vmatprep.subr.mxu0 0.0
  %939 = vmatpush1.msra.mxu0 0.0
  %940 = vmatprep.subr.mxu0 0.0
  %941 = vmatpush1.msra.mxu0 0.0
  %942 = vmatprep.subr.mxu0 0.0
  %943 = vmatpush1.msra.mxu0 0.0
  %944 = vmatprep.subr.mxu0 0.0
  %945 = vmatpush1.msra.mxu0 0.0
  %946 = vmatprep.subr.mxu0 0.0
  %947 = vmatpush1.msra.mxu0 0.0
  %948 = vmatprep.subr.mxu0 0.0
  %949 = vmatpush1.msra.mxu0 0.0
  %950 = vmatprep.subr.mxu0 0.0
  %951 = vmatpush1.msra.mxu0 0.0
  %952 = vmatprep.subr.mxu0 0.0
  %953 = vmatpush1.msra.mxu0 0.0
  %954 = vmatprep.subr.mxu0 0.0
  %955 = vmatpush1.msra.mxu0 0.0
  %956 = vmatprep.subr.mxu0 0.0
  %957 = vmatpush1.msra.mxu0 0.0
  %958 = vmatprep.subr.mxu0 0.0
  %959 = vmatpush1.msra.mxu0 0.0
  %960 = vmatprep.subr.mxu0 0.0
  %961 = vmatpush1.msra.mxu0 0.0
  %962 = vmatprep.subr.mxu0 0.0
  %963 = vmatpush1.msra.mxu0 0.0
  %964 = vmatprep.subr.mxu0 0.0
  %965 = vmatpush1.msra.mxu0 0.0
  %966 = vmatprep.subr.mxu0 0.0
  %967 = vmatpush1.msra.mxu0 0.0
  %968 = vmatprep.subr.mxu0 0.0
  %969 = vmatpush1.msra.mxu0 0.0
  %970 = vmatprep.subr.mxu0 0.0
  %971 = vmatpush1.msra.mxu0 0.0
  %972 = vmatprep.subr.mxu0 0.0
  %973 = vmatpush1.msra.mxu0 0.0
  %974 = vmatprep.subr.mxu0 0.0
  %975 = vmatpush1.msra.mxu0 0.0
  %976 = vmatprep.subr.mxu0 0.0
  %977 = vmatpush1.msra.mxu0 0.0
  %978 = vmatprep.mubr.f32.mxu0 0.0
  %979 = vmatmul.mubr.f32.gmra.mrb[0].mxu0 %v906
  %v980 = vpop.f32.mrb[0].mxu0
  %v981 = vadd.f32 0.0, %v980
  %v982 = vpop.f32.mrb[0].mxu0
  %983 = vmatprep.mubr.f32.mxu0 0.0
  %984 = vmatmul.mubr.f32.gmra.mrb[0].mxu0 %v909
  %v985 = vpop.f32.mrb[0].mxu0
  %v986 = vadd.f32 0.0, %v985
  %v987 = vpop.f32.mrb[0].mxu0
  %988 = vmatprep.mubr.f32.mxu0 0.0
  %989 = vmatmul.mubr.f32.gmra.mrb[0].mxu0 %v912
  %v990 = vpop.f32.mrb[0].mxu0
  %v991 = vadd.f32 0.0, %v990
  %v992 = vpop.f32.mrb[0].mxu0
  %993 = vdwg.mxu0
  %v994 = vadd.f32 %v728, %v981
  %v995 = vadd.f32 %v729, %v986
  %v996 = vadd.f32 %v730, %v991
  %v997 = vld [vmem:[%s3 + $0xc0] sm:$0xff]
  %v998 = vld [vmem:[%s3 + $0xc8] sm:$0xff]
  %v999 = vld [vmem:[%s3 + $0xd0] sm:$0xff]
  %v1000 = vld [vmem:[%s3 + $0xd8] sm:$0xff]
  %v1002 = vsel %vm254, %v889, 0
  %v1005 = vsel %vm254, %v890, 0
  %v1008 = vsel %vm254, %v891, 0
  %1010 = vmatprep.subr.mxu0 0.0
  %1011 = vmatpush1.msra.mxu0 %v997
  %1012 = vmatprep.subr.mxu0 0.0
  %1013 = vmatpush1.msra.mxu0 %v998
  %1014 = vmatprep.subr.mxu0 0.0
  %1015 = vmatpush1.msra.mxu0 %v999
  %1016 = vmatprep.subr.mxu0 0.0
  %1017 = vmatpush1.msra.mxu0 %v1000
  %1018 = vmatprep.subr.mxu0 0.0
  %1019 = vmatpush1.msra.mxu0 0.0
  %1020 = vmatprep.subr.mxu0 0.0
  %1021 = vmatpush1.msra.mxu0 0.0
  %1022 = vmatprep.subr.mxu0 0.0
  %1023 = vmatpush1.msra.mxu0 0.0
  %1024 = vmatprep.subr.mxu0 0.0
  %1025 = vmatpush1.msra.mxu0 0.0
  %1026 = vmatprep.subr.mxu0 0.0
  %1027 = vmatpush1.msra.mxu0 0.0
  %1028 = vmatprep.subr.mxu0 0.0
  %1029 = vmatpush1.msra.mxu0 0.0
  %1030 = vmatprep.subr.mxu0 0.0
  %1031 = vmatpush1.msra.mxu0 0.0
  %1032 = vmatprep.subr.mxu0 0.0
  %1033 = vmatpush1.msra.mxu0 0.0
  %1034 = vmatprep.subr.mxu0 0.0
  %1035 = vmatpush1.msra.mxu0 0.0
  %1036 = vmatprep.subr.mxu0 0.0
  %1037 = vmatpush1.msra.mxu0 0.0
  %1038 = vmatprep.subr.mxu0 0.0
  %1039 = vmatpush1.msra.mxu0 0.0
  %1040 = vmatprep.subr.mxu0 0.0
  %1041 = vmatpush1.msra.mxu0 0.0
  %1042 = vmatprep.subr.mxu0 0.0
  %1043 = vmatpush1.msra.mxu0 0.0
  %1044 = vmatprep.subr.mxu0 0.0
  %1045 = vmatpush1.msra.mxu0 0.0
  %1046 = vmatprep.subr.mxu0 0.0
  %1047 = vmatpush1.msra.mxu0 0.0
  %1048 = vmatprep.subr.mxu0 0.0
  %1049 = vmatpush1.msra.mxu0 0.0
  %1050 = vmatprep.subr.mxu0 0.0
  %1051 = vmatpush1.msra.mxu0 0.0
  %1052 = vmatprep.subr.mxu0 0.0
  %1053 = vmatpush1.msra.mxu0 0.0
  %1054 = vmatprep.subr.mxu0 0.0
  %1055 = vmatpush1.msra.mxu0 0.0
  %1056 = vmatprep.subr.mxu0 0.0
  %1057 = vmatpush1.msra.mxu0 0.0
  %1058 = vmatprep.subr.mxu0 0.0
  %1059 = vmatpush1.msra.mxu0 0.0
  %1060 = vmatprep.subr.mxu0 0.0
  %1061 = vmatpush1.msra.mxu0 0.0
  %1062 = vmatprep.subr.mxu0 0.0
  %1063 = vmatpush1.msra.mxu0 0.0
  %1064 = vmatprep.subr.mxu0 0.0
  %1065 = vmatpush1.msra.mxu0 0.0
  %1066 = vmatprep.subr.mxu0 0.0
  %1067 = vmatpush1.msra.mxu0 0.0
  %1068 = vmatprep.subr.mxu0 0.0
  %1069 = vmatpush1.msra.mxu0 0.0
  %1070 = vmatprep.subr.mxu0 0.0
  %1071 = vmatpush1.msra.mxu0 0.0
  %1072 = vmatprep.subr.mxu0 0.0
  %1073 = vmatpush1.msra.mxu0 0.0
  %1074 = vmatprep.mubr.f32.mxu0 0.0
  %1075 = vmatmul.mubr.f32.gmra.mrb[0].mxu0 %v1002
  %v1076 = vpop.f32.mrb[0].mxu0
  %v1077 = vadd.f32 0.0, %v1076
  %v1078 = vpop.f32.mrb[0].mxu0
  %1079 = vmatprep.mubr.f32.mxu0 0.0
  %1080 = vmatmul.mubr.f32.gmra.mrb[0].mxu0 %v1005
  %v1081 = vpop.f32.mrb[0].mxu0
  %v1082 = vadd.f32 0.0, %v1081
  %v1083 = vpop.f32.mrb[0].mxu0
  %1084 = vmatprep.mubr.f32.mxu0 0.0
  %1085 = vmatmul.mubr.f32.gmra.mrb[0].mxu0 %v1008
  %v1086 = vpop.f32.mrb[0].mxu0
  %v1087 = vadd.f32 0.0, %v1086
  %v1088 = vpop.f32.mrb[0].mxu0
  %1089 = vdwg.mxu0
  %v1090 = vadd.f32 %v994, %v1077
  %v1091 = vadd.f32 %v995, %v1082
  %v1092 = vadd.f32 %v996, %v1087
  %v1093 = vld [vmem:[%s3 + $0xe0] sm:$0xff]
  %v1094 = vld [vmem:[%s3 + $0xe8] sm:$0xff]
  %v1095 = vld [vmem:[%s3 + $0xf0] sm:$0xff]
  %v1096 = vld [vmem:[%s3 + $0xf8] sm:$0xff]
  %v1098 = vsel %vm254, %v892, 0
  %v1101 = vsel %vm254, %v893, 0
  %v1104 = vsel %vm254, %v894, 0
  %1106 = vmatprep.subr.mxu0 0.0
  %1107 = vmatpush1.msra.mxu0 %v1093
  %1108 = vmatprep.subr.mxu0 0.0
  %1109 = vmatpush1.msra.mxu0 %v1094
  %1110 = vmatprep.subr.mxu0 0.0
  %1111 = vmatpush1.msra.mxu0 %v1095
  %1112 = vmatprep.subr.mxu0 0.0
  %1113 = vmatpush1.msra.mxu0 %v1096
  %1114 = vmatprep.subr.mxu0 0.0
  %1115 = vmatpush1.msra.mxu0 0.0
  %1116 = vmatprep.subr.mxu0 0.0
  %1117 = vmatpush1.msra.mxu0 0.0
  %1118 = vmatprep.subr.mxu0 0.0
  %1119 = vmatpush1.msra.mxu0 0.0
  %1120 = vmatprep.subr.mxu0 0.0
  %1121 = vmatpush1.msra.mxu0 0.0
  %1122 = vmatprep.subr.mxu0 0.0
  %1123 = vmatpush1.msra.mxu0 0.0
  %1124 = vmatprep.subr.mxu0 0.0
  %1125 = vmatpush1.msra.mxu0 0.0
  %1126 = vmatprep.subr.mxu0 0.0
  %1127 = vmatpush1.msra.mxu0 0.0
  %1128 = vmatprep.subr.mxu0 0.0
  %1129 = vmatpush1.msra.mxu0 0.0
  %1130 = vmatprep.subr.mxu0 0.0
  %1131 = vmatpush1.msra.mxu0 0.0
  %1132 = vmatprep.subr.mxu0 0.0
  %1133 = vmatpush1.msra.mxu0 0.0
  %1134 = vmatprep.subr.mxu0 0.0
  %1135 = vmatpush1.msra.mxu0 0.0
  %1136 = vmatprep.subr.mxu0 0.0
  %1137 = vmatpush1.msra.mxu0 0.0
  %1138 = vmatprep.subr.mxu0 0.0
  %1139 = vmatpush1.msra.mxu0 0.0
  %1140 = vmatprep.subr.mxu0 0.0
  %1141 = vmatpush1.msra.mxu0 0.0
  %1142 = vmatprep.subr.mxu0 0.0
  %1143 = vmatpush1.msra.mxu0 0.0
  %1144 = vmatprep.subr.mxu0 0.0
  %1145 = vmatpush1.msra.mxu0 0.0
  %1146 = vmatprep.subr.mxu0 0.0
  %1147 = vmatpush1.msra.mxu0 0.0
  %1148 = vmatprep.subr.mxu0 0.0
  %1149 = vmatpush1.msra.mxu0 0.0
  %1150 = vmatprep.subr.mxu0 0.0
  %1151 = vmatpush1.msra.mxu0 0.0
  %1152 = vmatprep.subr.mxu0 0.0
  %1153 = vmatpush1.msra.mxu0 0.0
  %1154 = vmatprep.subr.mxu0 0.0
  %1155 = vmatpush1.msra.mxu0 0.0
  %1156 = vmatprep.subr.mxu0 0.0
  %1157 = vmatpush1.msra.mxu0 0.0
  %1158 = vmatprep.subr.mxu0 0.0
  %1159 = vmatpush1.msra.mxu0 0.0
  %1160 = vmatprep.subr.mxu0 0.0
  %1161 = vmatpush1.msra.mxu0 0.0
  %1162 = vmatprep.subr.mxu0 0.0
  %1163 = vmatpush1.msra.mxu0 0.0
  %1164 = vmatprep.subr.mxu0 0.0
  %1165 = vmatpush1.msra.mxu0 0.0
  %1166 = vmatprep.subr.mxu0 0.0
  %1167 = vmatpush1.msra.mxu0 0.0
  %1168 = vmatprep.subr.mxu0 0.0
  %1169 = vmatpush1.msra.mxu0 0.0
  %1170 = vmatprep.mubr.f32.mxu0 0.0
  %1171 = vmatmul.mubr.f32.gmra.mrb[0].mxu0 %v1098
  %v1172 = vpop.f32.mrb[0].mxu0
  %v1173 = vadd.f32 0.0, %v1172
  %v1174 = vpop.f32.mrb[0].mxu0
  %1175 = vmatprep.mubr.f32.mxu0 0.0
  %1176 = vmatmul.mubr.f32.gmra.mrb[0].mxu0 %v1101
  %v1177 = vpop.f32.mrb[0].mxu0
  %v1178 = vadd.f32 0.0, %v1177
  %v1179 = vpop.f32.mrb[0].mxu0
  %1180 = vmatprep.mubr.f32.mxu0 0.0
  %1181 = vmatmul.mubr.f32.gmra.mrb[0].mxu0 %v1104
  %v1182 = vpop.f32.mrb[0].mxu0
  %v1183 = vadd.f32 0.0, %v1182
  %v1184 = vpop.f32.mrb[0].mxu0
  %1185 = vdwg.mxu0
  %v1186 = vadd.f32 %v1090, %v1173
  %v1187 = vadd.f32 %v1091, %v1178
  %v1188 = vadd.f32 %v1092, %v1183
  %v1189 = vld [vmem:[%s3 + $0x100] sm:$0xff]
  %v1190 = vld [vmem:[%s3 + $0x108] sm:$0xff]
  %v1191 = vld [vmem:[%s3 + $0x110] sm:$0xff]
  %v1192 = vld [vmem:[%s3 + $0x118] sm:$0xff]
  %v1194 = vsel %vm254, %v895, 0
  %v1197 = vsel %vm254, %v896, 0
  %v1200 = vsel %vm254, %v897, 0
  %1202 = vmatprep.subr.mxu0 0.0
  %1203 = vmatpush1.msra.mxu0 %v1189
  %1204 = vmatprep.subr.mxu0 0.0
  %1205 = vmatpush1.msra.mxu0 %v1190
  %1206 = vmatprep.subr.mxu0 0.0
  %1207 = vmatpush1.msra.mxu0 %v1191
  %1208 = vmatprep.subr.mxu0 0.0
  %1209 = vmatpush1.msra.mxu0 %v1192
  %1210 = vmatprep.subr.mxu0 0.0
  %1211 = vmatpush1.msra.mxu0 0.0
  %1212 = vmatprep.subr.mxu0 0.0
  %1213 = vmatpush1.msra.mxu0 0.0
  %1214 = vmatprep.subr.mxu0 0.0
  %1215 = vmatpush1.msra.mxu0 0.0
  %1216 = vmatprep.subr.mxu0 0.0
  %1217 = vmatpush1.msra.mxu0 0.0
  %1218 = vmatprep.subr.mxu0 0.0
  %1219 = vmatpush1.msra.mxu0 0.0
  %1220 = vmatprep.subr.mxu0 0.0
  %1221 = vmatpush1.msra.mxu0 0.0
  %1222 = vmatprep.subr.mxu0 0.0
  %1223 = vmatpush1.msra.mxu0 0.0
  %1224 = vmatprep.subr.mxu0 0.0
  %1225 = vmatpush1.msra.mxu0 0.0
  %1226 = vmatprep.subr.mxu0 0.0
  %1227 = vmatpush1.msra.mxu0 0.0
  %1228 = vmatprep.subr.mxu0 0.0
  %1229 = vmatpush1.msra.mxu0 0.0
  %1230 = vmatprep.subr.mxu0 0.0
  %1231 = vmatpush1.msra.mxu0 0.0
  %1232 = vmatprep.subr.mxu0 0.0
  %1233 = vmatpush1.msra.mxu0 0.0
  %1234 = vmatprep.subr.mxu0 0.0
  %1235 = vmatpush1.msra.mxu0 0.0
  %1236 = vmatprep.subr.mxu0 0.0
  %1237 = vmatpush1.msra.mxu0 0.0
  %1238 = vmatprep.subr.mxu0 0.0
  %1239 = vmatpush1.msra.mxu0 0.0
  %1240 = vmatprep.subr.mxu0 0.0
  %1241 = vmatpush1.msra.mxu0 0.0
  %1242 = vmatprep.subr.mxu0 0.0
  %1243 = vmatpush1.msra.mxu0 0.0
  %1244 = vmatprep.subr.mxu0 0.0
  %1245 = vmatpush1.msra.mxu0 0.0
  %1246 = vmatprep.subr.mxu0 0.0
  %1247 = vmatpush1.msra.mxu0 0.0
  %1248 = vmatprep.subr.mxu0 0.0
  %1249 = vmatpush1.msra.mxu0 0.0
  %1250 = vmatprep.subr.mxu0 0.0
  %1251 = vmatpush1.msra.mxu0 0.0
  %1252 = vmatprep.subr.mxu0 0.0
  %1253 = vmatpush1.msra.mxu0 0.0
  %1254 = vmatprep.subr.mxu0 0.0
  %1255 = vmatpush1.msra.mxu0 0.0
  %1256 = vmatprep.subr.mxu0 0.0
  %1257 = vmatpush1.msra.mxu0 0.0
  %1258 = vmatprep.subr.mxu0 0.0
  %1259 = vmatpush1.msra.mxu0 0.0
  %1260 = vmatprep.subr.mxu0 0.0
  %1261 = vmatpush1.msra.mxu0 0.0
  %1262 = vmatprep.subr.mxu0 0.0
  %1263 = vmatpush1.msra.mxu0 0.0
  %1264 = vmatprep.subr.mxu0 0.0
  %1265 = vmatpush1.msra.mxu0 0.0
  %1266 = vmatprep.mubr.f32.mxu0 0.0
  %1267 = vmatmul.mubr.f32.gmra.mrb[0].mxu0 %v1194
  %v1268 = vpop.f32.mrb[0].mxu0
  %v1269 = vadd.f32 0.0, %v1268
  %v1270 = vpop.f32.mrb[0].mxu0
  %1271 = vmatprep.mubr.f32.mxu0 0.0
  %1272 = vmatmul.mubr.f32.gmra.mrb[0].mxu0 %v1197
  %v1273 = vpop.f32.mrb[0].mxu0
  %v1274 = vadd.f32 0.0, %v1273
  %v1275 = vpop.f32.mrb[0].mxu0
  %1276 = vmatprep.mubr.f32.mxu0 0.0
  %1277 = vmatmul.mubr.f32.gmra.mrb[0].mxu0 %v1200
  %v1278 = vpop.f32.mrb[0].mxu0
  %v1279 = vadd.f32 0.0, %v1278
  %v1280 = vpop.f32.mrb[0].mxu0
  %1281 = vdwg.mxu0
  %v1282 = vadd.f32 %v1186, %v1269
  %v1283 = vadd.f32 %v1187, %v1274
  %v1284 = vadd.f32 %v1188, %v1279
  %v1285 = vld [vmem:[%s3 + $0x120] sm:$0xff]
  %v1286 = vld [vmem:[%s3 + $0x128] sm:$0xff]
  %v1287 = vld [vmem:[%s3 + $0x130] sm:$0xff]
  %v1288 = vld [vmem:[%s3 + $0x138] sm:$0xff]
  %v1290 = vsel %vm254, %v898, 0
  %v1293 = vsel %vm254, %v899, 0
  %v1296 = vsel %vm254, %v900, 0
  %1298 = vmatprep.subr.mxu0 0.0
  %1299 = vmatpush1.msra.mxu0 %v1285
  %1300 = vmatprep.subr.mxu0 0.0
  %1301 = vmatpush1.msra.mxu0 %v1286
  %1302 = vmatprep.subr.mxu0 0.0
  %1303 = vmatpush1.msra.mxu0 %v1287
  %1304 = vmatprep.subr.mxu0 0.0
  %1305 = vmatpush1.msra.mxu0 %v1288
  %1306 = vmatprep.subr.mxu0 0.0
  %1307 = vmatpush1.msra.mxu0 0.0
  %1308 = vmatprep.subr.mxu0 0.0
  %1309 = vmatpush1.msra.mxu0 0.0
  %1310 = vmatprep.subr.mxu0 0.0
  %1311 = vmatpush1.msra.mxu0 0.0
  %1312 = vmatprep.subr.mxu0 0.0
  %1313 = vmatpush1.msra.mxu0 0.0
  %1314 = vmatprep.subr.mxu0 0.0
  %1315 = vmatpush1.msra.mxu0 0.0
  %1316 = vmatprep.subr.mxu0 0.0
  %1317 = vmatpush1.msra.mxu0 0.0
  %1318 = vmatprep.subr.mxu0 0.0
  %1319 = vmatpush1.msra.mxu0 0.0
  %1320 = vmatprep.subr.mxu0 0.0
  %1321 = vmatpush1.msra.mxu0 0.0
  %1322 = vmatprep.subr.mxu0 0.0
  %1323 = vmatpush1.msra.mxu0 0.0
  %1324 = vmatprep.subr.mxu0 0.0
  %1325 = vmatpush1.msra.mxu0 0.0
  %1326 = vmatprep.subr.mxu0 0.0
  %1327 = vmatpush1.msra.mxu0 0.0
  %1328 = vmatprep.subr.mxu0 0.0
  %1329 = vmatpush1.msra.mxu0 0.0
  %1330 = vmatprep.subr.mxu0 0.0
  %1331 = vmatpush1.msra.mxu0 0.0
  %1332 = vmatprep.subr.mxu0 0.0
  %1333 = vmatpush1.msra.mxu0 0.0
  %1334 = vmatprep.subr.mxu0 0.0
  %1335 = vmatpush1.msra.mxu0 0.0
  %1336 = vmatprep.subr.mxu0 0.0
  %1337 = vmatpush1.msra.mxu0 0.0
  %1338 = vmatprep.subr.mxu0 0.0
  %1339 = vmatpush1.msra.mxu0 0.0
  %1340 = vmatprep.subr.mxu0 0.0
  %1341 = vmatpush1.msra.mxu0 0.0
  %1342 = vmatprep.subr.mxu0 0.0
  %1343 = vmatpush1.msra.mxu0 0.0
  %1344 = vmatprep.subr.mxu0 0.0
  %1345 = vmatpush1.msra.mxu0 0.0
  %1346 = vmatprep.subr.mxu0 0.0
  %1347 = vmatpush1.msra.mxu0 0.0
  %1348 = vmatprep.subr.mxu0 0.0
  %1349 = vmatpush1.msra.mxu0 0.0
  %1350 = vmatprep.subr.mxu0 0.0
  %1351 = vmatpush1.msra.mxu0 0.0
  %1352 = vmatprep.subr.mxu0 0.0
  %1353 = vmatpush1.msra.mxu0 0.0
  %1354 = vmatprep.subr.mxu0 0.0
  %1355 = vmatpush1.msra.mxu0 0.0
  %1356 = vmatprep.subr.mxu0 0.0
  %1357 = vmatpush1.msra.mxu0 0.0
  %1358 = vmatprep.subr.mxu0 0.0
  %1359 = vmatpush1.msra.mxu0 0.0
  %1360 = vmatprep.subr.mxu0 0.0
  %1361 = vmatpush1.msra.mxu0 0.0
  %1362 = vmatprep.mubr.f32.mxu0 0.0
  %1363 = vmatmul.mubr.f32.gmra.mrb[0].mxu0 %v1290
  %v1364 = vpop.f32.mrb[0].mxu0
  %v1365 = vadd.f32 0.0, %v1364
  %v1366 = vpop.f32.mrb[0].mxu0
  %1367 = vmatprep.mubr.f32.mxu0 0.0
  %1368 = vmatmul.mubr.f32.gmra.mrb[0].mxu0 %v1293
  %v1369 = vpop.f32.mrb[0].mxu0
  %v1370 = vadd.f32 0.0, %v1369
  %v1371 = vpop.f32.mrb[0].mxu0
  %1372 = vmatprep.mubr.f32.mxu0 0.0
  %1373 = vmatmul.mubr.f32.gmra.mrb[0].mxu0 %v1296
  %v1374 = vpop.f32.mrb[0].mxu0
  %v1375 = vadd.f32 0.0, %v1374
  %v1376 = vpop.f32.mrb[0].mxu0
  %1377 = vdwg.mxu0
  %v1378 = vadd.f32 %v1282, %v1365
  %v1379 = vadd.f32 %v1283, %v1370
  %v1380 = vadd.f32 %v1284, %v1375
  %v1381 = vld [vmem:[%s0 + $0xf0] sm:$0xff]
  %v1382 = vld [vmem:[%s0 + $0xf8] sm:$0xff]
  %v1383 = vld [vmem:[%s0 + $0x100] sm:$0xff]
  %v1384 = vld [vmem:[%s0 + $0x108] sm:$0xff]
  %v1385 = vld [vmem:[%s0 + $0x110] sm:$0xff]
  %v1386 = vld [vmem:[%s0 + $0x118] sm:$0xff]
  %v1387 = vld [vmem:[%s0 + $0x120] sm:$0xff]
  %v1388 = vld [vmem:[%s0 + $0x128] sm:$0xff]
  %v1389 = vld [vmem:[%s0 + $0x130] sm:$0xff]
  %v1390 = vld [vmem:[%s0 + $0x138] sm:$0xff]
  %v1391 = vld [vmem:[%s0 + $0x140] sm:$0xff]
  %v1392 = vld [vmem:[%s0 + $0x148] sm:$0xff]
  %v1393 = vld [vmem:[%s0 + $0x150] sm:$0xff]
  %v1394 = vld [vmem:[%s0 + $0x158] sm:$0xff]
  %v1395 = vld [vmem:[%s0 + $0x160] sm:$0xff]
  %1396 = vmatprep.subr.mxu0 0.0
  %1397 = vmatpush1.msra.mxu0 %v50
  %1398 = vmatprep.subr.mxu0 0.0
  %1399 = vmatpush1.msra.mxu0 %v51
  %1400 = vmatprep.subr.mxu0 0.0
  %1401 = vmatpush1.msra.mxu0 %v52
  %1402 = vmatprep.subr.mxu0 0.0
  %1403 = vmatpush1.msra.mxu0 %v53
  %1404 = vmatprep.subr.mxu0 0.0
  %1405 = vmatpush1.msra.mxu0 %v54
  %1406 = vmatprep.subr.mxu0 0.0
  %1407 = vmatpush1.msra.mxu0 %v55
  %1408 = vmatprep.subr.mxu0 0.0
  %1409 = vmatpush1.msra.mxu0 %v56
  %1410 = vmatprep.subr.mxu0 0.0
  %1411 = vmatpush1.msra.mxu0 %v57
  %1412 = vmatprep.subr.mxu0 0.0
  %1413 = vmatpush1.msra.mxu0 %v58
  %1414 = vmatprep.subr.mxu0 0.0
  %1415 = vmatpush1.msra.mxu0 %v59
  %1416 = vmatprep.subr.mxu0 0.0
  %1417 = vmatpush1.msra.mxu0 %v60
  %1418 = vmatprep.subr.mxu0 0.0
  %1419 = vmatpush1.msra.mxu0 %v61
  %1420 = vmatprep.subr.mxu0 0.0
  %1421 = vmatpush1.msra.mxu0 %v62
  %1422 = vmatprep.subr.mxu0 0.0
  %1423 = vmatpush1.msra.mxu0 %v63
  %1424 = vmatprep.subr.mxu0 0.0
  %1425 = vmatpush1.msra.mxu0 %v64
  %1426 = vmatprep.subr.mxu0 0.0
  %1427 = vmatpush1.msra.mxu0 %v65
  %1428 = vmatprep.subr.mxu0 0.0
  %1429 = vmatpush1.msra.mxu0 0.0
  %1430 = vmatprep.subr.mxu0 0.0
  %1431 = vmatpush1.msra.mxu0 0.0
  %1432 = vmatprep.subr.mxu0 0.0
  %1433 = vmatpush1.msra.mxu0 0.0
  %1434 = vmatprep.subr.mxu0 0.0
  %1435 = vmatpush1.msra.mxu0 0.0
  %1436 = vmatprep.subr.mxu0 0.0
  %1437 = vmatpush1.msra.mxu0 0.0
  %1438 = vmatprep.subr.mxu0 0.0
  %1439 = vmatpush1.msra.mxu0 0.0
  %1440 = vmatprep.subr.mxu0 0.0
  %1441 = vmatpush1.msra.mxu0 0.0
  %1442 = vmatprep.subr.mxu0 0.0
  %1443 = vmatpush1.msra.mxu0 0.0
  %1444 = vmatprep.subr.mxu0 0.0
  %1445 = vmatpush1.msra.mxu0 0.0
  %1446 = vmatprep.subr.mxu0 0.0
  %1447 = vmatpush1.msra.mxu0 0.0
  %1448 = vmatprep.subr.mxu0 0.0
  %1449 = vmatpush1.msra.mxu0 0.0
  %1450 = vmatprep.subr.mxu0 0.0
  %1451 = vmatpush1.msra.mxu0 0.0
  %1452 = vmatprep.subr.mxu0 0.0
  %1453 = vmatpush1.msra.mxu0 0.0
  %1454 = vmatprep.subr.mxu0 0.0
  %1455 = vmatpush1.msra.mxu0 0.0
  %1456 = vmatprep.subr.mxu0 0.0
  %1457 = vmatpush1.msra.mxu0 0.0
  %1458 = vmatprep.subr.mxu0 0.0
  %1459 = vmatpush1.msra.mxu0 0.0
  %1460 = vmatprep.mubr.f32.mxu0 0.0
  %1461 = vmatmul.mubr.f32.gmra.mrb[0].mxu0 %v1381
  %v1462 = vpop.f32.mrb[0].mxu0
  %v1463 = vadd.f32 %v71, %v1462
  %v1464 = vpop.f32.mrb[0].mxu0
  %1465 = vmatprep.mubr.f32.mxu0 0.0
  %1466 = vmatmul.mubr.f32.gmra.mrb[0].mxu0 %v1382
  %v1467 = vpop.f32.mrb[0].mxu0
  %v1468 = vadd.f32 %v71, %v1467
  %v1469 = vpop.f32.mrb[0].mxu0
  %1470 = vmatprep.mubr.f32.mxu0 0.0
  %1471 = vmatmul.mubr.f32.gmra.mrb[0].mxu0 %v1383
  %v1472 = vpop.f32.mrb[0].mxu0
  %v1473 = vadd.f32 %v71, %v1472
  %v1474 = vpop.f32.mrb[0].mxu0
  %1475 = vmatprep.mubr.f32.mxu0 0.0
  %1476 = vmatmul.mubr.f32.gmra.mrb[0].mxu0 %v1384
  %v1477 = vpop.f32.mrb[0].mxu0
  %v1478 = vadd.f32 %v71, %v1477
  %v1479 = vpop.f32.mrb[0].mxu0
  %1480 = vmatprep.mubr.f32.mxu0 0.0
  %1481 = vmatmul.mubr.f32.gmra.mrb[0].mxu0 %v1385
  %v1482 = vpop.f32.mrb[0].mxu0
  %v1483 = vadd.f32 %v71, %v1482
  %v1484 = vpop.f32.mrb[0].mxu0
  %1485 = vmatprep.mubr.f32.mxu0 0.0
  %1486 = vmatmul.mubr.f32.gmra.mrb[0].mxu0 %v1386
  %v1487 = vpop.f32.mrb[0].mxu0
  %v1488 = vadd.f32 %v71, %v1487
  %v1489 = vpop.f32.mrb[0].mxu0
  %1490 = vmatprep.mubr.f32.mxu0 0.0
  %1491 = vmatmul.mubr.f32.gmra.mrb[0].mxu0 %v1387
  %v1492 = vpop.f32.mrb[0].mxu0
  %v1493 = vadd.f32 %v71, %v1492
  %v1494 = vpop.f32.mrb[0].mxu0
  %1495 = vmatprep.mubr.f32.mxu0 0.0
  %1496 = vmatmul.mubr.f32.gmra.mrb[0].mxu0 %v1388
  %v1497 = vpop.f32.mrb[0].mxu0
  %v1498 = vadd.f32 %v71, %v1497
  %v1499 = vpop.f32.mrb[0].mxu0
  %1500 = vmatprep.mubr.f32.mxu0 0.0
  %1501 = vmatmul.mubr.f32.gmra.mrb[0].mxu0 %v1389
  %v1502 = vpop.f32.mrb[0].mxu0
  %v1503 = vadd.f32 %v71, %v1502
  %v1504 = vpop.f32.mrb[0].mxu0
  %1505 = vmatprep.mubr.f32.mxu0 0.0
  %1506 = vmatmul.mubr.f32.gmra.mrb[0].mxu0 %v1390
  %v1507 = vpop.f32.mrb[0].mxu0
  %v1508 = vadd.f32 %v71, %v1507
  %v1509 = vpop.f32.mrb[0].mxu0
  %1510 = vmatprep.mubr.f32.mxu0 0.0
  %1511 = vmatmul.mubr.f32.gmra.mrb[0].mxu0 %v1391
  %v1512 = vpop.f32.mrb[0].mxu0
  %v1513 = vadd.f32 %v71, %v1512
  %v1514 = vpop.f32.mrb[0].mxu0
  %1515 = vmatprep.mubr.f32.mxu0 0.0
  %1516 = vmatmul.mubr.f32.gmra.mrb[0].mxu0 %v1392
  %v1517 = vpop.f32.mrb[0].mxu0
  %v1518 = vadd.f32 %v71, %v1517
  %v1519 = vpop.f32.mrb[0].mxu0
  %1520 = vmatprep.mubr.f32.mxu0 0.0
  %1521 = vmatmul.mubr.f32.gmra.mrb[0].mxu0 %v1393
  %v1522 = vpop.f32.mrb[0].mxu0
  %v1523 = vadd.f32 %v71, %v1522
  %v1524 = vpop.f32.mrb[0].mxu0
  %1525 = vmatprep.mubr.f32.mxu0 0.0
  %1526 = vmatmul.mubr.f32.gmra.mrb[0].mxu0 %v1394
  %v1527 = vpop.f32.mrb[0].mxu0
  %v1528 = vadd.f32 %v71, %v1527
  %v1529 = vpop.f32.mrb[0].mxu0
  %1530 = vmatprep.mubr.f32.mxu0 0.0
  %1531 = vmatmul.mubr.f32.gmra.mrb[0].mxu0 %v1395
  %v1532 = vpop.f32.mrb[0].mxu0
  %v1533 = vadd.f32 %v71, %v1532
  %v1534 = vpop.f32.mrb[0].mxu0
  %1535 = vdwg.mxu0
  %v1536 = vmax.f32 %v1463, 0.0
  %v1537 = vmax.f32 %v1468, 0.0
  %v1538 = vmax.f32 %v1473, 0.0
  %v1539 = vmax.f32 %v1478, 0.0
  %v1540 = vmax.f32 %v1483, 0.0
  %v1541 = vmax.f32 %v1488, 0.0
  %v1542 = vmax.f32 %v1493, 0.0
  %v1543 = vmax.f32 %v1498, 0.0
  %v1544 = vmax.f32 %v1503, 0.0
  %v1545 = vmax.f32 %v1508, 0.0
  %v1546 = vmax.f32 %v1513, 0.0
  %v1547 = vmax.f32 %v1518, 0.0
  %v1548 = vmax.f32 %v1523, 0.0
  %v1549 = vmax.f32 %v1528, 0.0
  %v1550 = vmax.f32 %v1533, 0.0
  %v1551 = vld [vmem:[%s3 + $0x140] sm:$0xff]
  %v1552 = vld [vmem:[%s3 + $0x148] sm:$0xff]
  %v1553 = vld [vmem:[%s3 + $0x150] sm:$0xff]
  %v1554 = vld [vmem:[%s3 + $0x158] sm:$0xff]
  %v1556 = vsel %vm254, %v1536, 0
  %v1559 = vsel %vm254, %v1537, 0
  %v1562 = vsel %vm254, %v1538, 0
  %1564 = vmatprep.subr.mxu0 0.0
  %1565 = vmatpush1.msra.mxu0 %v1551
  %1566 = vmatprep.subr.mxu0 0.0
  %1567 = vmatpush1.msra.mxu0 %v1552
  %1568 = vmatprep.subr.mxu0 0.0
  %1569 = vmatpush1.msra.mxu0 %v1553
  %1570 = vmatprep.subr.mxu0 0.0
  %1571 = vmatpush1.msra.mxu0 %v1554
  %1572 = vmatprep.subr.mxu0 0.0
  %1573 = vmatpush1.msra.mxu0 0.0
  %1574 = vmatprep.subr.mxu0 0.0
  %1575 = vmatpush1.msra.mxu0 0.0
  %1576 = vmatprep.subr.mxu0 0.0
  %1577 = vmatpush1.msra.mxu0 0.0
  %1578 = vmatprep.subr.mxu0 0.0
  %1579 = vmatpush1.msra.mxu0 0.0
  %1580 = vmatprep.subr.mxu0 0.0
  %1581 = vmatpush1.msra.mxu0 0.0
  %1582 = vmatprep.subr.mxu0 0.0
  %1583 = vmatpush1.msra.mxu0 0.0
  %1584 = vmatprep.subr.mxu0 0.0
  %1585 = vmatpush1.msra.mxu0 0.0
  %1586 = vmatprep.subr.mxu0 0.0
  %1587 = vmatpush1.msra.mxu0 0.0
  %1588 = vmatprep.subr.mxu0 0.0
  %1589 = vmatpush1.msra.mxu0 0.0
  %1590 = vmatprep.subr.mxu0 0.0
  %1591 = vmatpush1.msra.mxu0 0.0
  %1592 = vmatprep.subr.mxu0 0.0
  %1593 = vmatpush1.msra.mxu0 0.0
  %1594 = vmatprep.subr.mxu0 0.0
  %1595 = vmatpush1.msra.mxu0 0.0
  %1596 = vmatprep.subr.mxu0 0.0
  %1597 = vmatpush1.msra.mxu0 0.0
  %1598 = vmatprep.subr.mxu0 0.0
  %1599 = vmatpush1.msra.mxu0 0.0
  %1600 = vmatprep.subr.mxu0 0.0
  %1601 = vmatpush1.msra.mxu0 0.0
  %1602 = vmatprep.subr.mxu0 0.0
  %1603 = vmatpush1.msra.mxu0 0.0
  %1604 = vmatprep.subr.mxu0 0.0
  %1605 = vmatpush1.msra.mxu0 0.0
  %1606 = vmatprep.subr.mxu0 0.0
  %1607 = vmatpush1.msra.mxu0 0.0
  %1608 = vmatprep.subr.mxu0 0.0
  %1609 = vmatpush1.msra.mxu0 0.0
  %1610 = vmatprep.subr.mxu0 0.0
  %1611 = vmatpush1.msra.mxu0 0.0
  %1612 = vmatprep.subr.mxu0 0.0
  %1613 = vmatpush1.msra.mxu0 0.0
  %1614 = vmatprep.subr.mxu0 0.0
  %1615 = vmatpush1.msra.mxu0 0.0
  %1616 = vmatprep.subr.mxu0 0.0
  %1617 = vmatpush1.msra.mxu0 0.0
  %1618 = vmatprep.subr.mxu0 0.0
  %1619 = vmatpush1.msra.mxu0 0.0
  %1620 = vmatprep.subr.mxu0 0.0
  %1621 = vmatpush1.msra.mxu0 0.0
  %1622 = vmatprep.subr.mxu0 0.0
  %1623 = vmatpush1.msra.mxu0 0.0
  %1624 = vmatprep.subr.mxu0 0.0
  %1625 = vmatpush1.msra.mxu0 0.0
  %1626 = vmatprep.subr.mxu0 0.0
  %1627 = vmatpush1.msra.mxu0 0.0
  %1628 = vmatprep.mubr.f32.mxu0 0.0
  %1629 = vmatmul.mubr.f32.gmra.mrb[0].mxu0 %v1556
  %v1630 = vpop.f32.mrb[0].mxu0
  %v1631 = vadd.f32 0.0, %v1630
  %v1632 = vpop.f32.mrb[0].mxu0
  %1633 = vmatprep.mubr.f32.mxu0 0.0
  %1634 = vmatmul.mubr.f32.gmra.mrb[0].mxu0 %v1559
  %v1635 = vpop.f32.mrb[0].mxu0
  %v1636 = vadd.f32 0.0, %v1635
  %v1637 = vpop.f32.mrb[0].mxu0
  %1638 = vmatprep.mubr.f32.mxu0 0.0
  %1639 = vmatmul.mubr.f32.gmra.mrb[0].mxu0 %v1562
  %v1640 = vpop.f32.mrb[0].mxu0
  %v1641 = vadd.f32 0.0, %v1640
  %v1642 = vpop.f32.mrb[0].mxu0
  %1643 = vdwg.mxu0
  %v1644 = vadd.f32 %v1378, %v1631
  %v1645 = vadd.f32 %v1379, %v1636
  %v1646 = vadd.f32 %v1380, %v1641
  %v1647 = vld [vmem:[%s3 + $0x160] sm:$0xff]
  %v1648 = vld [vmem:[%s3 + $0x168] sm:$0xff]
  %v1649 = vld [vmem:[%s3 + $0x170] sm:$0xff]
  %v1650 = vld [vmem:[%s3 + $0x178] sm:$0xff]
  %v1652 = vsel %vm254, %v1539, 0
  %v1655 = vsel %vm254, %v1540, 0
  %v1658 = vsel %vm254, %v1541, 0
  %1660 = vmatprep.subr.mxu0 0.0
  %1661 = vmatpush1.msra.mxu0 %v1647
  %1662 = vmatprep.subr.mxu0 0.0
  %1663 = vmatpush1.msra.mxu0 %v1648
  %1664 = vmatprep.subr.mxu0 0.0
  %1665 = vmatpush1.msra.mxu0 %v1649
  %1666 = vmatprep.subr.mxu0 0.0
  %1667 = vmatpush1.msra.mxu0 %v1650
  %1668 = vmatprep.subr.mxu0 0.0
  %1669 = vmatpush1.msra.mxu0 0.0
  %1670 = vmatprep.subr.mxu0 0.0
  %1671 = vmatpush1.msra.mxu0 0.0
  %1672 = vmatprep.subr.mxu0 0.0
  %1673 = vmatpush1.msra.mxu0 0.0
  %1674 = vmatprep.subr.mxu0 0.0
  %1675 = vmatpush1.msra.mxu0 0.0
  %1676 = vmatprep.subr.mxu0 0.0
  %1677 = vmatpush1.msra.mxu0 0.0
  %1678 = vmatprep.subr.mxu0 0.0
  %1679 = vmatpush1.msra.mxu0 0.0
  %1680 = vmatprep.subr.mxu0 0.0
  %1681 = vmatpush1.msra.mxu0 0.0
  %1682 = vmatprep.subr.mxu0 0.0
  %1683 = vmatpush1.msra.mxu0 0.0
  %1684 = vmatprep.subr.mxu0 0.0
  %1685 = vmatpush1.msra.mxu0 0.0
  %1686 = vmatprep.subr.mxu0 0.0
  %1687 = vmatpush1.msra.mxu0 0.0
  %1688 = vmatprep.subr.mxu0 0.0
  %1689 = vmatpush1.msra.mxu0 0.0
  %1690 = vmatprep.subr.mxu0 0.0
  %1691 = vmatpush1.msra.mxu0 0.0
  %1692 = vmatprep.subr.mxu0 0.0
  %1693 = vmatpush1.msra.mxu0 0.0
  %1694 = vmatprep.subr.mxu0 0.0
  %1695 = vmatpush1.msra.mxu0 0.0
  %1696 = vmatprep.subr.mxu0 0.0
  %1697 = vmatpush1.msra.mxu0 0.0
  %1698 = vmatprep.subr.mxu0 0.0
  %1699 = vmatpush1.msra.mxu0 0.0
  %1700 = vmatprep.subr.mxu0 0.0
  %1701 = vmatpush1.msra.mxu0 0.0
  %1702 = vmatprep.subr.mxu0 0.0
  %1703 = vmatpush1.msra.mxu0 0.0
  %1704 = vmatprep.subr.mxu0 0.0
  %1705 = vmatpush1.msra.mxu0 0.0
  %1706 = vmatprep.subr.mxu0 0.0
  %1707 = vmatpush1.msra.mxu0 0.0
  %1708 = vmatprep.subr.mxu0 0.0
  %1709 = vmatpush1.msra.mxu0 0.0
  %1710 = vmatprep.subr.mxu0 0.0
  %1711 = vmatpush1.msra.mxu0 0.0
  %1712 = vmatprep.subr.mxu0 0.0
  %1713 = vmatpush1.msra.mxu0 0.0
  %1714 = vmatprep.subr.mxu0 0.0
  %1715 = vmatpush1.msra.mxu0 0.0
  %1716 = vmatprep.subr.mxu0 0.0
  %1717 = vmatpush1.msra.mxu0 0.0
  %1718 = vmatprep.subr.mxu0 0.0
  %1719 = vmatpush1.msra.mxu0 0.0
  %1720 = vmatprep.subr.mxu0 0.0
  %1721 = vmatpush1.msra.mxu0 0.0
  %1722 = vmatprep.subr.mxu0 0.0
  %1723 = vmatpush1.msra.mxu0 0.0
  %1724 = vmatprep.mubr.f32.mxu0 0.0
  %1725 = vmatmul.mubr.f32.gmra.mrb[0].mxu0 %v1652
  %v1726 = vpop.f32.mrb[0].mxu0
  %v1727 = vadd.f32 0.0, %v1726
  %v1728 = vpop.f32.mrb[0].mxu0
  %1729 = vmatprep.mubr.f32.mxu0 0.0
  %1730 = vmatmul.mubr.f32.gmra.mrb[0].mxu0 %v1655
  %v1731 = vpop.f32.mrb[0].mxu0
  %v1732 = vadd.f32 0.0, %v1731
  %v1733 = vpop.f32.mrb[0].mxu0
  %1734 = vmatprep.mubr.f32.mxu0 0.0
  %1735 = vmatmul.mubr.f32.gmra.mrb[0].mxu0 %v1658
  %v1736 = vpop.f32.mrb[0].mxu0
  %v1737 = vadd.f32 0.0, %v1736
  %v1738 = vpop.f32.mrb[0].mxu0
  %1739 = vdwg.mxu0
  %v1740 = vadd.f32 %v1644, %v1727
  %v1741 = vadd.f32 %v1645, %v1732
  %v1742 = vadd.f32 %v1646, %v1737
  %v1743 = vld [vmem:[%s3 + $0x180] sm:$0xff]
  %v1744 = vld [vmem:[%s3 + $0x188] sm:$0xff]
  %v1745 = vld [vmem:[%s3 + $0x190] sm:$0xff]
  %v1746 = vld [vmem:[%s3 + $0x198] sm:$0xff]
  %v1748 = vsel %vm254, %v1542, 0
  %v1751 = vsel %vm254, %v1543, 0
  %v1754 = vsel %vm254, %v1544, 0
  %1756 = vmatprep.subr.mxu0 0.0
  %1757 = vmatpush1.msra.mxu0 %v1743
  %1758 = vmatprep.subr.mxu0 0.0
  %1759 = vmatpush1.msra.mxu0 %v1744
  %1760 = vmatprep.subr.mxu0 0.0
  %1761 = vmatpush1.msra.mxu0 %v1745
  %1762 = vmatprep.subr.mxu0 0.0
  %1763 = vmatpush1.msra.mxu0 %v1746
  %1764 = vmatprep.subr.mxu0 0.0
  %1765 = vmatpush1.msra.mxu0 0.0
  %1766 = vmatprep.subr.mxu0 0.0
  %1767 = vmatpush1.msra.mxu0 0.0
  %1768 = vmatprep.subr.mxu0 0.0
  %1769 = vmatpush1.msra.mxu0 0.0
  %1770 = vmatprep.subr.mxu0 0.0
  %1771 = vmatpush1.msra.mxu0 0.0
  %1772 = vmatprep.subr.mxu0 0.0
  %1773 = vmatpush1.msra.mxu0 0.0
  %1774 = vmatprep.subr.mxu0 0.0
  %1775 = vmatpush1.msra.mxu0 0.0
  %1776 = vmatprep.subr.mxu0 0.0
  %1777 = vmatpush1.msra.mxu0 0.0
  %1778 = vmatprep.subr.mxu0 0.0
  %1779 = vmatpush1.msra.mxu0 0.0
  %1780 = vmatprep.subr.mxu0 0.0
  %1781 = vmatpush1.msra.mxu0 0.0
  %1782 = vmatprep.subr.mxu0 0.0
  %1783 = vmatpush1.msra.mxu0 0.0
  %1784 = vmatprep.subr.mxu0 0.0
  %1785 = vmatpush1.msra.mxu0 0.0
  %1786 = vmatprep.subr.mxu0 0.0
  %1787 = vmatpush1.msra.mxu0 0.0
  %1788 = vmatprep.subr.mxu0 0.0
  %1789 = vmatpush1.msra.mxu0 0.0
  %1790 = vmatprep.subr.mxu0 0.0
  %1791 = vmatpush1.msra.mxu0 0.0
  %1792 = vmatprep.subr.mxu0 0.0
  %1793 = vmatpush1.msra.mxu0 0.0
  %1794 = vmatprep.subr.mxu0 0.0
  %1795 = vmatpush1.msra.mxu0 0.0
  %1796 = vmatprep.subr.mxu0 0.0
  %1797 = vmatpush1.msra.mxu0 0.0
  %1798 = vmatprep.subr.mxu0 0.0
  %1799 = vmatpush1.msra.mxu0 0.0
  %1800 = vmatprep.subr.mxu0 0.0
  %1801 = vmatpush1.msra.mxu0 0.0
  %1802 = vmatprep.subr.mxu0 0.0
  %1803 = vmatpush1.msra.mxu0 0.0
  %1804 = vmatprep.subr.mxu0 0.0
  %1805 = vmatpush1.msra.mxu0 0.0
  %1806 = vmatprep.subr.mxu0 0.0
  %1807 = vmatpush1.msra.mxu0 0.0
  %1808 = vmatprep.subr.mxu0 0.0
  %1809 = vmatpush1.msra.mxu0 0.0
  %1810 = vmatprep.subr.mxu0 0.0
  %1811 = vmatpush1.msra.mxu0 0.0
  %1812 = vmatprep.subr.mxu0 0.0
  %1813 = vmatpush1.msra.mxu0 0.0
  %1814 = vmatprep.subr.mxu0 0.0
  %1815 = vmatpush1.msra.mxu0 0.0
  %1816 = vmatprep.subr.mxu0 0.0
  %1817 = vmatpush1.msra.mxu0 0.0
  %1818 = vmatprep.subr.mxu0 0.0
  %1819 = vmatpush1.msra.mxu0 0.0
  %1820 = vmatprep.mubr.f32.mxu0 0.0
  %1821 = vmatmul.mubr.f32.gmra.mrb[0].mxu0 %v1748
  %v1822 = vpop.f32.mrb[0].mxu0
  %v1823 = vadd.f32 0.0, %v1822
  %v1824 = vpop.f32.mrb[0].mxu0
  %1825 = vmatprep.mubr.f32.mxu0 0.0
  %1826 = vmatmul.mubr.f32.gmra.mrb[0].mxu0 %v1751
  %v1827 = vpop.f32.mrb[0].mxu0
  %v1828 = vadd.f32 0.0, %v1827
  %v1829 = vpop.f32.mrb[0].mxu0
  %1830 = vmatprep.mubr.f32.mxu0 0.0
  %1831 = vmatmul.mubr.f32.gmra.mrb[0].mxu0 %v1754
  %v1832 = vpop.f32.mrb[0].mxu0
  %v1833 = vadd.f32 0.0, %v1832
  %v1834 = vpop.f32.mrb[0].mxu0
  %1835 = vdwg.mxu0
  %v1836 = vadd.f32 %v1740, %v1823
  %v1837 = vadd.f32 %v1741, %v1828
  %v1838 = vadd.f32 %v1742, %v1833
  %v1839 = vld [vmem:[%s3 + $0x1a0] sm:$0xff]
  %v1840 = vld [vmem:[%s3 + $0x1a8] sm:$0xff]
  %v1841 = vld [vmem:[%s3 + $0x1b0] sm:$0xff]
  %v1842 = vld [vmem:[%s3 + $0x1b8] sm:$0xff]
  %v1844 = vsel %vm254, %v1545, 0
  %v1847 = vsel %vm254, %v1546, 0
  %v1850 = vsel %vm254, %v1547, 0
  %1852 = vmatprep.subr.mxu0 0.0
  %1853 = vmatpush1.msra.mxu0 %v1839
  %1854 = vmatprep.subr.mxu0 0.0
  %1855 = vmatpush1.msra.mxu0 %v1840
  %1856 = vmatprep.subr.mxu0 0.0
  %1857 = vmatpush1.msra.mxu0 %v1841
  %1858 = vmatprep.subr.mxu0 0.0
  %1859 = vmatpush1.msra.mxu0 %v1842
  %1860 = vmatprep.subr.mxu0 0.0
  %1861 = vmatpush1.msra.mxu0 0.0
  %1862 = vmatprep.subr.mxu0 0.0
  %1863 = vmatpush1.msra.mxu0 0.0
  %1864 = vmatprep.subr.mxu0 0.0
  %1865 = vmatpush1.msra.mxu0 0.0
  %1866 = vmatprep.subr.mxu0 0.0
  %1867 = vmatpush1.msra.mxu0 0.0
  %1868 = vmatprep.subr.mxu0 0.0
  %1869 = vmatpush1.msra.mxu0 0.0
  %1870 = vmatprep.subr.mxu0 0.0
  %1871 = vmatpush1.msra.mxu0 0.0
  %1872 = vmatprep.subr.mxu0 0.0
  %1873 = vmatpush1.msra.mxu0 0.0
  %1874 = vmatprep.subr.mxu0 0.0
  %1875 = vmatpush1.msra.mxu0 0.0
  %1876 = vmatprep.subr.mxu0 0.0
  %1877 = vmatpush1.msra.mxu0 0.0
  %1878 = vmatprep.subr.mxu0 0.0
  %1879 = vmatpush1.msra.mxu0 0.0
  %1880 = vmatprep.subr.mxu0 0.0
  %1881 = vmatpush1.msra.mxu0 0.0
  %1882 = vmatprep.subr.mxu0 0.0
  %1883 = vmatpush1.msra.mxu0 0.0
  %1884 = vmatprep.subr.mxu0 0.0
  %1885 = vmatpush1.msra.mxu0 0.0
  %1886 = vmatprep.subr.mxu0 0.0
  %1887 = vmatpush1.msra.mxu0 0.0
  %1888 = vmatprep.subr.mxu0 0.0
  %1889 = vmatpush1.msra.mxu0 0.0
  %1890 = vmatprep.subr.mxu0 0.0
  %1891 = vmatpush1.msra.mxu0 0.0
  %1892 = vmatprep.subr.mxu0 0.0
  %1893 = vmatpush1.msra.mxu0 0.0
  %1894 = vmatprep.subr.mxu0 0.0
  %1895 = vmatpush1.msra.mxu0 0.0
  %1896 = vmatprep.subr.mxu0 0.0
  %1897 = vmatpush1.msra.mxu0 0.0
  %1898 = vmatprep.subr.mxu0 0.0
  %1899 = vmatpush1.msra.mxu0 0.0
  %1900 = vmatprep.subr.mxu0 0.0
  %1901 = vmatpush1.msra.mxu0 0.0
  %1902 = vmatprep.subr.mxu0 0.0
  %1903 = vmatpush1.msra.mxu0 0.0
  %1904 = vmatprep.subr.mxu0 0.0
  %1905 = vmatpush1.msra.mxu0 0.0
  %1906 = vmatprep.subr.mxu0 0.0
  %1907 = vmatpush1.msra.mxu0 0.0
  %1908 = vmatprep.subr.mxu0 0.0
  %1909 = vmatpush1.msra.mxu0 0.0
  %1910 = vmatprep.subr.mxu0 0.0
  %1911 = vmatpush1.msra.mxu0 0.0
  %1912 = vmatprep.subr.mxu0 0.0
  %1913 = vmatpush1.msra.mxu0 0.0
  %1914 = vmatprep.subr.mxu0 0.0
  %1915 = vmatpush1.msra.mxu0 0.0
  %1916 = vmatprep.mubr.f32.mxu0 0.0
  %1917 = vmatmul.mubr.f32.gmra.mrb[0].mxu0 %v1844
  %v1918 = vpop.f32.mrb[0].mxu0
  %v1919 = vadd.f32 0.0, %v1918
  %v1920 = vpop.f32.mrb[0].mxu0
  %1921 = vmatprep.mubr.f32.mxu0 0.0
  %1922 = vmatmul.mubr.f32.gmra.mrb[0].mxu0 %v1847
  %v1923 = vpop.f32.mrb[0].mxu0
  %v1924 = vadd.f32 0.0, %v1923
  %v1925 = vpop.f32.mrb[0].mxu0
  %1926 = vmatprep.mubr.f32.mxu0 0.0
  %1927 = vmatmul.mubr.f32.gmra.mrb[0].mxu0 %v1850
  %v1928 = vpop.f32.mrb[0].mxu0
  %v1929 = vadd.f32 0.0, %v1928
  %v1930 = vpop.f32.mrb[0].mxu0
  %1931 = vdwg.mxu0
  %v1932 = vadd.f32 %v1836, %v1919
  %v1933 = vadd.f32 %v1837, %v1924
  %v1934 = vadd.f32 %v1838, %v1929
  %v1935 = vld [vmem:[%s3 + $0x1c0] sm:$0xff]
  %v1936 = vld [vmem:[%s3 + $0x1c8] sm:$0xff]
  %v1937 = vld [vmem:[%s3 + $0x1d0] sm:$0xff]
  %v1938 = vld [vmem:[%s3 + $0x1d8] sm:$0xff]
  %v1940 = vsel %vm254, %v1548, 0
  %v1943 = vsel %vm254, %v1549, 0
  %v1946 = vsel %vm254, %v1550, 0
  %1948 = vmatprep.subr.mxu0 0.0
  %1949 = vmatpush1.msra.mxu0 %v1935
  %1950 = vmatprep.subr.mxu0 0.0
  %1951 = vmatpush1.msra.mxu0 %v1936
  %1952 = vmatprep.subr.mxu0 0.0
  %1953 = vmatpush1.msra.mxu0 %v1937
  %1954 = vmatprep.subr.mxu0 0.0
  %1955 = vmatpush1.msra.mxu0 %v1938
  %1956 = vmatprep.subr.mxu0 0.0
  %1957 = vmatpush1.msra.mxu0 0.0
  %1958 = vmatprep.subr.mxu0 0.0
  %1959 = vmatpush1.msra.mxu0 0.0
  %1960 = vmatprep.subr.mxu0 0.0
  %1961 = vmatpush1.msra.mxu0 0.0
  %1962 = vmatprep.subr.mxu0 0.0
  %1963 = vmatpush1.msra.mxu0 0.0
  %1964 = vmatprep.subr.mxu0 0.0
  %1965 = vmatpush1.msra.mxu0 0.0
  %1966 = vmatprep.subr.mxu0 0.0
  %1967 = vmatpush1.msra.mxu0 0.0
  %1968 = vmatprep.subr.mxu0 0.0
  %1969 = vmatpush1.msra.mxu0 0.0
  %1970 = vmatprep.subr.mxu0 0.0
  %1971 = vmatpush1.msra.mxu0 0.0
  %1972 = vmatprep.subr.mxu0 0.0
  %1973 = vmatpush1.msra.mxu0 0.0
  %1974 = vmatprep.subr.mxu0 0.0
  %1975 = vmatpush1.msra.mxu0 0.0
  %1976 = vmatprep.subr.mxu0 0.0
  %1977 = vmatpush1.msra.mxu0 0.0
  %1978 = vmatprep.subr.mxu0 0.0
  %1979 = vmatpush1.msra.mxu0 0.0
  %1980 = vmatprep.subr.mxu0 0.0
  %1981 = vmatpush1.msra.mxu0 0.0
  %1982 = vmatprep.subr.mxu0 0.0
  %1983 = vmatpush1.msra.mxu0 0.0
  %1984 = vmatprep.subr.mxu0 0.0
  %1985 = vmatpush1.msra.mxu0 0.0
  %1986 = vmatprep.subr.mxu0 0.0
  %1987 = vmatpush1.msra.mxu0 0.0
  %1988 = vmatprep.subr.mxu0 0.0
  %1989 = vmatpush1.msra.mxu0 0.0
  %1990 = vmatprep.subr.mxu0 0.0
  %1991 = vmatpush1.msra.mxu0 0.0
  %1992 = vmatprep.subr.mxu0 0.0
  %1993 = vmatpush1.msra.mxu0 0.0
  %1994 = vmatprep.subr.mxu0 0.0
  %1995 = vmatpush1.msra.mxu0 0.0
  %1996 = vmatprep.subr.mxu0 0.0
  %1997 = vmatpush1.msra.mxu0 0.0
  %1998 = vmatprep.subr.mxu0 0.0
  %1999 = vmatpush1.msra.mxu0 0.0
  %2000 = vmatprep.subr.mxu0 0.0
  %2001 = vmatpush1.msra.mxu0 0.0
  %2002 = vmatprep.subr.mxu0 0.0
  %2003 = vmatpush1.msra.mxu0 0.0
  %2004 = vmatprep.subr.mxu0 0.0
  %2005 = vmatpush1.msra.mxu0 0.0
  %2006 = vmatprep.subr.mxu0 0.0
  %2007 = vmatpush1.msra.mxu0 0.0
  %2008 = vmatprep.subr.mxu0 0.0
  %2009 = vmatpush1.msra.mxu0 0.0
  %2010 = vmatprep.subr.mxu0 0.0
  %2011 = vmatpush1.msra.mxu0 0.0
  %2012 = vmatprep.mubr.f32.mxu0 0.0
  %2013 = vmatmul.mubr.f32.gmra.mrb[0].mxu0 %v1940
  %v2014 = vpop.f32.mrb[0].mxu0
  %v2015 = vadd.f32 0.0, %v2014
  %v2016 = vpop.f32.mrb[0].mxu0
  %2017 = vmatprep.mubr.f32.mxu0 0.0
  %2018 = vmatmul.mubr.f32.gmra.mrb[0].mxu0 %v1943
  %v2019 = vpop.f32.mrb[0].mxu0
  %v2020 = vadd.f32 0.0, %v2019
  %v2021 = vpop.f32.mrb[0].mxu0
  %2022 = vmatprep.mubr.f32.mxu0 0.0
  %2023 = vmatmul.mubr.f32.gmra.mrb[0].mxu0 %v1946
  %v2024 = vpop.f32.mrb[0].mxu0
  %v2025 = vadd.f32 0.0, %v2024
  %v2026 = vpop.f32.mrb[0].mxu0
  %2027 = vdwg.mxu0
  %v2028 = vadd.f32 %v1932, %v2015
  %v2029 = vadd.f32 %v1933, %v2020
  %v2030 = vadd.f32 %v1934, %v2025
  %v2031 = vld [vmem:[%s0 + $0x168] sm:$0xff]
  %v2032 = vld [vmem:[%s0 + $0x170] sm:$0xff]
  %v2033 = vld [vmem:[%s0 + $0x178] sm:$0xff]
  %v2034 = vld [vmem:[%s0 + $0x180] sm:$0xff]
  %v2035 = vld [vmem:[%s0 + $0x188] sm:$0xff]
  %v2036 = vld [vmem:[%s0 + $0x190] sm:$0xff]
  %v2037 = vld [vmem:[%s0 + $0x198] sm:$0xff]
  %v2038 = vld [vmem:[%s0 + $0x1a0] sm:$0xff]
  %v2039 = vld [vmem:[%s0 + $0x1a8] sm:$0xff]
  %v2040 = vld [vmem:[%s0 + $0x1b0] sm:$0xff]
  %v2041 = vld [vmem:[%s0 + $0x1b8] sm:$0xff]
  %v2042 = vld [vmem:[%s0 + $0x1c0] sm:$0xff]
  %v2043 = vld [vmem:[%s0 + $0x1c8] sm:$0xff]
  %v2044 = vld [vmem:[%s0 + $0x1d0] sm:$0xff]
  %v2045 = vld [vmem:[%s0 + $0x1d8] sm:$0xff]
  %2046 = vmatprep.subr.mxu0 0.0
  %2047 = vmatpush1.msra.mxu0 %v50
  %2048 = vmatprep.subr.mxu0 0.0
  %2049 = vmatpush1.msra.mxu0 %v51
  %2050 = vmatprep.subr.mxu0 0.0
  %2051 = vmatpush1.msra.mxu0 %v52
  %2052 = vmatprep.subr.mxu0 0.0
  %2053 = vmatpush1.msra.mxu0 %v53
  %2054 = vmatprep.subr.mxu0 0.0
  %2055 = vmatpush1.msra.mxu0 %v54
  %2056 = vmatprep.subr.mxu0 0.0
  %2057 = vmatpush1.msra.mxu0 %v55
  %2058 = vmatprep.subr.mxu0 0.0
  %2059 = vmatpush1.msra.mxu0 %v56
  %2060 = vmatprep.subr.mxu0 0.0
  %2061 = vmatpush1.msra.mxu0 %v57
  %2062 = vmatprep.subr.mxu0 0.0
  %2063 = vmatpush1.msra.mxu0 %v58
  %2064 = vmatprep.subr.mxu0 0.0
  %2065 = vmatpush1.msra.mxu0 %v59
  %2066 = vmatprep.subr.mxu0 0.0
  %2067 = vmatpush1.msra.mxu0 %v60
  %2068 = vmatprep.subr.mxu0 0.0
  %2069 = vmatpush1.msra.mxu0 %v61
  %2070 = vmatprep.subr.mxu0 0.0
  %2071 = vmatpush1.msra.mxu0 %v62
  %2072 = vmatprep.subr.mxu0 0.0
  %2073 = vmatpush1.msra.mxu0 %v63
  %2074 = vmatprep.subr.mxu0 0.0
  %2075 = vmatpush1.msra.mxu0 %v64
  %2076 = vmatprep.subr.mxu0 0.0
  %2077 = vmatpush1.msra.mxu0 %v65
  %2078 = vmatprep.subr.mxu0 0.0
  %2079 = vmatpush1.msra.mxu0 0.0
  %2080 = vmatprep.subr.mxu0 0.0
  %2081 = vmatpush1.msra.mxu0 0.0
  %2082 = vmatprep.subr.mxu0 0.0
  %2083 = vmatpush1.msra.mxu0 0.0
  %2084 = vmatprep.subr.mxu0 0.0
  %2085 = vmatpush1.msra.mxu0 0.0
  %2086 = vmatprep.subr.mxu0 0.0
  %2087 = vmatpush1.msra.mxu0 0.0
  %2088 = vmatprep.subr.mxu0 0.0
  %2089 = vmatpush1.msra.mxu0 0.0
  %2090 = vmatprep.subr.mxu0 0.0
  %2091 = vmatpush1.msra.mxu0 0.0
  %2092 = vmatprep.subr.mxu0 0.0
  %2093 = vmatpush1.msra.mxu0 0.0
  %2094 = vmatprep.subr.mxu0 0.0
  %2095 = vmatpush1.msra.mxu0 0.0
  %2096 = vmatprep.subr.mxu0 0.0
  %2097 = vmatpush1.msra.mxu0 0.0
  %2098 = vmatprep.subr.mxu0 0.0
  %2099 = vmatpush1.msra.mxu0 0.0
  %2100 = vmatprep.subr.mxu0 0.0
  %2101 = vmatpush1.msra.mxu0 0.0
  %2102 = vmatprep.subr.mxu0 0.0
  %2103 = vmatpush1.msra.mxu0 0.0
  %2104 = vmatprep.subr.mxu0 0.0
  %2105 = vmatpush1.msra.mxu0 0.0
  %2106 = vmatprep.subr.mxu0 0.0
  %2107 = vmatpush1.msra.mxu0 0.0
  %2108 = vmatprep.subr.mxu0 0.0
  %2109 = vmatpush1.msra.mxu0 0.0
  %2110 = vmatprep.mubr.f32.mxu0 0.0
  %2111 = vmatmul.mubr.f32.gmra.mrb[0].mxu0 %v2031
  %v2112 = vpop.f32.mrb[0].mxu0
  %v2113 = vadd.f32 %v71, %v2112
  %v2114 = vpop.f32.mrb[0].mxu0
  %2115 = vmatprep.mubr.f32.mxu0 0.0
  %2116 = vmatmul.mubr.f32.gmra.mrb[0].mxu0 %v2032
  %v2117 = vpop.f32.mrb[0].mxu0
  %v2118 = vadd.f32 %v71, %v2117
  %v2119 = vpop.f32.mrb[0].mxu0
  %2120 = vmatprep.mubr.f32.mxu0 0.0
  %2121 = vmatmul.mubr.f32.gmra.mrb[0].mxu0 %v2033
  %v2122 = vpop.f32.mrb[0].mxu0
  %v2123 = vadd.f32 %v71, %v2122
  %v2124 = vpop.f32.mrb[0].mxu0
  %2125 = vmatprep.mubr.f32.mxu0 0.0
  %2126 = vmatmul.mubr.f32.gmra.mrb[0].mxu0 %v2034
  %v2127 = vpop.f32.mrb[0].mxu0
  %v2128 = vadd.f32 %v71, %v2127
  %v2129 = vpop.f32.mrb[0].mxu0
  %2130 = vmatprep.mubr.f32.mxu0 0.0
  %2131 = vmatmul.mubr.f32.gmra.mrb[0].mxu0 %v2035
  %v2132 = vpop.f32.mrb[0].mxu0
  %v2133 = vadd.f32 %v71, %v2132
  %v2134 = vpop.f32.mrb[0].mxu0
  %2135 = vmatprep.mubr.f32.mxu0 0.0
  %2136 = vmatmul.mubr.f32.gmra.mrb[0].mxu0 %v2036
  %v2137 = vpop.f32.mrb[0].mxu0
  %v2138 = vadd.f32 %v71, %v2137
  %v2139 = vpop.f32.mrb[0].mxu0
  %2140 = vmatprep.mubr.f32.mxu0 0.0
  %2141 = vmatmul.mubr.f32.gmra.mrb[0].mxu0 %v2037
  %v2142 = vpop.f32.mrb[0].mxu0
  %v2143 = vadd.f32 %v71, %v2142
  %v2144 = vpop.f32.mrb[0].mxu0
  %2145 = vmatprep.mubr.f32.mxu0 0.0
  %2146 = vmatmul.mubr.f32.gmra.mrb[0].mxu0 %v2038
  %v2147 = vpop.f32.mrb[0].mxu0
  %v2148 = vadd.f32 %v71, %v2147
  %v2149 = vpop.f32.mrb[0].mxu0
  %2150 = vmatprep.mubr.f32.mxu0 0.0
  %2151 = vmatmul.mubr.f32.gmra.mrb[0].mxu0 %v2039
  %v2152 = vpop.f32.mrb[0].mxu0
  %v2153 = vadd.f32 %v71, %v2152
  %v2154 = vpop.f32.mrb[0].mxu0
  %2155 = vmatprep.mubr.f32.mxu0 0.0
  %2156 = vmatmul.mubr.f32.gmra.mrb[0].mxu0 %v2040
  %v2157 = vpop.f32.mrb[0].mxu0
  %v2158 = vadd.f32 %v71, %v2157
  %v2159 = vpop.f32.mrb[0].mxu0
  %2160 = vmatprep.mubr.f32.mxu0 0.0
  %2161 = vmatmul.mubr.f32.gmra.mrb[0].mxu0 %v2041
  %v2162 = vpop.f32.mrb[0].mxu0
  %v2163 = vadd.f32 %v71, %v2162
  %v2164 = vpop.f32.mrb[0].mxu0
  %2165 = vmatprep.mubr.f32.mxu0 0.0
  %2166 = vmatmul.mubr.f32.gmra.mrb[0].mxu0 %v2042
  %v2167 = vpop.f32.mrb[0].mxu0
  %v2168 = vadd.f32 %v71, %v2167
  %v2169 = vpop.f32.mrb[0].mxu0
  %2170 = vmatprep.mubr.f32.mxu0 0.0
  %2171 = vmatmul.mubr.f32.gmra.mrb[0].mxu0 %v2043
  %v2172 = vpop.f32.mrb[0].mxu0
  %v2173 = vadd.f32 %v71, %v2172
  %v2174 = vpop.f32.mrb[0].mxu0
  %2175 = vmatprep.mubr.f32.mxu0 0.0
  %2176 = vmatmul.mubr.f32.gmra.mrb[0].mxu0 %v2044
  %v2177 = vpop.f32.mrb[0].mxu0
  %v2178 = vadd.f32 %v71, %v2177
  %v2179 = vpop.f32.mrb[0].mxu0
  %2180 = vmatprep.mubr.f32.mxu0 0.0
  %2181 = vmatmul.mubr.f32.gmra.mrb[0].mxu0 %v2045
  %v2182 = vpop.f32.mrb[0].mxu0
  %v2183 = vadd.f32 %v71, %v2182
  %v2184 = vpop.f32.mrb[0].mxu0
  %2185 = vdwg.mxu0
  %v2186 = vmax.f32 %v2113, 0.0
  %v2187 = vmax.f32 %v2118, 0.0
  %v2188 = vmax.f32 %v2123, 0.0
  %v2189 = vmax.f32 %v2128, 0.0
  %v2190 = vmax.f32 %v2133, 0.0
  %v2191 = vmax.f32 %v2138, 0.0
  %v2192 = vmax.f32 %v2143, 0.0
  %v2193 = vmax.f32 %v2148, 0.0
  %v2194 = vmax.f32 %v2153, 0.0
  %v2195 = vmax.f32 %v2158, 0.0
  %v2196 = vmax.f32 %v2163, 0.0
  %v2197 = vmax.f32 %v2168, 0.0
  %v2198 = vmax.f32 %v2173, 0.0
  %v2199 = vmax.f32 %v2178, 0.0
  %v2200 = vmax.f32 %v2183, 0.0
  %v2201 = vld [vmem:[%s3 + $0x1e0] sm:$0xff]
  %v2202 = vld [vmem:[%s3 + $0x1e8] sm:$0xff]
  %v2203 = vld [vmem:[%s3 + $0x1f0] sm:$0xff]
  %v2204 = vld [vmem:[%s3 + $0x1f8] sm:$0xff]
  %v2206 = vsel %vm254, %v2186, 0
  %v2209 = vsel %vm254, %v2187, 0
  %v2212 = vsel %vm254, %v2188, 0
  %2214 = vmatprep.subr.mxu0 0.0
  %2215 = vmatpush1.msra.mxu0 %v2201
  %2216 = vmatprep.subr.mxu0 0.0
  %2217 = vmatpush1.msra.mxu0 %v2202
  %2218 = vmatprep.subr.mxu0 0.0
  %2219 = vmatpush1.msra.mxu0 %v2203
  %2220 = vmatprep.subr.mxu0 0.0
  %2221 = vmatpush1.msra.mxu0 %v2204
  %2222 = vmatprep.subr.mxu0 0.0
  %2223 = vmatpush1.msra.mxu0 0.0
  %2224 = vmatprep.subr.mxu0 0.0
  %2225 = vmatpush1.msra.mxu0 0.0
  %2226 = vmatprep.subr.mxu0 0.0
  %2227 = vmatpush1.msra.mxu0 0.0
  %2228 = vmatprep.subr.mxu0 0.0
  %2229 = vmatpush1.msra.mxu0 0.0
  %2230 = vmatprep.subr.mxu0 0.0
  %2231 = vmatpush1.msra.mxu0 0.0
  %2232 = vmatprep.subr.mxu0 0.0
  %2233 = vmatpush1.msra.mxu0 0.0
  %2234 = vmatprep.subr.mxu0 0.0
  %2235 = vmatpush1.msra.mxu0 0.0
  %2236 = vmatprep.subr.mxu0 0.0
  %2237 = vmatpush1.msra.mxu0 0.0
  %2238 = vmatprep.subr.mxu0 0.0
  %2239 = vmatpush1.msra.mxu0 0.0
  %2240 = vmatprep.subr.mxu0 0.0
  %2241 = vmatpush1.msra.mxu0 0.0
  %2242 = vmatprep.subr.mxu0 0.0
  %2243 = vmatpush1.msra.mxu0 0.0
  %2244 = vmatprep.subr.mxu0 0.0
  %2245 = vmatpush1.msra.mxu0 0.0
  %2246 = vmatprep.subr.mxu0 0.0
  %2247 = vmatpush1.msra.mxu0 0.0
  %2248 = vmatprep.subr.mxu0 0.0
  %2249 = vmatpush1.msra.mxu0 0.0
  %2250 = vmatprep.subr.mxu0 0.0
  %2251 = vmatpush1.msra.mxu0 0.0
  %2252 = vmatprep.subr.mxu0 0.0
  %2253 = vmatpush1.msra.mxu0 0.0
  %2254 = vmatprep.subr.mxu0 0.0
  %2255 = vmatpush1.msra.mxu0 0.0
  %2256 = vmatprep.subr.mxu0 0.0
  %2257 = vmatpush1.msra.mxu0 0.0
  %2258 = vmatprep.subr.mxu0 0.0
  %2259 = vmatpush1.msra.mxu0 0.0
  %2260 = vmatprep.subr.mxu0 0.0
  %2261 = vmatpush1.msra.mxu0 0.0
  %2262 = vmatprep.subr.mxu0 0.0
  %2263 = vmatpush1.msra.mxu0 0.0
  %2264 = vmatprep.subr.mxu0 0.0
  %2265 = vmatpush1.msra.mxu0 0.0
  %2266 = vmatprep.subr.mxu0 0.0
  %2267 = vmatpush1.msra.mxu0 0.0
  %2268 = vmatprep.subr.mxu0 0.0
  %2269 = vmatpush1.msra.mxu0 0.0
  %2270 = vmatprep.subr.mxu0 0.0
  %2271 = vmatpush1.msra.mxu0 0.0
  %2272 = vmatprep.subr.mxu0 0.0
  %2273 = vmatpush1.msra.mxu0 0.0
  %2274 = vmatprep.subr.mxu0 0.0
  %2275 = vmatpush1.msra.mxu0 0.0
  %2276 = vmatprep.subr.mxu0 0.0
  %2277 = vmatpush1.msra.mxu0 0.0
  %2278 = vmatprep.mubr.f32.mxu0 0.0
  %2279 = vmatmul.mubr.f32.gmra.mrb[0].mxu0 %v2206
  %v2280 = vpop.f32.mrb[0].mxu0
  %v2281 = vadd.f32 0.0, %v2280
  %v2282 = vpop.f32.mrb[0].mxu0
  %2283 = vmatprep.mubr.f32.mxu0 0.0
  %2284 = vmatmul.mubr.f32.gmra.mrb[0].mxu0 %v2209
  %v2285 = vpop.f32.mrb[0].mxu0
  %v2286 = vadd.f32 0.0, %v2285
  %v2287 = vpop.f32.mrb[0].mxu0
  %2288 = vmatprep.mubr.f32.mxu0 0.0
  %2289 = vmatmul.mubr.f32.gmra.mrb[0].mxu0 %v2212
  %v2290 = vpop.f32.mrb[0].mxu0
  %v2291 = vadd.f32 0.0, %v2290
  %v2292 = vpop.f32.mrb[0].mxu0
  %2293 = vdwg.mxu0
  %v2294 = vadd.f32 %v2028, %v2281
  %v2295 = vadd.f32 %v2029, %v2286
  %v2296 = vadd.f32 %v2030, %v2291
  %v2297 = vld [vmem:[%s3 + $0x200] sm:$0xff]
  %v2298 = vld [vmem:[%s3 + $0x208] sm:$0xff]
  %v2299 = vld [vmem:[%s3 + $0x210] sm:$0xff]
  %v2300 = vld [vmem:[%s3 + $0x218] sm:$0xff]
  %v2302 = vsel %vm254, %v2189, 0
  %v2305 = vsel %vm254, %v2190, 0
  %v2308 = vsel %vm254, %v2191, 0
  %2310 = vmatprep.subr.mxu0 0.0
  %2311 = vmatpush1.msra.mxu0 %v2297
  %2312 = vmatprep.subr.mxu0 0.0
  %2313 = vmatpush1.msra.mxu0 %v2298
  %2314 = vmatprep.subr.mxu0 0.0
  %2315 = vmatpush1.msra.mxu0 %v2299
  %2316 = vmatprep.subr.mxu0 0.0
  %2317 = vmatpush1.msra.mxu0 %v2300
  %2318 = vmatprep.subr.mxu0 0.0
  %2319 = vmatpush1.msra.mxu0 0.0
  %2320 = vmatprep.subr.mxu0 0.0
  %2321 = vmatpush1.msra.mxu0 0.0
  %2322 = vmatprep.subr.mxu0 0.0
  %2323 = vmatpush1.msra.mxu0 0.0
  %2324 = vmatprep.subr.mxu0 0.0
  %2325 = vmatpush1.msra.mxu0 0.0
  %2326 = vmatprep.subr.mxu0 0.0
  %2327 = vmatpush1.msra.mxu0 0.0
  %2328 = vmatprep.subr.mxu0 0.0
  %2329 = vmatpush1.msra.mxu0 0.0
  %2330 = vmatprep.subr.mxu0 0.0
  %2331 = vmatpush1.msra.mxu0 0.0
  %2332 = vmatprep.subr.mxu0 0.0
  %2333 = vmatpush1.msra.mxu0 0.0
  %2334 = vmatprep.subr.mxu0 0.0
  %2335 = vmatpush1.msra.mxu0 0.0
  %2336 = vmatprep.subr.mxu0 0.0
  %2337 = vmatpush1.msra.mxu0 0.0
  %2338 = vmatprep.subr.mxu0 0.0
  %2339 = vmatpush1.msra.mxu0 0.0
  %2340 = vmatprep.subr.mxu0 0.0
  %2341 = vmatpush1.msra.mxu0 0.0
  %2342 = vmatprep.subr.mxu0 0.0
  %2343 = vmatpush1.msra.mxu0 0.0
  %2344 = vmatprep.subr.mxu0 0.0
  %2345 = vmatpush1.msra.mxu0 0.0
  %2346 = vmatprep.subr.mxu0 0.0
  %2347 = vmatpush1.msra.mxu0 0.0
  %2348 = vmatprep.subr.mxu0 0.0
  %2349 = vmatpush1.msra.mxu0 0.0
  %2350 = vmatprep.subr.mxu0 0.0
  %2351 = vmatpush1.msra.mxu0 0.0
  %2352 = vmatprep.subr.mxu0 0.0
  %2353 = vmatpush1.msra.mxu0 0.0
  %2354 = vmatprep.subr.mxu0 0.0
  %2355 = vmatpush1.msra.mxu0 0.0
  %2356 = vmatprep.subr.mxu0 0.0
  %2357 = vmatpush1.msra.mxu0 0.0
  %2358 = vmatprep.subr.mxu0 0.0
  %2359 = vmatpush1.msra.mxu0 0.0
  %2360 = vmatprep.subr.mxu0 0.0
  %2361 = vmatpush1.msra.mxu0 0.0
  %2362 = vmatprep.subr.mxu0 0.0
  %2363 = vmatpush1.msra.mxu0 0.0
  %2364 = vmatprep.subr.mxu0 0.0
  %2365 = vmatpush1.msra.mxu0 0.0
  %2366 = vmatprep.subr.mxu0 0.0
  %2367 = vmatpush1.msra.mxu0 0.0
  %2368 = vmatprep.subr.mxu0 0.0
  %2369 = vmatpush1.msra.mxu0 0.0
  %2370 = vmatprep.subr.mxu0 0.0
  %2371 = vmatpush1.msra.mxu0 0.0
  %2372 = vmatprep.subr.mxu0 0.0
  %2373 = vmatpush1.msra.mxu0 0.0
  %2374 = vmatprep.mubr.f32.mxu0 0.0
  %2375 = vmatmul.mubr.f32.gmra.mrb[0].mxu0 %v2302
  %v2376 = vpop.f32.mrb[0].mxu0
  %v2377 = vadd.f32 0.0, %v2376
  %v2378 = vpop.f32.mrb[0].mxu0
  %2379 = vmatprep.mubr.f32.mxu0 0.0
  %2380 = vmatmul.mubr.f32.gmra.mrb[0].mxu0 %v2305
  %v2381 = vpop.f32.mrb[0].mxu0
  %v2382 = vadd.f32 0.0, %v2381
  %v2383 = vpop.f32.mrb[0].mxu0
  %2384 = vmatprep.mubr.f32.mxu0 0.0
  %2385 = vmatmul.mubr.f32.gmra.mrb[0].mxu0 %v2308
  %v2386 = vpop.f32.mrb[0].mxu0
  %v2387 = vadd.f32 0.0, %v2386
  %v2388 = vpop.f32.mrb[0].mxu0
  %2389 = vdwg.mxu0
  %v2390 = vadd.f32 %v2294, %v2377
  %v2391 = vadd.f32 %v2295, %v2382
  %v2392 = vadd.f32 %v2296, %v2387
  %v2393 = vld [vmem:[%s3 + $0x220] sm:$0xff]
  %v2394 = vld [vmem:[%s3 + $0x228] sm:$0xff]
  %v2395 = vld [vmem:[%s3 + $0x230] sm:$0xff]
  %v2396 = vld [vmem:[%s3 + $0x238] sm:$0xff]
  %v2398 = vsel %vm254, %v2192, 0
  %v2401 = vsel %vm254, %v2193, 0
  %v2404 = vsel %vm254, %v2194, 0
  %2406 = vmatprep.subr.mxu0 0.0
  %2407 = vmatpush1.msra.mxu0 %v2393
  %2408 = vmatprep.subr.mxu0 0.0
  %2409 = vmatpush1.msra.mxu0 %v2394
  %2410 = vmatprep.subr.mxu0 0.0
  %2411 = vmatpush1.msra.mxu0 %v2395
  %2412 = vmatprep.subr.mxu0 0.0
  %2413 = vmatpush1.msra.mxu0 %v2396
  %2414 = vmatprep.subr.mxu0 0.0
  %2415 = vmatpush1.msra.mxu0 0.0
  %2416 = vmatprep.subr.mxu0 0.0
  %2417 = vmatpush1.msra.mxu0 0.0
  %2418 = vmatprep.subr.mxu0 0.0
  %2419 = vmatpush1.msra.mxu0 0.0
  %2420 = vmatprep.subr.mxu0 0.0
  %2421 = vmatpush1.msra.mxu0 0.0
  %2422 = vmatprep.subr.mxu0 0.0
  %2423 = vmatpush1.msra.mxu0 0.0
  %2424 = vmatprep.subr.mxu0 0.0
  %2425 = vmatpush1.msra.mxu0 0.0
  %2426 = vmatprep.subr.mxu0 0.0
  %2427 = vmatpush1.msra.mxu0 0.0
  %2428 = vmatprep.subr.mxu0 0.0
  %2429 = vmatpush1.msra.mxu0 0.0
  %2430 = vmatprep.subr.mxu0 0.0
  %2431 = vmatpush1.msra.mxu0 0.0
  %2432 = vmatprep.subr.mxu0 0.0
  %2433 = vmatpush1.msra.mxu0 0.0
  %2434 = vmatprep.subr.mxu0 0.0
  %2435 = vmatpush1.msra.mxu0 0.0
  %2436 = vmatprep.subr.mxu0 0.0
  %2437 = vmatpush1.msra.mxu0 0.0
  %2438 = vmatprep.subr.mxu0 0.0
  %2439 = vmatpush1.msra.mxu0 0.0
  %2440 = vmatprep.subr.mxu0 0.0
  %2441 = vmatpush1.msra.mxu0 0.0
  %2442 = vmatprep.subr.mxu0 0.0
  %2443 = vmatpush1.msra.mxu0 0.0
  %2444 = vmatprep.subr.mxu0 0.0
  %2445 = vmatpush1.msra.mxu0 0.0
  %2446 = vmatprep.subr.mxu0 0.0
  %2447 = vmatpush1.msra.mxu0 0.0
  %2448 = vmatprep.subr.mxu0 0.0
  %2449 = vmatpush1.msra.mxu0 0.0
  %2450 = vmatprep.subr.mxu0 0.0
  %2451 = vmatpush1.msra.mxu0 0.0
  %2452 = vmatprep.subr.mxu0 0.0
  %2453 = vmatpush1.msra.mxu0 0.0
  %2454 = vmatprep.subr.mxu0 0.0
  %2455 = vmatpush1.msra.mxu0 0.0
  %2456 = vmatprep.subr.mxu0 0.0
  %2457 = vmatpush1.msra.mxu0 0.0
  %2458 = vmatprep.subr.mxu0 0.0
  %2459 = vmatpush1.msra.mxu0 0.0
  %2460 = vmatprep.subr.mxu0 0.0
  %2461 = vmatpush1.msra.mxu0 0.0
  %2462 = vmatprep.subr.mxu0 0.0
  %2463 = vmatpush1.msra.mxu0 0.0
  %2464 = vmatprep.subr.mxu0 0.0
  %2465 = vmatpush1.msra.mxu0 0.0
  %2466 = vmatprep.subr.mxu0 0.0
  %2467 = vmatpush1.msra.mxu0 0.0
  %2468 = vmatprep.subr.mxu0 0.0
  %2469 = vmatpush1.msra.mxu0 0.0
  %2470 = vmatprep.mubr.f32.mxu0 0.0
  %2471 = vmatmul.mubr.f32.gmra.mrb[0].mxu0 %v2398
  %v2472 = vpop.f32.mrb[0].mxu0
  %v2473 = vadd.f32 0.0, %v2472
  %v2474 = vpop.f32.mrb[0].mxu0
  %2475 = vmatprep.mubr.f32.mxu0 0.0
  %2476 = vmatmul.mubr.f32.gmra.mrb[0].mxu0 %v2401
  %v2477 = vpop.f32.mrb[0].mxu0
  %v2478 = vadd.f32 0.0, %v2477
  %v2479 = vpop.f32.mrb[0].mxu0
  %2480 = vmatprep.mubr.f32.mxu0 0.0
  %2481 = vmatmul.mubr.f32.gmra.mrb[0].mxu0 %v2404
  %v2482 = vpop.f32.mrb[0].mxu0
  %v2483 = vadd.f32 0.0, %v2482
  %v2484 = vpop.f32.mrb[0].mxu0
  %2485 = vdwg.mxu0
  %v2486 = vadd.f32 %v2390, %v2473
  %v2487 = vadd.f32 %v2391, %v2478
  %v2488 = vadd.f32 %v2392, %v2483
  %v2489 = vld [vmem:[%s3 + $0x240] sm:$0xff]
  %v2490 = vld [vmem:[%s3 + $0x248] sm:$0xff]
  %v2491 = vld [vmem:[%s3 + $0x250] sm:$0xff]
  %v2492 = vld [vmem:[%s3 + $0x258] sm:$0xff]
  %v2494 = vsel %vm254, %v2195, 0
  %v2497 = vsel %vm254, %v2196, 0
  %v2500 = vsel %vm254, %v2197, 0
  %2502 = vmatprep.subr.mxu0 0.0
  %2503 = vmatpush1.msra.mxu0 %v2489
  %2504 = vmatprep.subr.mxu0 0.0
  %2505 = vmatpush1.msra.mxu0 %v2490
  %2506 = vmatprep.subr.mxu0 0.0
  %2507 = vmatpush1.msra.mxu0 %v2491
  %2508 = vmatprep.subr.mxu0 0.0
  %2509 = vmatpush1.msra.mxu0 %v2492
  %2510 = vmatprep.subr.mxu0 0.0
  %2511 = vmatpush1.msra.mxu0 0.0
  %2512 = vmatprep.subr.mxu0 0.0
  %2513 = vmatpush1.msra.mxu0 0.0
  %2514 = vmatprep.subr.mxu0 0.0
  %2515 = vmatpush1.msra.mxu0 0.0
  %2516 = vmatprep.subr.mxu0 0.0
  %2517 = vmatpush1.msra.mxu0 0.0
  %2518 = vmatprep.subr.mxu0 0.0
  %2519 = vmatpush1.msra.mxu0 0.0
  %2520 = vmatprep.subr.mxu0 0.0
  %2521 = vmatpush1.msra.mxu0 0.0
  %2522 = vmatprep.subr.mxu0 0.0
  %2523 = vmatpush1.msra.mxu0 0.0
  %2524 = vmatprep.subr.mxu0 0.0
  %2525 = vmatpush1.msra.mxu0 0.0
  %2526 = vmatprep.subr.mxu0 0.0
  %2527 = vmatpush1.msra.mxu0 0.0
  %2528 = vmatprep.subr.mxu0 0.0
  %2529 = vmatpush1.msra.mxu0 0.0
  %2530 = vmatprep.subr.mxu0 0.0
  %2531 = vmatpush1.msra.mxu0 0.0
  %2532 = vmatprep.subr.mxu0 0.0
  %2533 = vmatpush1.msra.mxu0 0.0
  %2534 = vmatprep.subr.mxu0 0.0
  %2535 = vmatpush1.msra.mxu0 0.0
  %2536 = vmatprep.subr.mxu0 0.0
  %2537 = vmatpush1.msra.mxu0 0.0
  %2538 = vmatprep.subr.mxu0 0.0
  %2539 = vmatpush1.msra.mxu0 0.0
  %2540 = vmatprep.subr.mxu0 0.0
  %2541 = vmatpush1.msra.mxu0 0.0
  %2542 = vmatprep.subr.mxu0 0.0
  %2543 = vmatpush1.msra.mxu0 0.0
  %2544 = vmatprep.subr.mxu0 0.0
  %2545 = vmatpush1.msra.mxu0 0.0
  %2546 = vmatprep.subr.mxu0 0.0
  %2547 = vmatpush1.msra.mxu0 0.0
  %2548 = vmatprep.subr.mxu0 0.0
  %2549 = vmatpush1.msra.mxu0 0.0
  %2550 = vmatprep.subr.mxu0 0.0
  %2551 = vmatpush1.msra.mxu0 0.0
  %2552 = vmatprep.subr.mxu0 0.0
  %2553 = vmatpush1.msra.mxu0 0.0
  %2554 = vmatprep.subr.mxu0 0.0
  %2555 = vmatpush1.msra.mxu0 0.0
  %2556 = vmatprep.subr.mxu0 0.0
  %2557 = vmatpush1.msra.mxu0 0.0
  %2558 = vmatprep.subr.mxu0 0.0
  %2559 = vmatpush1.msra.mxu0 0.0
  %2560 = vmatprep.subr.mxu0 0.0
  %2561 = vmatpush1.msra.mxu0 0.0
  %2562 = vmatprep.subr.mxu0 0.0
  %2563 = vmatpush1.msra.mxu0 0.0
  %2564 = vmatprep.subr.mxu0 0.0
  %2565 = vmatpush1.msra.mxu0 0.0
  %2566 = vmatprep.mubr.f32.mxu0 0.0
  %2567 = vmatmul.mubr.f32.gmra.mrb[0].mxu0 %v2494
  %v2568 = vpop.f32.mrb[0].mxu0
  %v2569 = vadd.f32 0.0, %v2568
  %v2570 = vpop.f32.mrb[0].mxu0
  %2571 = vmatprep.mubr.f32.mxu0 0.0
  %2572 = vmatmul.mubr.f32.gmra.mrb[0].mxu0 %v2497
  %v2573 = vpop.f32.mrb[0].mxu0
  %v2574 = vadd.f32 0.0, %v2573
  %v2575 = vpop.f32.mrb[0].mxu0
  %2576 = vmatprep.mubr.f32.mxu0 0.0
  %2577 = vmatmul.mubr.f32.gmra.mrb[0].mxu0 %v2500
  %v2578 = vpop.f32.mrb[0].mxu0
  %v2579 = vadd.f32 0.0, %v2578
  %v2580 = vpop.f32.mrb[0].mxu0
  %2581 = vdwg.mxu0
  %v2582 = vadd.f32 %v2486, %v2569
  %v2583 = vadd.f32 %v2487, %v2574
  %v2584 = vadd.f32 %v2488, %v2579
  %v2585 = vld [vmem:[%s3 + $0x260] sm:$0xff]
  %v2586 = vld [vmem:[%s3 + $0x268] sm:$0xff]
  %v2587 = vld [vmem:[%s3 + $0x270] sm:$0xff]
  %v2588 = vld [vmem:[%s3 + $0x278] sm:$0xff]
  %v2590 = vsel %vm254, %v2198, 0
  %v2593 = vsel %vm254, %v2199, 0
  %v2596 = vsel %vm254, %v2200, 0
  %2598 = vmatprep.subr.mxu0 0.0
  %2599 = vmatpush1.msra.mxu0 %v2585
  %2600 = vmatprep.subr.mxu0 0.0
  %2601 = vmatpush1.msra.mxu0 %v2586
  %2602 = vmatprep.subr.mxu0 0.0
  %2603 = vmatpush1.msra.mxu0 %v2587
  %2604 = vmatprep.subr.mxu0 0.0
  %2605 = vmatpush1.msra.mxu0 %v2588
  %2606 = vmatprep.subr.mxu0 0.0
  %2607 = vmatpush1.msra.mxu0 0.0
  %2608 = vmatprep.subr.mxu0 0.0
  %2609 = vmatpush1.msra.mxu0 0.0
  %2610 = vmatprep.subr.mxu0 0.0
  %2611 = vmatpush1.msra.mxu0 0.0
  %2612 = vmatprep.subr.mxu0 0.0
  %2613 = vmatpush1.msra.mxu0 0.0
  %2614 = vmatprep.subr.mxu0 0.0
  %2615 = vmatpush1.msra.mxu0 0.0
  %2616 = vmatprep.subr.mxu0 0.0
  %2617 = vmatpush1.msra.mxu0 0.0
  %2618 = vmatprep.subr.mxu0 0.0
  %2619 = vmatpush1.msra.mxu0 0.0
  %2620 = vmatprep.subr.mxu0 0.0
  %2621 = vmatpush1.msra.mxu0 0.0
  %2622 = vmatprep.subr.mxu0 0.0
  %2623 = vmatpush1.msra.mxu0 0.0
  %2624 = vmatprep.subr.mxu0 0.0
  %2625 = vmatpush1.msra.mxu0 0.0
  %2626 = vmatprep.subr.mxu0 0.0
  %2627 = vmatpush1.msra.mxu0 0.0
  %2628 = vmatprep.subr.mxu0 0.0
  %2629 = vmatpush1.msra.mxu0 0.0
  %2630 = vmatprep.subr.mxu0 0.0
  %2631 = vmatpush1.msra.mxu0 0.0
  %2632 = vmatprep.subr.mxu0 0.0
  %2633 = vmatpush1.msra.mxu0 0.0
  %2634 = vmatprep.subr.mxu0 0.0
  %2635 = vmatpush1.msra.mxu0 0.0
  %2636 = vmatprep.subr.mxu0 0.0
  %2637 = vmatpush1.msra.mxu0 0.0
  %2638 = vmatprep.subr.mxu0 0.0
  %2639 = vmatpush1.msra.mxu0 0.0
  %2640 = vmatprep.subr.mxu0 0.0
  %2641 = vmatpush1.msra.mxu0 0.0
  %2642 = vmatprep.subr.mxu0 0.0
  %2643 = vmatpush1.msra.mxu0 0.0
  %2644 = vmatprep.subr.mxu0 0.0
  %2645 = vmatpush1.msra.mxu0 0.0
  %2646 = vmatprep.subr.mxu0 0.0
  %2647 = vmatpush1.msra.mxu0 0.0
  %2648 = vmatprep.subr.mxu0 0.0
  %2649 = vmatpush1.msra.mxu0 0.0
  %2650 = vmatprep.subr.mxu0 0.0
  %2651 = vmatpush1.msra.mxu0 0.0
  %2652 = vmatprep.subr.mxu0 0.0
  %2653 = vmatpush1.msra.mxu0 0.0
  %2654 = vmatprep.subr.mxu0 0.0
  %2655 = vmatpush1.msra.mxu0 0.0
  %2656 = vmatprep.subr.mxu0 0.0
  %2657 = vmatpush1.msra.mxu0 0.0
  %2658 = vmatprep.subr.mxu0 0.0
  %2659 = vmatpush1.msra.mxu0 0.0
  %2660 = vmatprep.subr.mxu0 0.0
  %2661 = vmatpush1.msra.mxu0 0.0
  %2662 = vmatprep.mubr.f32.mxu0 0.0
  %2663 = vmatmul.mubr.f32.gmra.mrb[0].mxu0 %v2590
  %v2664 = vpop.f32.mrb[0].mxu0
  %v2665 = vadd.f32 0.0, %v2664
  %v2666 = vpop.f32.mrb[0].mxu0
  %2667 = vmatprep.mubr.f32.mxu0 0.0
  %2668 = vmatmul.mubr.f32.gmra.mrb[0].mxu0 %v2593
  %v2669 = vpop.f32.mrb[0].mxu0
  %v2670 = vadd.f32 0.0, %v2669
  %v2671 = vpop.f32.mrb[0].mxu0
  %2672 = vmatprep.mubr.f32.mxu0 0.0
  %2673 = vmatmul.mubr.f32.gmra.mrb[0].mxu0 %v2596
  %v2674 = vpop.f32.mrb[0].mxu0
  %v2675 = vadd.f32 0.0, %v2674
  %v2676 = vpop.f32.mrb[0].mxu0
  %2677 = vdwg.mxu0
  %v2678 = vadd.f32 %v2582, %v2665
  %v2679 = vadd.f32 %v2583, %v2670
  %v2680 = vadd.f32 %v2584, %v2675
  %v2681 = vld [vmem:[%s0 + $0x1e0] sm:$0xff]
  %v2682 = vld [vmem:[%s0 + $0x1e8] sm:$0xff]
  %v2683 = vld [vmem:[%s0 + $0x1f0] sm:$0xff]
  %v2684 = vld [vmem:[%s0 + $0x1f8] sm:$0xff]
  %v2685 = vld [vmem:[%s0 + $0x200] sm:$0xff]
  %v2686 = vld [vmem:[%s0 + $0x208] sm:$0xff]
  %v2687 = vld [vmem:[%s0 + $0x210] sm:$0xff]
  %v2688 = vld [vmem:[%s0 + $0x218] sm:$0xff]
  %v2689 = vld [vmem:[%s0 + $0x220] sm:$0xff]
  %v2690 = vld [vmem:[%s0 + $0x228] sm:$0xff]
  %v2691 = vld [vmem:[%s0 + $0x230] sm:$0xff]
  %v2692 = vld [vmem:[%s0 + $0x238] sm:$0xff]
  %v2693 = vld [vmem:[%s0 + $0x240] sm:$0xff]
  %v2694 = vld [vmem:[%s0 + $0x248] sm:$0xff]
  %v2695 = vld [vmem:[%s0 + $0x250] sm:$0xff]
  %2696 = vmatprep.subr.mxu0 0.0
  %2697 = vmatpush1.msra.mxu0 %v50
  %2698 = vmatprep.subr.mxu0 0.0
  %2699 = vmatpush1.msra.mxu0 %v51
  %2700 = vmatprep.subr.mxu0 0.0
  %2701 = vmatpush1.msra.mxu0 %v52
  %2702 = vmatprep.subr.mxu0 0.0
  %2703 = vmatpush1.msra.mxu0 %v53
  %2704 = vmatprep.subr.mxu0 0.0
  %2705 = vmatpush1.msra.mxu0 %v54
  %2706 = vmatprep.subr.mxu0 0.0
  %2707 = vmatpush1.msra.mxu0 %v55
  %2708 = vmatprep.subr.mxu0 0.0
  %2709 = vmatpush1.msra.mxu0 %v56
  %2710 = vmatprep.subr.mxu0 0.0
  %2711 = vmatpush1.msra.mxu0 %v57
  %2712 = vmatprep.subr.mxu0 0.0
  %2713 = vmatpush1.msra.mxu0 %v58
  %2714 = vmatprep.subr.mxu0 0.0
  %2715 = vmatpush1.msra.mxu0 %v59
  %2716 = vmatprep.subr.mxu0 0.0
  %2717 = vmatpush1.msra.mxu0 %v60
  %2718 = vmatprep.subr.mxu0 0.0
  %2719 = vmatpush1.msra.mxu0 %v61
  %2720 = vmatprep.subr.mxu0 0.0
  %2721 = vmatpush1.msra.mxu0 %v62
  %2722 = vmatprep.subr.mxu0 0.0
  %2723 = vmatpush1.msra.mxu0 %v63
  %2724 = vmatprep.subr.mxu0 0.0
  %2725 = vmatpush1.msra.mxu0 %v64
  %2726 = vmatprep.subr.mxu0 0.0
  %2727 = vmatpush1.msra.mxu0 %v65
  %2728 = vmatprep.subr.mxu0 0.0
  %2729 = vmatpush1.msra.mxu0 0.0
  %2730 = vmatprep.subr.mxu0 0.0
  %2731 = vmatpush1.msra.mxu0 0.0
  %2732 = vmatprep.subr.mxu0 0.0
  %2733 = vmatpush1.msra.mxu0 0.0
  %2734 = vmatprep.subr.mxu0 0.0
  %2735 = vmatpush1.msra.mxu0 0.0
  %2736 = vmatprep.subr.mxu0 0.0
  %2737 = vmatpush1.msra.mxu0 0.0
  %2738 = vmatprep.subr.mxu0 0.0
  %2739 = vmatpush1.msra.mxu0 0.0
  %2740 = vmatprep.subr.mxu0 0.0
  %2741 = vmatpush1.msra.mxu0 0.0
  %2742 = vmatprep.subr.mxu0 0.0
  %2743 = vmatpush1.msra.mxu0 0.0
  %2744 = vmatprep.subr.mxu0 0.0
  %2745 = vmatpush1.msra.mxu0 0.0
  %2746 = vmatprep.subr.mxu0 0.0
  %2747 = vmatpush1.msra.mxu0 0.0
  %2748 = vmatprep.subr.mxu0 0.0
  %2749 = vmatpush1.msra.mxu0 0.0
  %2750 = vmatprep.subr.mxu0 0.0
  %2751 = vmatpush1.msra.mxu0 0.0
  %2752 = vmatprep.subr.mxu0 0.0
  %2753 = vmatpush1.msra.mxu0 0.0
  %2754 = vmatprep.subr.mxu0 0.0
  %2755 = vmatpush1.msra.mxu0 0.0
  %2756 = vmatprep.subr.mxu0 0.0
  %2757 = vmatpush1.msra.mxu0 0.0
  %2758 = vmatprep.subr.mxu0 0.0
  %2759 = vmatpush1.msra.mxu0 0.0
  %2760 = vmatprep.mubr.f32.mxu0 0.0
  %2761 = vmatmul.mubr.f32.gmra.mrb[0].mxu0 %v2681
  %v2762 = vpop.f32.mrb[0].mxu0
  %v2763 = vadd.f32 %v71, %v2762
  %v2764 = vpop.f32.mrb[0].mxu0
  %2765 = vmatprep.mubr.f32.mxu0 0.0
  %2766 = vmatmul.mubr.f32.gmra.mrb[0].mxu0 %v2682
  %v2767 = vpop.f32.mrb[0].mxu0
  %v2768 = vadd.f32 %v71, %v2767
  %v2769 = vpop.f32.mrb[0].mxu0
  %2770 = vmatprep.mubr.f32.mxu0 0.0
  %2771 = vmatmul.mubr.f32.gmra.mrb[0].mxu0 %v2683
  %v2772 = vpop.f32.mrb[0].mxu0
  %v2773 = vadd.f32 %v71, %v2772
  %v2774 = vpop.f32.mrb[0].mxu0
  %2775 = vmatprep.mubr.f32.mxu0 0.0
  %2776 = vmatmul.mubr.f32.gmra.mrb[0].mxu0 %v2684
  %v2777 = vpop.f32.mrb[0].mxu0
  %v2778 = vadd.f32 %v71, %v2777
  %v2779 = vpop.f32.mrb[0].mxu0
  %2780 = vmatprep.mubr.f32.mxu0 0.0
  %2781 = vmatmul.mubr.f32.gmra.mrb[0].mxu0 %v2685
  %v2782 = vpop.f32.mrb[0].mxu0
  %v2783 = vadd.f32 %v71, %v2782
  %v2784 = vpop.f32.mrb[0].mxu0
  %2785 = vmatprep.mubr.f32.mxu0 0.0
  %2786 = vmatmul.mubr.f32.gmra.mrb[0].mxu0 %v2686
  %v2787 = vpop.f32.mrb[0].mxu0
  %v2788 = vadd.f32 %v71, %v2787
  %v2789 = vpop.f32.mrb[0].mxu0
  %2790 = vmatprep.mubr.f32.mxu0 0.0
  %2791 = vmatmul.mubr.f32.gmra.mrb[0].mxu0 %v2687
  %v2792 = vpop.f32.mrb[0].mxu0
  %v2793 = vadd.f32 %v71, %v2792
  %v2794 = vpop.f32.mrb[0].mxu0
  %2795 = vmatprep.mubr.f32.mxu0 0.0
  %2796 = vmatmul.mubr.f32.gmra.mrb[0].mxu0 %v2688
  %v2797 = vpop.f32.mrb[0].mxu0
  %v2798 = vadd.f32 %v71, %v2797
  %v2799 = vpop.f32.mrb[0].mxu0
  %2800 = vmatprep.mubr.f32.mxu0 0.0
  %2801 = vmatmul.mubr.f32.gmra.mrb[0].mxu0 %v2689
  %v2802 = vpop.f32.mrb[0].mxu0
  %v2803 = vadd.f32 %v71, %v2802
  %v2804 = vpop.f32.mrb[0].mxu0
  %2805 = vmatprep.mubr.f32.mxu0 0.0
  %2806 = vmatmul.mubr.f32.gmra.mrb[0].mxu0 %v2690
  %v2807 = vpop.f32.mrb[0].mxu0
  %v2808 = vadd.f32 %v71, %v2807
  %v2809 = vpop.f32.mrb[0].mxu0
  %2810 = vmatprep.mubr.f32.mxu0 0.0
  %2811 = vmatmul.mubr.f32.gmra.mrb[0].mxu0 %v2691
  %v2812 = vpop.f32.mrb[0].mxu0
  %v2813 = vadd.f32 %v71, %v2812
  %v2814 = vpop.f32.mrb[0].mxu0
  %2815 = vmatprep.mubr.f32.mxu0 0.0
  %2816 = vmatmul.mubr.f32.gmra.mrb[0].mxu0 %v2692
  %v2817 = vpop.f32.mrb[0].mxu0
  %v2818 = vadd.f32 %v71, %v2817
  %v2819 = vpop.f32.mrb[0].mxu0
  %2820 = vmatprep.mubr.f32.mxu0 0.0
  %2821 = vmatmul.mubr.f32.gmra.mrb[0].mxu0 %v2693
  %v2822 = vpop.f32.mrb[0].mxu0
  %v2823 = vadd.f32 %v71, %v2822
  %v2824 = vpop.f32.mrb[0].mxu0
  %2825 = vmatprep.mubr.f32.mxu0 0.0
  %2826 = vmatmul.mubr.f32.gmra.mrb[0].mxu0 %v2694
  %v2827 = vpop.f32.mrb[0].mxu0
  %v2828 = vadd.f32 %v71, %v2827
  %v2829 = vpop.f32.mrb[0].mxu0
  %2830 = vmatprep.mubr.f32.mxu0 0.0
  %2831 = vmatmul.mubr.f32.gmra.mrb[0].mxu0 %v2695
  %v2832 = vpop.f32.mrb[0].mxu0
  %v2833 = vadd.f32 %v71, %v2832
  %v2834 = vpop.f32.mrb[0].mxu0
  %2835 = vdwg.mxu0
  %v2836 = vmax.f32 %v2763, 0.0
  %v2837 = vmax.f32 %v2768, 0.0
  %v2838 = vmax.f32 %v2773, 0.0
  %v2839 = vmax.f32 %v2778, 0.0
  %v2840 = vmax.f32 %v2783, 0.0
  %v2841 = vmax.f32 %v2788, 0.0
  %v2842 = vmax.f32 %v2793, 0.0
  %v2843 = vmax.f32 %v2798, 0.0
  %v2844 = vmax.f32 %v2803, 0.0
  %v2845 = vmax.f32 %v2808, 0.0
  %v2846 = vmax.f32 %v2813, 0.0
  %v2847 = vmax.f32 %v2818, 0.0
  %v2848 = vmax.f32 %v2823, 0.0
  %v2849 = vmax.f32 %v2828, 0.0
  %v2850 = vmax.f32 %v2833, 0.0
  %v2851 = vld [vmem:[%s3 + $0x280] sm:$0xff]
  %v2852 = vld [vmem:[%s3 + $0x288] sm:$0xff]
  %v2853 = vld [vmem:[%s3 + $0x290] sm:$0xff]
  %v2854 = vld [vmem:[%s3 + $0x298] sm:$0xff]
  %v2856 = vsel %vm254, %v2836, 0
  %v2859 = vsel %vm254, %v2837, 0
  %v2862 = vsel %vm254, %v2838, 0
  %2864 = vmatprep.subr.mxu0 0.0
  %2865 = vmatpush1.msra.mxu0 %v2851
  %2866 = vmatprep.subr.mxu0 0.0
  %2867 = vmatpush1.msra.mxu0 %v2852
  %2868 = vmatprep.subr.mxu0 0.0
  %2869 = vmatpush1.msra.mxu0 %v2853
  %2870 = vmatprep.subr.mxu0 0.0
  %2871 = vmatpush1.msra.mxu0 %v2854
  %2872 = vmatprep.subr.mxu0 0.0
  %2873 = vmatpush1.msra.mxu0 0.0
  %2874 = vmatprep.subr.mxu0 0.0
  %2875 = vmatpush1.msra.mxu0 0.0
  %2876 = vmatprep.subr.mxu0 0.0
  %2877 = vmatpush1.msra.mxu0 0.0
  %2878 = vmatprep.subr.mxu0 0.0
  %2879 = vmatpush1.msra.mxu0 0.0
  %2880 = vmatprep.subr.mxu0 0.0
  %2881 = vmatpush1.msra.mxu0 0.0
  %2882 = vmatprep.subr.mxu0 0.0
  %2883 = vmatpush1.msra.mxu0 0.0
  %2884 = vmatprep.subr.mxu0 0.0
  %2885 = vmatpush1.msra.mxu0 0.0
  %2886 = vmatprep.subr.mxu0 0.0
  %2887 = vmatpush1.msra.mxu0 0.0
  %2888 = vmatprep.subr.mxu0 0.0
  %2889 = vmatpush1.msra.mxu0 0.0
  %2890 = vmatprep.subr.mxu0 0.0
  %2891 = vmatpush1.msra.mxu0 0.0
  %2892 = vmatprep.subr.mxu0 0.0
  %2893 = vmatpush1.msra.mxu0 0.0
  %2894 = vmatprep.subr.mxu0 0.0
  %2895 = vmatpush1.msra.mxu0 0.0
  %2896 = vmatprep.subr.mxu0 0.0
  %2897 = vmatpush1.msra.mxu0 0.0
  %2898 = vmatprep.subr.mxu0 0.0
  %2899 = vmatpush1.msra.mxu0 0.0
  %2900 = vmatprep.subr.mxu0 0.0
  %2901 = vmatpush1.msra.mxu0 0.0
  %2902 = vmatprep.subr.mxu0 0.0
  %2903 = vmatpush1.msra.mxu0 0.0
  %2904 = vmatprep.subr.mxu0 0.0
  %2905 = vmatpush1.msra.mxu0 0.0
  %2906 = vmatprep.subr.mxu0 0.0
  %2907 = vmatpush1.msra.mxu0 0.0
  %2908 = vmatprep.subr.mxu0 0.0
  %2909 = vmatpush1.msra.mxu0 0.0
  %2910 = vmatprep.subr.mxu0 0.0
  %2911 = vmatpush1.msra.mxu0 0.0
  %2912 = vmatprep.subr.mxu0 0.0
  %2913 = vmatpush1.msra.mxu0 0.0
  %2914 = vmatprep.subr.mxu0 0.0
  %2915 = vmatpush1.msra.mxu0 0.0
  %2916 = vmatprep.subr.mxu0 0.0
  %2917 = vmatpush1.msra.mxu0 0.0
  %2918 = vmatprep.subr.mxu0 0.0
  %2919 = vmatpush1.msra.mxu0 0.0
  %2920 = vmatprep.subr.mxu0 0.0
  %2921 = vmatpush1.msra.mxu0 0.0
  %2922 = vmatprep.subr.mxu0 0.0
  %2923 = vmatpush1.msra.mxu0 0.0
  %2924 = vmatprep.subr.mxu0 0.0
  %2925 = vmatpush1.msra.mxu0 0.0
  %2926 = vmatprep.subr.mxu0 0.0
  %2927 = vmatpush1.msra.mxu0 0.0
  %2928 = vmatprep.mubr.f32.mxu0 0.0
  %2929 = vmatmul.mubr.f32.gmra.mrb[0].mxu0 %v2856
  %v2930 = vpop.f32.mrb[0].mxu0
  %v2931 = vadd.f32 0.0, %v2930
  %v2932 = vpop.f32.mrb[0].mxu0
  %2933 = vmatprep.mubr.f32.mxu0 0.0
  %2934 = vmatmul.mubr.f32.gmra.mrb[0].mxu0 %v2859
  %v2935 = vpop.f32.mrb[0].mxu0
  %v2936 = vadd.f32 0.0, %v2935
  %v2937 = vpop.f32.mrb[0].mxu0
  %2938 = vmatprep.mubr.f32.mxu0 0.0
  %2939 = vmatmul.mubr.f32.gmra.mrb[0].mxu0 %v2862
  %v2940 = vpop.f32.mrb[0].mxu0
  %v2941 = vadd.f32 0.0, %v2940
  %v2942 = vpop.f32.mrb[0].mxu0
  %2943 = vdwg.mxu0
  %v2944 = vadd.f32 %v2678, %v2931
  %v2945 = vadd.f32 %v2679, %v2936
  %v2946 = vadd.f32 %v2680, %v2941
  %v2947 = vld [vmem:[%s3 + $0x2a0] sm:$0xff]
  %v2948 = vld [vmem:[%s3 + $0x2a8] sm:$0xff]
  %v2949 = vld [vmem:[%s3 + $0x2b0] sm:$0xff]
  %v2950 = vld [vmem:[%s3 + $0x2b8] sm:$0xff]
  %v2952 = vsel %vm254, %v2839, 0
  %v2955 = vsel %vm254, %v2840, 0
  %v2958 = vsel %vm254, %v2841, 0
  %2960 = vmatprep.subr.mxu0 0.0
  %2961 = vmatpush1.msra.mxu0 %v2947
  %2962 = vmatprep.subr.mxu0 0.0
  %2963 = vmatpush1.msra.mxu0 %v2948
  %2964 = vmatprep.subr.mxu0 0.0
  %2965 = vmatpush1.msra.mxu0 %v2949
  %2966 = vmatprep.subr.mxu0 0.0
  %2967 = vmatpush1.msra.mxu0 %v2950
  %2968 = vmatprep.subr.mxu0 0.0
  %2969 = vmatpush1.msra.mxu0 0.0
  %2970 = vmatprep.subr.mxu0 0.0
  %2971 = vmatpush1.msra.mxu0 0.0
  %2972 = vmatprep.subr.mxu0 0.0
  %2973 = vmatpush1.msra.mxu0 0.0
  %2974 = vmatprep.subr.mxu0 0.0
  %2975 = vmatpush1.msra.mxu0 0.0
  %2976 = vmatprep.subr.mxu0 0.0
  %2977 = vmatpush1.msra.mxu0 0.0
  %2978 = vmatprep.subr.mxu0 0.0
  %2979 = vmatpush1.msra.mxu0 0.0
  %2980 = vmatprep.subr.mxu0 0.0
  %2981 = vmatpush1.msra.mxu0 0.0
  %2982 = vmatprep.subr.mxu0 0.0
  %2983 = vmatpush1.msra.mxu0 0.0
  %2984 = vmatprep.subr.mxu0 0.0
  %2985 = vmatpush1.msra.mxu0 0.0
  %2986 = vmatprep.subr.mxu0 0.0
  %2987 = vmatpush1.msra.mxu0 0.0
  %2988 = vmatprep.subr.mxu0 0.0
  %2989 = vmatpush1.msra.mxu0 0.0
  %2990 = vmatprep.subr.mxu0 0.0
  %2991 = vmatpush1.msra.mxu0 0.0
  %2992 = vmatprep.subr.mxu0 0.0
  %2993 = vmatpush1.msra.mxu0 0.0
  %2994 = vmatprep.subr.mxu0 0.0
  %2995 = vmatpush1.msra.mxu0 0.0
  %2996 = vmatprep.subr.mxu0 0.0
  %2997 = vmatpush1.msra.mxu0 0.0
  %2998 = vmatprep.subr.mxu0 0.0
  %2999 = vmatpush1.msra.mxu0 0.0
  %3000 = vmatprep.subr.mxu0 0.0
  %3001 = vmatpush1.msra.mxu0 0.0
  %3002 = vmatprep.subr.mxu0 0.0
  %3003 = vmatpush1.msra.mxu0 0.0
  %3004 = vmatprep.subr.mxu0 0.0
  %3005 = vmatpush1.msra.mxu0 0.0
  %3006 = vmatprep.subr.mxu0 0.0
  %3007 = vmatpush1.msra.mxu0 0.0
  %3008 = vmatprep.subr.mxu0 0.0
  %3009 = vmatpush1.msra.mxu0 0.0
  %3010 = vmatprep.subr.mxu0 0.0
  %3011 = vmatpush1.msra.mxu0 0.0
  %3012 = vmatprep.subr.mxu0 0.0
  %3013 = vmatpush1.msra.mxu0 0.0
  %3014 = vmatprep.subr.mxu0 0.0
  %3015 = vmatpush1.msra.mxu0 0.0
  %3016 = vmatprep.subr.mxu0 0.0
  %3017 = vmatpush1.msra.mxu0 0.0
  %3018 = vmatprep.subr.mxu0 0.0
  %3019 = vmatpush1.msra.mxu0 0.0
  %3020 = vmatprep.subr.mxu0 0.0
  %3021 = vmatpush1.msra.mxu0 0.0
  %3022 = vmatprep.subr.mxu0 0.0
  %3023 = vmatpush1.msra.mxu0 0.0
  %3024 = vmatprep.mubr.f32.mxu0 0.0
  %3025 = vmatmul.mubr.f32.gmra.mrb[0].mxu0 %v2952
  %v3026 = vpop.f32.mrb[0].mxu0
  %v3027 = vadd.f32 0.0, %v3026
  %v3028 = vpop.f32.mrb[0].mxu0
  %3029 = vmatprep.mubr.f32.mxu0 0.0
  %3030 = vmatmul.mubr.f32.gmra.mrb[0].mxu0 %v2955
  %v3031 = vpop.f32.mrb[0].mxu0
  %v3032 = vadd.f32 0.0, %v3031
  %v3033 = vpop.f32.mrb[0].mxu0
  %3034 = vmatprep.mubr.f32.mxu0 0.0
  %3035 = vmatmul.mubr.f32.gmra.mrb[0].mxu0 %v2958
  %v3036 = vpop.f32.mrb[0].mxu0
  %v3037 = vadd.f32 0.0, %v3036
  %v3038 = vpop.f32.mrb[0].mxu0
  %3039 = vdwg.mxu0
  %v3040 = vadd.f32 %v2944, %v3027
  %v3041 = vadd.f32 %v2945, %v3032
  %v3042 = vadd.f32 %v2946, %v3037
  %v3043 = vld [vmem:[%s3 + $0x2c0] sm:$0xff]
  %v3044 = vld [vmem:[%s3 + $0x2c8] sm:$0xff]
  %v3045 = vld [vmem:[%s3 + $0x2d0] sm:$0xff]
  %v3046 = vld [vmem:[%s3 + $0x2d8] sm:$0xff]
  %v3048 = vsel %vm254, %v2842, 0
  %v3051 = vsel %vm254, %v2843, 0
  %v3054 = vsel %vm254, %v2844, 0
  %3056 = vmatprep.subr.mxu0 0.0
  %3057 = vmatpush1.msra.mxu0 %v3043
  %3058 = vmatprep.subr.mxu0 0.0
  %3059 = vmatpush1.msra.mxu0 %v3044
  %3060 = vmatprep.subr.mxu0 0.0
  %3061 = vmatpush1.msra.mxu0 %v3045
  %3062 = vmatprep.subr.mxu0 0.0
  %3063 = vmatpush1.msra.mxu0 %v3046
  %3064 = vmatprep.subr.mxu0 0.0
  %3065 = vmatpush1.msra.mxu0 0.0
  %3066 = vmatprep.subr.mxu0 0.0
  %3067 = vmatpush1.msra.mxu0 0.0
  %3068 = vmatprep.subr.mxu0 0.0
  %3069 = vmatpush1.msra.mxu0 0.0
  %3070 = vmatprep.subr.mxu0 0.0
  %3071 = vmatpush1.msra.mxu0 0.0
  %3072 = vmatprep.subr.mxu0 0.0
  %3073 = vmatpush1.msra.mxu0 0.0
  %3074 = vmatprep.subr.mxu0 0.0
  %3075 = vmatpush1.msra.mxu0 0.0
  %3076 = vmatprep.subr.mxu0 0.0
  %3077 = vmatpush1.msra.mxu0 0.0
  %3078 = vmatprep.subr.mxu0 0.0
  %3079 = vmatpush1.msra.mxu0 0.0
  %3080 = vmatprep.subr.mxu0 0.0
  %3081 = vmatpush1.msra.mxu0 0.0
  %3082 = vmatprep.subr.mxu0 0.0
  %3083 = vmatpush1.msra.mxu0 0.0
  %3084 = vmatprep.subr.mxu0 0.0
  %3085 = vmatpush1.msra.mxu0 0.0
  %3086 = vmatprep.subr.mxu0 0.0
  %3087 = vmatpush1.msra.mxu0 0.0
  %3088 = vmatprep.subr.mxu0 0.0
  %3089 = vmatpush1.msra.mxu0 0.0
  %3090 = vmatprep.subr.mxu0 0.0
  %3091 = vmatpush1.msra.mxu0 0.0
  %3092 = vmatprep.subr.mxu0 0.0
  %3093 = vmatpush1.msra.mxu0 0.0
  %3094 = vmatprep.subr.mxu0 0.0
  %3095 = vmatpush1.msra.mxu0 0.0
  %3096 = vmatprep.subr.mxu0 0.0
  %3097 = vmatpush1.msra.mxu0 0.0
  %3098 = vmatprep.subr.mxu0 0.0
  %3099 = vmatpush1.msra.mxu0 0.0
  %3100 = vmatprep.subr.mxu0 0.0
  %3101 = vmatpush1.msra.mxu0 0.0
  %3102 = vmatprep.subr.mxu0 0.0
  %3103 = vmatpush1.msra.mxu0 0.0
  %3104 = vmatprep.subr.mxu0 0.0
  %3105 = vmatpush1.msra.mxu0 0.0
  %3106 = vmatprep.subr.mxu0 0.0
  %3107 = vmatpush1.msra.mxu0 0.0
  %3108 = vmatprep.subr.mxu0 0.0
  %3109 = vmatpush1.msra.mxu0 0.0
  %3110 = vmatprep.subr.mxu0 0.0
  %3111 = vmatpush1.msra.mxu0 0.0
  %3112 = vmatprep.subr.mxu0 0.0
  %3113 = vmatpush1.msra.mxu0 0.0
  %3114 = vmatprep.subr.mxu0 0.0
  %3115 = vmatpush1.msra.mxu0 0.0
  %3116 = vmatprep.subr.mxu0 0.0
  %3117 = vmatpush1.msra.mxu0 0.0
  %3118 = vmatprep.subr.mxu0 0.0
  %3119 = vmatpush1.msra.mxu0 0.0
  %3120 = vmatprep.mubr.f32.mxu0 0.0
  %3121 = vmatmul.mubr.f32.gmra.mrb[0].mxu0 %v3048
  %v3122 = vpop.f32.mrb[0].mxu0
  %v3123 = vadd.f32 0.0, %v3122
  %v3124 = vpop.f32.mrb[0].mxu0
  %3125 = vmatprep.mubr.f32.mxu0 0.0
  %3126 = vmatmul.mubr.f32.gmra.mrb[0].mxu0 %v3051
  %v3127 = vpop.f32.mrb[0].mxu0
  %v3128 = vadd.f32 0.0, %v3127
  %v3129 = vpop.f32.mrb[0].mxu0
  %3130 = vmatprep.mubr.f32.mxu0 0.0
  %3131 = vmatmul.mubr.f32.gmra.mrb[0].mxu0 %v3054
  %v3132 = vpop.f32.mrb[0].mxu0
  %v3133 = vadd.f32 0.0, %v3132
  %v3134 = vpop.f32.mrb[0].mxu0
  %3135 = vdwg.mxu0
  %v3136 = vadd.f32 %v3040, %v3123
  %v3137 = vadd.f32 %v3041, %v3128
  %v3138 = vadd.f32 %v3042, %v3133
  %v3139 = vld [vmem:[%s3 + $0x2e0] sm:$0xff]
  %v3140 = vld [vmem:[%s3 + $0x2e8] sm:$0xff]
  %v3141 = vld [vmem:[%s3 + $0x2f0] sm:$0xff]
  %v3142 = vld [vmem:[%s3 + $0x2f8] sm:$0xff]
  %v3144 = vsel %vm254, %v2845, 0
  %v3147 = vsel %vm254, %v2846, 0
  %v3150 = vsel %vm254, %v2847, 0
  %3152 = vmatprep.subr.mxu0 0.0
  %3153 = vmatpush1.msra.mxu0 %v3139
  %3154 = vmatprep.subr.mxu0 0.0
  %3155 = vmatpush1.msra.mxu0 %v3140
  %3156 = vmatprep.subr.mxu0 0.0
  %3157 = vmatpush1.msra.mxu0 %v3141
  %3158 = vmatprep.subr.mxu0 0.0
  %3159 = vmatpush1.msra.mxu0 %v3142
  %3160 = vmatprep.subr.mxu0 0.0
  %3161 = vmatpush1.msra.mxu0 0.0
  %3162 = vmatprep.subr.mxu0 0.0
  %3163 = vmatpush1.msra.mxu0 0.0
  %3164 = vmatprep.subr.mxu0 0.0
  %3165 = vmatpush1.msra.mxu0 0.0
  %3166 = vmatprep.subr.mxu0 0.0
  %3167 = vmatpush1.msra.mxu0 0.0
  %3168 = vmatprep.subr.mxu0 0.0
  %3169 = vmatpush1.msra.mxu0 0.0
  %3170 = vmatprep.subr.mxu0 0.0
  %3171 = vmatpush1.msra.mxu0 0.0
  %3172 = vmatprep.subr.mxu0 0.0
  %3173 = vmatpush1.msra.mxu0 0.0
  %3174 = vmatprep.subr.mxu0 0.0
  %3175 = vmatpush1.msra.mxu0 0.0
  %3176 = vmatprep.subr.mxu0 0.0
  %3177 = vmatpush1.msra.mxu0 0.0
  %3178 = vmatprep.subr.mxu0 0.0
  %3179 = vmatpush1.msra.mxu0 0.0
  %3180 = vmatprep.subr.mxu0 0.0
  %3181 = vmatpush1.msra.mxu0 0.0
  %3182 = vmatprep.subr.mxu0 0.0
  %3183 = vmatpush1.msra.mxu0 0.0
  %3184 = vmatprep.subr.mxu0 0.0
  %3185 = vmatpush1.msra.mxu0 0.0
  %3186 = vmatprep.subr.mxu0 0.0
  %3187 = vmatpush1.msra.mxu0 0.0
  %3188 = vmatprep.subr.mxu0 0.0
  %3189 = vmatpush1.msra.mxu0 0.0
  %3190 = vmatprep.subr.mxu0 0.0
  %3191 = vmatpush1.msra.mxu0 0.0
  %3192 = vmatprep.subr.mxu0 0.0
  %3193 = vmatpush1.msra.mxu0 0.0
  %3194 = vmatprep.subr.mxu0 0.0
  %3195 = vmatpush1.msra.mxu0 0.0
  %3196 = vmatprep.subr.mxu0 0.0
  %3197 = vmatpush1.msra.mxu0 0.0
  %3198 = vmatprep.subr.mxu0 0.0
  %3199 = vmatpush1.msra.mxu0 0.0
  %3200 = vmatprep.subr.mxu0 0.0
  %3201 = vmatpush1.msra.mxu0 0.0
  %3202 = vmatprep.subr.mxu0 0.0
  %3203 = vmatpush1.msra.mxu0 0.0
  %3204 = vmatprep.subr.mxu0 0.0
  %3205 = vmatpush1.msra.mxu0 0.0
  %3206 = vmatprep.subr.mxu0 0.0
  %3207 = vmatpush1.msra.mxu0 0.0
  %3208 = vmatprep.subr.mxu0 0.0
  %3209 = vmatpush1.msra.mxu0 0.0
  %3210 = vmatprep.subr.mxu0 0.0
  %3211 = vmatpush1.msra.mxu0 0.0
  %3212 = vmatprep.subr.mxu0 0.0
  %3213 = vmatpush1.msra.mxu0 0.0
  %3214 = vmatprep.subr.mxu0 0.0
  %3215 = vmatpush1.msra.mxu0 0.0
  %3216 = vmatprep.mubr.f32.mxu0 0.0
  %3217 = vmatmul.mubr.f32.gmra.mrb[0].mxu0 %v3144
  %v3218 = vpop.f32.mrb[0].mxu0
  %v3219 = vadd.f32 0.0, %v3218
  %v3220 = vpop.f32.mrb[0].mxu0
  %3221 = vmatprep.mubr.f32.mxu0 0.0
  %3222 = vmatmul.mubr.f32.gmra.mrb[0].mxu0 %v3147
  %v3223 = vpop.f32.mrb[0].mxu0
  %v3224 = vadd.f32 0.0, %v3223
  %v3225 = vpop.f32.mrb[0].mxu0
  %3226 = vmatprep.mubr.f32.mxu0 0.0
  %3227 = vmatmul.mubr.f32.gmra.mrb[0].mxu0 %v3150
  %v3228 = vpop.f32.mrb[0].mxu0
  %v3229 = vadd.f32 0.0, %v3228
  %v3230 = vpop.f32.mrb[0].mxu0
  %3231 = vdwg.mxu0
  %v3232 = vadd.f32 %v3136, %v3219
  %v3233 = vadd.f32 %v3137, %v3224
  %v3234 = vadd.f32 %v3138, %v3229
  %v3235 = vld [vmem:[%s3 + $0x300] sm:$0xff]
  %v3236 = vld [vmem:[%s3 + $0x308] sm:$0xff]
  %v3237 = vld [vmem:[%s3 + $0x310] sm:$0xff]
  %v3238 = vld [vmem:[%s3 + $0x318] sm:$0xff]
  %v3240 = vsel %vm254, %v2848, 0
  %v3243 = vsel %vm254, %v2849, 0
  %v3246 = vsel %vm254, %v2850, 0
  %3248 = vmatprep.subr.mxu0 0.0
  %3249 = vmatpush1.msra.mxu0 %v3235
  %3250 = vmatprep.subr.mxu0 0.0
  %3251 = vmatpush1.msra.mxu0 %v3236
  %3252 = vmatprep.subr.mxu0 0.0
  %3253 = vmatpush1.msra.mxu0 %v3237
  %3254 = vmatprep.subr.mxu0 0.0
  %3255 = vmatpush1.msra.mxu0 %v3238
  %3256 = vmatprep.subr.mxu0 0.0
  %3257 = vmatpush1.msra.mxu0 0.0
  %3258 = vmatprep.subr.mxu0 0.0
  %3259 = vmatpush1.msra.mxu0 0.0
  %3260 = vmatprep.subr.mxu0 0.0
  %3261 = vmatpush1.msra.mxu0 0.0
  %3262 = vmatprep.subr.mxu0 0.0
  %3263 = vmatpush1.msra.mxu0 0.0
  %3264 = vmatprep.subr.mxu0 0.0
  %3265 = vmatpush1.msra.mxu0 0.0
  %3266 = vmatprep.subr.mxu0 0.0
  %3267 = vmatpush1.msra.mxu0 0.0
  %3268 = vmatprep.subr.mxu0 0.0
  %3269 = vmatpush1.msra.mxu0 0.0
  %3270 = vmatprep.subr.mxu0 0.0
  %3271 = vmatpush1.msra.mxu0 0.0
  %3272 = vmatprep.subr.mxu0 0.0
  %3273 = vmatpush1.msra.mxu0 0.0
  %3274 = vmatprep.subr.mxu0 0.0
  %3275 = vmatpush1.msra.mxu0 0.0
  %3276 = vmatprep.subr.mxu0 0.0
  %3277 = vmatpush1.msra.mxu0 0.0
  %3278 = vmatprep.subr.mxu0 0.0
  %3279 = vmatpush1.msra.mxu0 0.0
  %3280 = vmatprep.subr.mxu0 0.0
  %3281 = vmatpush1.msra.mxu0 0.0
  %3282 = vmatprep.subr.mxu0 0.0
  %3283 = vmatpush1.msra.mxu0 0.0
  %3284 = vmatprep.subr.mxu0 0.0
  %3285 = vmatpush1.msra.mxu0 0.0
  %3286 = vmatprep.subr.mxu0 0.0
  %3287 = vmatpush1.msra.mxu0 0.0
  %3288 = vmatprep.subr.mxu0 0.0
  %3289 = vmatpush1.msra.mxu0 0.0
  %3290 = vmatprep.subr.mxu0 0.0
  %3291 = vmatpush1.msra.mxu0 0.0
  %3292 = vmatprep.subr.mxu0 0.0
  %3293 = vmatpush1.msra.mxu0 0.0
  %3294 = vmatprep.subr.mxu0 0.0
  %3295 = vmatpush1.msra.mxu0 0.0
  %3296 = vmatprep.subr.mxu0 0.0
  %3297 = vmatpush1.msra.mxu0 0.0
  %3298 = vmatprep.subr.mxu0 0.0
  %3299 = vmatpush1.msra.mxu0 0.0
  %3300 = vmatprep.subr.mxu0 0.0
  %3301 = vmatpush1.msra.mxu0 0.0
  %3302 = vmatprep.subr.mxu0 0.0
  %3303 = vmatpush1.msra.mxu0 0.0
  %3304 = vmatprep.subr.mxu0 0.0
  %3305 = vmatpush1.msra.mxu0 0.0
  %3306 = vmatprep.subr.mxu0 0.0
  %3307 = vmatpush1.msra.mxu0 0.0
  %3308 = vmatprep.subr.mxu0 0.0
  %3309 = vmatpush1.msra.mxu0 0.0
  %3310 = vmatprep.subr.mxu0 0.0
  %3311 = vmatpush1.msra.mxu0 0.0
  %3312 = vmatprep.mubr.f32.mxu0 0.0
  %3313 = vmatmul.mubr.f32.gmra.mrb[0].mxu0 %v3240
  %v3314 = vpop.f32.mrb[0].mxu0
  %v3315 = vadd.f32 0.0, %v3314
  %v3316 = vpop.f32.mrb[0].mxu0
  %3317 = vmatprep.mubr.f32.mxu0 0.0
  %3318 = vmatmul.mubr.f32.gmra.mrb[0].mxu0 %v3243
  %v3319 = vpop.f32.mrb[0].mxu0
  %v3320 = vadd.f32 0.0, %v3319
  %v3321 = vpop.f32.mrb[0].mxu0
  %3322 = vmatprep.mubr.f32.mxu0 0.0
  %3323 = vmatmul.mubr.f32.gmra.mrb[0].mxu0 %v3246
  %v3324 = vpop.f32.mrb[0].mxu0
  %v3325 = vadd.f32 0.0, %v3324
  %v3326 = vpop.f32.mrb[0].mxu0
  %3327 = vdwg.mxu0
  %v3328 = vadd.f32 %v3232, %v3315
  %v3329 = vadd.f32 %v3233, %v3320
  %v3330 = vadd.f32 %v3234, %v3325
  %v3331 = vmax.f32 %v3328, 0.0
  %v3332 = vmax.f32 %v3329, 0.0
  %v3333 = vmax.f32 %v3330, 0.0
  %vm3334 = vcmask 523264
  %3335 = vst.msk [vmem:[#allocation2] sm:$0xff] %vm3334, %v3331
  %3336 = vst.msk [vmem:[#allocation2 + $0x8] sm:$0xff] %vm3334, %v3332
  %3337 = vst.msk [vmem:[#allocation2 + $0x10] sm:$0xff] %vm3334, %v3333
  %v3338 = vld [vmem:[#allocation2] sm:$0x3]
  %vm3339 = vcmask 517120
  %3340 = vst.msk [vmem:[#allocation3] sm:$0x3] %vm3339, %v3338
  %v3341 = vld [vmem:[#allocation2 + $0x2] sm:$0x3]
  %v3344 = vunpack.c.l.s4 1983009808
  %v3345 = vunpack.c.0.s8 %v3344
  %v3346 = vlaneseq
  %v3347 = vshrl.u32 %v3346, 7
  %v3348 = vsub.s32 %v3345, %v3347
  %v3349 = vrot.slane %v3341, %v3348
  %3350 = vrot.lane.b32.xlu0 %v3349, 64
  %v3351 = vpop.permute.xlu0 %3350
  %vm3353 = vcmask 1041920
  %3354 = vst.msk [vmem:[#allocation3] sm:$0x3] %vm3353, %v3351
  %v3355 = vld [vmem:[#allocation2 + $0x4] sm:$0x3]
  %3356 = vst.msk [vmem:[#allocation3 + $0x2] sm:$0x3] %vm3339, %v3355
  %v3357 = vld [vmem:[#allocation2 + $0x6] sm:$0x3]
  %v3360 = vunpack.c.l.s4 1983009808
  %v3361 = vunpack.c.0.s8 %v3360
  %v3362 = vlaneseq
  %v3363 = vshrl.u32 %v3362, 7
  %v3364 = vsub.s32 %v3361, %v3363
  %v3365 = vrot.slane %v3357, %v3364
  %3366 = vrot.lane.b32.xlu0 %v3365, 64
  %v3367 = vpop.permute.xlu0 %3366
  %3369 = vst.msk [vmem:[#allocation3 + $0x2] sm:$0x3] %vm3353, %v3367
  %v3370 = vld [vmem:[#allocation2 + $0x8] sm:$0x3]
  %3371 = vst.msk [vmem:[#allocation3 + $0x4] sm:$0x3] %vm3339, %v3370
  %v3372 = vld [vmem:[#allocation2 + $0xa] sm:$0x3]
  %v3375 = vunpack.c.l.s4 1983009808
  %v3376 = vunpack.c.0.s8 %v3375
  %v3377 = vlaneseq
  %v3378 = vshrl.u32 %v3377, 7
  %v3379 = vsub.s32 %v3376, %v3378
  %v3380 = vrot.slane %v3372, %v3379
  %3381 = vrot.lane.b32.xlu0 %v3380, 64
  %v3382 = vpop.permute.xlu0 %3381
  %3384 = vst.msk [vmem:[#allocation3 + $0x4] sm:$0x3] %vm3353, %v3382
  %v3385 = vld [vmem:[#allocation2 + $0xc] sm:$0x3]
  %3386 = vst.msk [vmem:[#allocation3 + $0x6] sm:$0x3] %vm3339, %v3385
  %v3387 = vld [vmem:[#allocation2 + $0xe] sm:$0x3]
  %v3390 = vunpack.c.l.s4 1983009808
  %v3391 = vunpack.c.0.s8 %v3390
  %v3392 = vlaneseq
  %v3393 = vshrl.u32 %v3392, 7
  %v3394 = vsub.s32 %v3391, %v3393
  %v3395 = vrot.slane %v3387, %v3394
  %3396 = vrot.lane.b32.xlu0 %v3395, 64
  %v3397 = vpop.permute.xlu0 %3396
  %3399 = vst.msk [vmem:[#allocation3 + $0x6] sm:$0x3] %vm3353, %v3397
  %v3400 = vld [vmem:[#allocation2 + $0x10] sm:$0x3]
  %3401 = vst.msk [vmem:[#allocation3 + $0x8] sm:$0x3] %vm3339, %v3400
  %v3402 = vld [vmem:[#allocation3] sm:$0xff]
  %v3403 = vld [vmem:[#allocation3 + $0x8] sm:$0x3]
  %v3404 = vld [vmem:[%s5] sm:$0xff]
  %v3405 = vld [vmem:[%s5 + $0x8] sm:$0xff]
  %v3406 = vld [vmem:[%s5 + $0x10] sm:$0xff]
  %v3407 = vld [vmem:[%s5 + $0x18] sm:$0xff]
  %v3408 = vld [vmem:[%s5 + $0x20] sm:$0xff]
  %v3409 = vld [vmem:[%s5 + $0x28] sm:$0xff]
  %v3410 = vld [vmem:[%s5 + $0x30] sm:$0xff]
  %v3411 = vld [vmem:[%s5 + $0x38] sm:$0xff]
  %v3412 = vld [vmem:[%s5 + $0x40] sm:$0xff]
  %v3413 = vld [vmem:[%s5 + $0x48] sm:$0xff]
  %v3414 = vld [vmem:[%s5 + $0x50] sm:$0xff]
  %v3415 = vld [vmem:[%s5 + $0x58] sm:$0xff]
  %v3416 = vld [vmem:[%s5 + $0x60] sm:$0xff]
  %v3417 = vld [vmem:[%s5 + $0x68] sm:$0xff]
  %v3418 = vld [vmem:[%s5 + $0x70] sm:$0xff]
  %v3419 = vld [vmem:[%s5 + $0x78] sm:$0xff]
  %v3420 = vld [vmem:[%s5 + $0x80] sm:$0xff]
  %v3421 = vld [vmem:[%s5 + $0x88] sm:$0xff]
  %v3422 = vld [vmem:[%s5 + $0x90] sm:$0xff]
  %v3423 = vld [vmem:[%s5 + $0x98] sm:$0xff]
  %v3424 = vld [vmem:[%s5 + $0xa0] sm:$0xff]
  %v3425 = vld [vmem:[%s5 + $0xa8] sm:$0xff]
  %v3426 = vld [vmem:[%s5 + $0xb0] sm:$0xff]
  %v3427 = vld [vmem:[%s5 + $0xb8] sm:$0xff]
  %v3428 = vld [vmem:[%s5 + $0xc0] sm:$0xff]
  %v3429 = vld [vmem:[%s5 + $0xc8] sm:$0xff]
  %v3430 = vld [vmem:[%s5 + $0xd0] sm:$0xff]
  %v3431 = vld [vmem:[%s5 + $0xd8] sm:$0xff]
  %v3432 = vld [vmem:[%s5 + $0xe0] sm:$0xff]
  %v3433 = vld [vmem:[%s5 + $0xe8] sm:$0xff]
  %v3434 = vld [vmem:[%s5 + $0xf0] sm:$0xff]
  %v3435 = vld [vmem:[%s5 + $0xf8] sm:$0xff]
  %v3436 = vld [vmem:[%s5 + $0x100] sm:$0xff]
  %v3437 = vld [vmem:[%s5 + $0x108] sm:$0xff]
  %v3438 = vld [vmem:[%s5 + $0x110] sm:$0xff]
  %v3439 = vld [vmem:[%s5 + $0x118] sm:$0xff]
  %v3440 = vld [vmem:[%s5 + $0x120] sm:$0xff]
  %v3441 = vld [vmem:[%s5 + $0x128] sm:$0xff]
  %v3442 = vld [vmem:[%s5 + $0x130] sm:$0xff]
  %v3443 = vld [vmem:[%s5 + $0x138] sm:$0xff]
  %v3444 = vld [vmem:[%s5 + $0x140] sm:$0xff]
  %v3445 = vld [vmem:[%s5 + $0x148] sm:$0xff]
  %v3446 = vld [vmem:[%s5 + $0x150] sm:$0xff]
  %v3447 = vld [vmem:[%s5 + $0x158] sm:$0xff]
  %v3448 = vld [vmem:[%s5 + $0x160] sm:$0xff]
  %v3449 = vld [vmem:[%s5 + $0x168] sm:$0xff]
  %v3450 = vld [vmem:[%s5 + $0x170] sm:$0xff]
  %v3451 = vld [vmem:[%s5 + $0x178] sm:$0xff]
  %v3452 = vld [vmem:[%s5 + $0x180] sm:$0xff]
  %v3453 = vld [vmem:[%s5 + $0x188] sm:$0xff]
  %v3454 = vld [vmem:[%s5 + $0x190] sm:$0xff]
  %v3455 = vld [vmem:[%s5 + $0x198] sm:$0xff]
  %v3456 = vld [vmem:[%s5 + $0x1a0] sm:$0xff]
  %v3457 = vld [vmem:[%s5 + $0x1a8] sm:$0xff]
  %v3458 = vld [vmem:[%s5 + $0x1b0] sm:$0xff]
  %v3459 = vld [vmem:[%s5 + $0x1b8] sm:$0xff]
  %v3460 = vld [vmem:[%s5 + $0x1c0] sm:$0xff]
  %v3461 = vld [vmem:[%s5 + $0x1c8] sm:$0xff]
  %v3462 = vld [vmem:[%s5 + $0x1d0] sm:$0xff]
  %v3463 = vld [vmem:[%s5 + $0x1d8] sm:$0xff]
  %v3464 = vld [vmem:[%s5 + $0x1e0] sm:$0xff]
  %v3465 = vld [vmem:[%s5 + $0x1e8] sm:$0xff]
  %v3466 = vld [vmem:[%s5 + $0x1f0] sm:$0xff]
  %v3467 = vld [vmem:[%s5 + $0x1f8] sm:$0xff]
  %v3468 = vld [vmem:[%s5 + $0x200] sm:$0xff]
  %v3469 = vld [vmem:[%s5 + $0x208] sm:$0xff]
  %v3470 = vld [vmem:[%s5 + $0x210] sm:$0xff]
  %v3471 = vld [vmem:[%s5 + $0x218] sm:$0xff]
  %v3472 = vld [vmem:[%s5 + $0x220] sm:$0xff]
  %v3473 = vld [vmem:[%s5 + $0x228] sm:$0xff]
  %v3474 = vld [vmem:[%s5 + $0x230] sm:$0xff]
  %v3475 = vld [vmem:[%s5 + $0x238] sm:$0xff]
  %v3476 = vld [vmem:[%s6] sm:$0x1]
  %v3478 = vlaneseq
  %v3479 = vshrl.u32 %v3478, 7
  %v3480 = vsub.s32 0, %v3479
  %v3481 = vrot.slane %v3476, %v3480
  %v3485 = vcombine.high %v3402, %v3402
  %v3487 = vunpack.c.l.s4 1983009808
  %v3488 = vunpack.c.0.s8 %v3487
  %v3489 = vlaneseq
  %v3490 = vshrl.u32 %v3489, 7
  %v3491 = vsub.s32 %v3488, %v3490
  %v3492 = vrot.slane %v3402, %v3491
  %v3494 = vunpack.c.l.s4 1983009808
  %v3495 = vunpack.c.0.s8 %v3494
  %v3496 = vlaneseq
  %v3497 = vshrl.u32 %v3496, 7
  %v3498 = vsub.s32 %v3495, %v3497
  %v3499 = vrot.slane %v3485, %v3498
  %v3500 = vcombine.high %v3492, %v3492
  %v3501 = vcombine.high %v3499, %v3499
  %v3503 = vunpack.c.l.s4 1983009808
  %v3504 = vunpack.c.0.s8 %v3503
  %v3505 = vlaneseq
  %v3506 = vshrl.u32 %v3505, 7
  %v3507 = vsub.s32 %v3504, %v3506
  %v3508 = vrot.slane %v3403, %v3507
  %v3513 = vsel %vm3334, %v3508, 0
  %3515 = vmatprep.subr.mxu0 0.0
  %3516 = vmatpush1.msra.mxu0 %v3404
  %3517 = vmatprep.subr.mxu0 0.0
  %3518 = vmatpush1.msra.mxu0 %v3405
  %3519 = vmatprep.subr.mxu0 0.0
  %3520 = vmatpush1.msra.mxu0 %v3406
  %3521 = vmatprep.subr.mxu0 0.0
  %3522 = vmatpush1.msra.mxu0 %v3407
  %3523 = vmatprep.subr.mxu0 0.0
  %3524 = vmatpush1.msra.mxu0 %v3408
  %3525 = vmatprep.subr.mxu0 0.0
  %3526 = vmatpush1.msra.mxu0 %v3409
  %3527 = vmatprep.subr.mxu0 0.0
  %3528 = vmatpush1.msra.mxu0 %v3410
  %3529 = vmatprep.subr.mxu0 0.0
  %3530 = vmatpush1.msra.mxu0 %v3411
  %3531 = vmatprep.subr.mxu0 0.0
  %3532 = vmatpush1.msra.mxu0 %v3412
  %3533 = vmatprep.subr.mxu0 0.0
  %3534 = vmatpush1.msra.mxu0 %v3413
  %3535 = vmatprep.subr.mxu0 0.0
  %3536 = vmatpush1.msra.mxu0 %v3414
  %3537 = vmatprep.subr.mxu0 0.0
  %3538 = vmatpush1.msra.mxu0 %v3415
  %3539 = vmatprep.subr.mxu0 0.0
  %3540 = vmatpush1.msra.mxu0 %v3416
  %3541 = vmatprep.subr.mxu0 0.0
  %3542 = vmatpush1.msra.mxu0 %v3417
  %3543 = vmatprep.subr.mxu0 0.0
  %3544 = vmatpush1.msra.mxu0 %v3418
  %3545 = vmatprep.subr.mxu0 0.0
  %3546 = vmatpush1.msra.mxu0 %v3419
  %3547 = vmatprep.subr.mxu0 0.0
  %3548 = vmatpush1.msra.mxu0 %v3420
  %3549 = vmatprep.subr.mxu0 0.0
  %3550 = vmatpush1.msra.mxu0 %v3421
  %3551 = vmatprep.subr.mxu0 0.0
  %3552 = vmatpush1.msra.mxu0 %v3422
  %3553 = vmatprep.subr.mxu0 0.0
  %3554 = vmatpush1.msra.mxu0 %v3423
  %3555 = vmatprep.subr.mxu0 0.0
  %3556 = vmatpush1.msra.mxu0 %v3424
  %3557 = vmatprep.subr.mxu0 0.0
  %3558 = vmatpush1.msra.mxu0 %v3425
  %3559 = vmatprep.subr.mxu0 0.0
  %3560 = vmatpush1.msra.mxu0 %v3426
  %3561 = vmatprep.subr.mxu0 0.0
  %3562 = vmatpush1.msra.mxu0 %v3427
  %3563 = vmatprep.subr.mxu0 0.0
  %3564 = vmatpush1.msra.mxu0 %v3428
  %3565 = vmatprep.subr.mxu0 0.0
  %3566 = vmatpush1.msra.mxu0 %v3429
  %3567 = vmatprep.subr.mxu0 0.0
  %3568 = vmatpush1.msra.mxu0 %v3430
  %3569 = vmatprep.subr.mxu0 0.0
  %3570 = vmatpush1.msra.mxu0 %v3431
  %3571 = vmatprep.subr.mxu0 0.0
  %3572 = vmatpush1.msra.mxu0 %v3432
  %3573 = vmatprep.subr.mxu0 0.0
  %3574 = vmatpush1.msra.mxu0 %v3433
  %3575 = vmatprep.subr.mxu0 0.0
  %3576 = vmatpush1.msra.mxu0 %v3434
  %3577 = vmatprep.subr.mxu0 0.0
  %3578 = vmatpush1.msra.mxu0 %v3435
  %3579 = vmatprep.mubr.f32.mxu0 %v3500
  %3580 = vmatmul.mubr.f32.gmra.mrb[0].mxu0 %v3492
  %v3581 = vpop.f32.mrb[0].mxu0
  %v3582 = vadd.f32 %v3481, %v3581
  %v3583 = vpop.f32.mrb[0].mxu0
  %3584 = vdwg.mxu0
  %3585 = vmatprep.subr.mxu0 0.0
  %3586 = vmatpush1.msra.mxu0 %v3436
  %3587 = vmatprep.subr.mxu0 0.0
  %3588 = vmatpush1.msra.mxu0 %v3437
  %3589 = vmatprep.subr.mxu0 0.0
  %3590 = vmatpush1.msra.mxu0 %v3438
  %3591 = vmatprep.subr.mxu0 0.0
  %3592 = vmatpush1.msra.mxu0 %v3439
  %3593 = vmatprep.subr.mxu0 0.0
  %3594 = vmatpush1.msra.mxu0 %v3440
  %3595 = vmatprep.subr.mxu0 0.0
  %3596 = vmatpush1.msra.mxu0 %v3441
  %3597 = vmatprep.subr.mxu0 0.0
  %3598 = vmatpush1.msra.mxu0 %v3442
  %3599 = vmatprep.subr.mxu0 0.0
  %3600 = vmatpush1.msra.mxu0 %v3443
  %3601 = vmatprep.subr.mxu0 0.0
  %3602 = vmatpush1.msra.mxu0 %v3444
  %3603 = vmatprep.subr.mxu0 0.0
  %3604 = vmatpush1.msra.mxu0 %v3445
  %3605 = vmatprep.subr.mxu0 0.0
  %3606 = vmatpush1.msra.mxu0 %v3446
  %3607 = vmatprep.subr.mxu0 0.0
  %3608 = vmatpush1.msra.mxu0 %v3447
  %3609 = vmatprep.subr.mxu0 0.0
  %3610 = vmatpush1.msra.mxu0 %v3448
  %3611 = vmatprep.subr.mxu0 0.0
  %3612 = vmatpush1.msra.mxu0 %v3449
  %3613 = vmatprep.subr.mxu0 0.0
  %3614 = vmatpush1.msra.mxu0 %v3450
  %3615 = vmatprep.subr.mxu0 0.0
  %3616 = vmatpush1.msra.mxu0 %v3451
  %3617 = vmatprep.subr.mxu0 0.0
  %3618 = vmatpush1.msra.mxu0 %v3452
  %3619 = vmatprep.subr.mxu0 0.0
  %3620 = vmatpush1.msra.mxu0 %v3453
  %3621 = vmatprep.subr.mxu0 0.0
  %3622 = vmatpush1.msra.mxu0 %v3454
  %3623 = vmatprep.subr.mxu0 0.0
  %3624 = vmatpush1.msra.mxu0 %v3455
  %3625 = vmatprep.subr.mxu0 0.0
  %3626 = vmatpush1.msra.mxu0 %v3456
  %3627 = vmatprep.subr.mxu0 0.0
  %3628 = vmatpush1.msra.mxu0 %v3457
  %3629 = vmatprep.subr.mxu0 0.0
  %3630 = vmatpush1.msra.mxu0 %v3458
  %3631 = vmatprep.subr.mxu0 0.0
  %3632 = vmatpush1.msra.mxu0 %v3459
  %3633 = vmatprep.subr.mxu0 0.0
  %3634 = vmatpush1.msra.mxu0 %v3460
  %3635 = vmatprep.subr.mxu0 0.0
  %3636 = vmatpush1.msra.mxu0 %v3461
  %3637 = vmatprep.subr.mxu0 0.0
  %3638 = vmatpush1.msra.mxu0 %v3462
  %3639 = vmatprep.subr.mxu0 0.0
  %3640 = vmatpush1.msra.mxu0 %v3463
  %3641 = vmatprep.subr.mxu0 0.0
  %3642 = vmatpush1.msra.mxu0 %v3464
  %3643 = vmatprep.subr.mxu0 0.0
  %3644 = vmatpush1.msra.mxu0 %v3465
  %3645 = vmatprep.subr.mxu0 0.0
  %3646 = vmatpush1.msra.mxu0 %v3466
  %3647 = vmatprep.subr.mxu0 0.0
  %3648 = vmatpush1.msra.mxu0 %v3467
  %3649 = vmatprep.mubr.f32.mxu0 %v3501
  %3650 = vmatmul.mubr.f32.gmra.mrb[0].mxu0 %v3499
  %v3651 = vpop.f32.mrb[0].mxu0
  %v3652 = vadd.f32 %v3582, %v3651
  %v3653 = vpop.f32.mrb[0].mxu0
  %3654 = vdwg.mxu0
  %3655 = vmatprep.subr.mxu0 0.0
  %3656 = vmatpush1.msra.mxu0 %v3468
  %3657 = vmatprep.subr.mxu0 0.0
  %3658 = vmatpush1.msra.mxu0 %v3469
  %3659 = vmatprep.subr.mxu0 0.0
  %3660 = vmatpush1.msra.mxu0 %v3470
  %3661 = vmatprep.subr.mxu0 0.0
  %3662 = vmatpush1.msra.mxu0 %v3471
  %3663 = vmatprep.subr.mxu0 0.0
  %3664 = vmatpush1.msra.mxu0 %v3472
  %3665 = vmatprep.subr.mxu0 0.0
  %3666 = vmatpush1.msra.mxu0 %v3473
  %3667 = vmatprep.subr.mxu0 0.0
  %3668 = vmatpush1.msra.mxu0 %v3474
  %3669 = vmatprep.subr.mxu0 0.0
  %3670 = vmatpush1.msra.mxu0 %v3475
  %3671 = vmatprep.subr.mxu0 0.0
  %3672 = vmatpush1.msra.mxu0 0.0
  %3673 = vmatprep.subr.mxu0 0.0
  %3674 = vmatpush1.msra.mxu0 0.0
  %3675 = vmatprep.subr.mxu0 0.0
  %3676 = vmatpush1.msra.mxu0 0.0
  %3677 = vmatprep.subr.mxu0 0.0
  %3678 = vmatpush1.msra.mxu0 0.0
  %3679 = vmatprep.subr.mxu0 0.0
  %3680 = vmatpush1.msra.mxu0 0.0
  %3681 = vmatprep.subr.mxu0 0.0
  %3682 = vmatpush1.msra.mxu0 0.0
  %3683 = vmatprep.subr.mxu0 0.0
  %3684 = vmatpush1.msra.mxu0 0.0
  %3685 = vmatprep.subr.mxu0 0.0
  %3686 = vmatpush1.msra.mxu0 0.0
  %3687 = vmatprep.subr.mxu0 0.0
  %3688 = vmatpush1.msra.mxu0 0.0
  %3689 = vmatprep.subr.mxu0 0.0
  %3690 = vmatpush1.msra.mxu0 0.0
  %3691 = vmatprep.subr.mxu0 0.0
  %3692 = vmatpush1.msra.mxu0 0.0
  %3693 = vmatprep.subr.mxu0 0.0
  %3694 = vmatpush1.msra.mxu0 0.0
  %3695 = vmatprep.subr.mxu0 0.0
  %3696 = vmatpush1.msra.mxu0 0.0
  %3697 = vmatprep.subr.mxu0 0.0
  %3698 = vmatpush1.msra.mxu0 0.0
  %3699 = vmatprep.subr.mxu0 0.0
  %3700 = vmatpush1.msra.mxu0 0.0
  %3701 = vmatprep.subr.mxu0 0.0
  %3702 = vmatpush1.msra.mxu0 0.0
  %3703 = vmatprep.subr.mxu0 0.0
  %3704 = vmatpush1.msra.mxu0 0.0
  %3705 = vmatprep.subr.mxu0 0.0
  %3706 = vmatpush1.msra.mxu0 0.0
  %3707 = vmatprep.subr.mxu0 0.0
  %3708 = vmatpush1.msra.mxu0 0.0
  %3709 = vmatprep.subr.mxu0 0.0
  %3710 = vmatpush1.msra.mxu0 0.0
  %3711 = vmatprep.subr.mxu0 0.0
  %3712 = vmatpush1.msra.mxu0 0.0
  %3713 = vmatprep.subr.mxu0 0.0
  %3714 = vmatpush1.msra.mxu0 0.0
  %3715 = vmatprep.subr.mxu0 0.0
  %3716 = vmatpush1.msra.mxu0 0.0
  %3717 = vmatprep.subr.mxu0 0.0
  %3718 = vmatpush1.msra.mxu0 0.0
  %3719 = vmatprep.mubr.f32.mxu0 0.0
  %3720 = vmatmul.mubr.f32.gmra.mrb[0].mxu0 %v3513
  %v3721 = vpop.f32.mrb[0].mxu0
  %v3722 = vadd.f32 %v3652, %v3721
  %v3723 = vpop.f32.mrb[0].mxu0
  %3724 = vdwg.mxu0
  %v3725 = vmax.f32 %v3722, 0.0
  %v3726 = vld [vmem:[%s7] sm:$0xff]
  %v3727 = vld [vmem:[%s7 + $0x8] sm:$0xff]
  %v3728 = vld [vmem:[%s7 + $0x10] sm:$0xff]
  %v3729 = vld [vmem:[%s7 + $0x18] sm:$0xff]
  %v3730 = vld [vmem:[%s7 + $0x20] sm:$0xff]
  %v3731 = vld [vmem:[%s7 + $0x28] sm:$0xff]
  %v3732 = vld [vmem:[%s7 + $0x30] sm:$0xff]
  %v3733 = vld [vmem:[%s7 + $0x38] sm:$0xff]
  %v3734 = vld [vmem:[%s7 + $0x40] sm:$0xff]
  %v3735 = vld [vmem:[%s7 + $0x48] sm:$0xff]
  %v3736 = vld [vmem:[%s7 + $0x50] sm:$0xff]
  %v3737 = vld [vmem:[%s7 + $0x58] sm:$0xff]
  %v3738 = vld [vmem:[%s7 + $0x60] sm:$0xff]
  %v3739 = vld [vmem:[%s7 + $0x68] sm:$0xff]
  %v3740 = vld [vmem:[%s7 + $0x70] sm:$0xff]
  %v3741 = vld [vmem:[%s7 + $0x78] sm:$0xff]
  %v3742 = vld [vmem:[%s8] sm:$0x1]
  %v3744 = vlaneseq
  %v3745 = vshrl.u32 %v3744, 7
  %v3746 = vsub.s32 0, %v3745
  %v3747 = vrot.slane %v3742, %v3746
  %3749 = vmatprep.subr.mxu0 0.0
  %3750 = vmatpush1.msra.mxu0 %v3726
  %3751 = vmatprep.subr.mxu0 0.0
  %3752 = vmatpush1.msra.mxu0 %v3727
  %3753 = vmatprep.subr.mxu0 0.0
  %3754 = vmatpush1.msra.mxu0 %v3728
  %3755 = vmatprep.subr.mxu0 0.0
  %3756 = vmatpush1.msra.mxu0 %v3729
  %3757 = vmatprep.subr.mxu0 0.0
  %3758 = vmatpush1.msra.mxu0 %v3730
  %3759 = vmatprep.subr.mxu0 0.0
  %3760 = vmatpush1.msra.mxu0 %v3731
  %3761 = vmatprep.subr.mxu0 0.0
  %3762 = vmatpush1.msra.mxu0 %v3732
  %3763 = vmatprep.subr.mxu0 0.0
  %3764 = vmatpush1.msra.mxu0 %v3733
  %3765 = vmatprep.subr.mxu0 0.0
  %3766 = vmatpush1.msra.mxu0 %v3734
  %3767 = vmatprep.subr.mxu0 0.0
  %3768 = vmatpush1.msra.mxu0 %v3735
  %3769 = vmatprep.subr.mxu0 0.0
  %3770 = vmatpush1.msra.mxu0 %v3736
  %3771 = vmatprep.subr.mxu0 0.0
  %3772 = vmatpush1.msra.mxu0 %v3737
  %3773 = vmatprep.subr.mxu0 0.0
  %3774 = vmatpush1.msra.mxu0 %v3738
  %3775 = vmatprep.subr.mxu0 0.0
  %3776 = vmatpush1.msra.mxu0 %v3739
  %3777 = vmatprep.subr.mxu0 0.0
  %3778 = vmatpush1.msra.mxu0 %v3740
  %3779 = vmatprep.subr.mxu0 0.0
  %3780 = vmatpush1.msra.mxu0 %v3741
  %3781 = vmatprep.subr.mxu0 0.0
  %3782 = vmatpush1.msra.mxu0 0.0
  %3783 = vmatprep.subr.mxu0 0.0
  %3784 = vmatpush1.msra.mxu0 0.0
  %3785 = vmatprep.subr.mxu0 0.0
  %3786 = vmatpush1.msra.mxu0 0.0
  %3787 = vmatprep.subr.mxu0 0.0
  %3788 = vmatpush1.msra.mxu0 0.0
  %3789 = vmatprep.subr.mxu0 0.0
  %3790 = vmatpush1.msra.mxu0 0.0
  %3791 = vmatprep.subr.mxu0 0.0
  %3792 = vmatpush1.msra.mxu0 0.0
  %3793 = vmatprep.subr.mxu0 0.0
  %3794 = vmatpush1.msra.mxu0 0.0
  %3795 = vmatprep.subr.mxu0 0.0
  %3796 = vmatpush1.msra.mxu0 0.0
  %3797 = vmatprep.subr.mxu0 0.0
  %3798 = vmatpush1.msra.mxu0 0.0
  %3799 = vmatprep.subr.mxu0 0.0
  %3800 = vmatpush1.msra.mxu0 0.0
  %3801 = vmatprep.subr.mxu0 0.0
  %3802 = vmatpush1.msra.mxu0 0.0
  %3803 = vmatprep.subr.mxu0 0.0
  %3804 = vmatpush1.msra.mxu0 0.0
  %3805 = vmatprep.subr.mxu0 0.0
  %3806 = vmatpush1.msra.mxu0 0.0
  %3807 = vmatprep.subr.mxu0 0.0
  %3808 = vmatpush1.msra.mxu0 0.0
  %3809 = vmatprep.subr.mxu0 0.0
  %3810 = vmatpush1.msra.mxu0 0.0
  %3811 = vmatprep.subr.mxu0 0.0
  %3812 = vmatpush1.msra.mxu0 0.0
  %3813 = vmatprep.mubr.f32.mxu0 0.0
  %3814 = vmatmul.mubr.f32.gmra.mrb[0].mxu0 %v3725
  %v3815 = vpop.f32.mrb[0].mxu0
  %v3816 = vadd.f32 %v3747, %v3815
  %v3817 = vpop.f32.mrb[0].mxu0
  %3818 = vdwg.mxu0
  %v3819 = vld [vmem:[%s9] sm:$0xff]
  %v3820 = vld [vmem:[%s9 + $0x8] sm:$0xff]
  %v3821 = vld [vmem:[%s9 + $0x10] sm:$0xff]
  %v3822 = vld [vmem:[%s9 + $0x18] sm:$0xff]
  %v3823 = vld [vmem:[%s9 + $0x20] sm:$0xff]
  %v3824 = vld [vmem:[%s9 + $0x28] sm:$0xff]
  %v3825 = vld [vmem:[%s9 + $0x30] sm:$0xff]
  %v3826 = vld [vmem:[%s9 + $0x38] sm:$0xff]
  %v3827 = vld [vmem:[%s9 + $0x40] sm:$0xff]
  %v3828 = vld [vmem:[%s9 + $0x48] sm:$0xff]
  %v3829 = vld [vmem:[%s9 + $0x50] sm:$0xff]
  %v3830 = vld [vmem:[%s9 + $0x58] sm:$0xff]
  %v3831 = vld [vmem:[%s9 + $0x60] sm:$0xff]
  %v3832 = vld [vmem:[%s9 + $0x68] sm:$0xff]
  %v3833 = vld [vmem:[%s9 + $0x70] sm:$0xff]
  %v3834 = vld [vmem:[%s9 + $0x78] sm:$0xff]
  %v3835 = vld [vmem:[%s9 + $0x80] sm:$0xff]
  %v3836 = vld [vmem:[%s9 + $0x88] sm:$0xff]
  %v3837 = vld [vmem:[%s9 + $0x90] sm:$0xff]
  %v3838 = vld [vmem:[%s9 + $0x98] sm:$0xff]
  %v3839 = vld [vmem:[%s9 + $0xa0] sm:$0xff]
  %v3840 = vld [vmem:[%s9 + $0xa8] sm:$0xff]
  %v3841 = vld [vmem:[%s9 + $0xb0] sm:$0xff]
  %v3842 = vld [vmem:[%s9 + $0xb8] sm:$0xff]
  %v3843 = vld [vmem:[%s9 + $0xc0] sm:$0xff]
  %v3844 = vld [vmem:[%s9 + $0xc8] sm:$0xff]
  %v3845 = vld [vmem:[%s9 + $0xd0] sm:$0xff]
  %v3846 = vld [vmem:[%s9 + $0xd8] sm:$0xff]
  %v3847 = vld [vmem:[%s9 + $0xe0] sm:$0xff]
  %v3848 = vld [vmem:[%s9 + $0xe8] sm:$0xff]
  %v3849 = vld [vmem:[%s9 + $0xf0] sm:$0xff]
  %v3850 = vld [vmem:[%s9 + $0xf8] sm:$0xff]
  %v3851 = vld [vmem:[%s10] sm:$0x3]
  %v3853 = vlaneseq
  %v3854 = vshrl.u32 %v3853, 7
  %v3855 = vsub.s32 0, %v3854
  %v3856 = vrot.slane %v3851, %v3855
  %v3857 = vlaneseq
  %v3858 = vshrl.u32 %v3857, 7
  %v3859 = vsub.s32 1, %v3858
  %v3860 = vrot.slane %v3851, %v3859
  %3863 = vmatprep.subr.mxu0 %v3820
  %3864 = vmatpush1.msra.mxu0 %v3819
  %3865 = vmatprep.subr.mxu0 %v3822
  %3866 = vmatpush1.msra.mxu0 %v3821
  %3867 = vmatprep.subr.mxu0 %v3824
  %3868 = vmatpush1.msra.mxu0 %v3823
  %3869 = vmatprep.subr.mxu0 %v3826
  %3870 = vmatpush1.msra.mxu0 %v3825
  %3871 = vmatprep.subr.mxu0 %v3828
  %3872 = vmatpush1.msra.mxu0 %v3827
  %3873 = vmatprep.subr.mxu0 %v3830
  %3874 = vmatpush1.msra.mxu0 %v3829
  %3875 = vmatprep.subr.mxu0 %v3832
  %3876 = vmatpush1.msra.mxu0 %v3831
  %3877 = vmatprep.subr.mxu0 %v3834
  %3878 = vmatpush1.msra.mxu0 %v3833
  %3879 = vmatprep.subr.mxu0 %v3836
  %3880 = vmatpush1.msra.mxu0 %v3835
  %3881 = vmatprep.subr.mxu0 %v3838
  %3882 = vmatpush1.msra.mxu0 %v3837
  %3883 = vmatprep.subr.mxu0 %v3840
  %3884 = vmatpush1.msra.mxu0 %v3839
  %3885 = vmatprep.subr.mxu0 %v3842
  %3886 = vmatpush1.msra.mxu0 %v3841
  %3887 = vmatprep.subr.mxu0 %v3844
  %3888 = vmatpush1.msra.mxu0 %v3843
  %3889 = vmatprep.subr.mxu0 %v3846
  %3890 = vmatpush1.msra.mxu0 %v3845
  %3891 = vmatprep.subr.mxu0 %v3848
  %3892 = vmatpush1.msra.mxu0 %v3847
  %3893 = vmatprep.subr.mxu0 %v3850
  %3894 = vmatpush1.msra.mxu0 %v3849
  %3895 = vmatprep.subr.mxu0 0.0
  %3896 = vmatpush1.msra.mxu0 0.0
  %3897 = vmatprep.subr.mxu0 0.0
  %3898 = vmatpush1.msra.mxu0 0.0
  %3899 = vmatprep.subr.mxu0 0.0
  %3900 = vmatpush1.msra.mxu0 0.0
  %3901 = vmatprep.subr.mxu0 0.0
  %3902 = vmatpush1.msra.mxu0 0.0
  %3903 = vmatprep.subr.mxu0 0.0
  %3904 = vmatpush1.msra.mxu0 0.0
  %3905 = vmatprep.subr.mxu0 0.0
  %3906 = vmatpush1.msra.mxu0 0.0
  %3907 = vmatprep.subr.mxu0 0.0
  %3908 = vmatpush1.msra.mxu0 0.0
  %3909 = vmatprep.subr.mxu0 0.0
  %3910 = vmatpush1.msra.mxu0 0.0
  %3911 = vmatprep.subr.mxu0 0.0
  %3912 = vmatpush1.msra.mxu0 0.0
  %3913 = vmatprep.subr.mxu0 0.0
  %3914 = vmatpush1.msra.mxu0 0.0
  %3915 = vmatprep.subr.mxu0 0.0
  %3916 = vmatpush1.msra.mxu0 0.0
  %3917 = vmatprep.subr.mxu0 0.0
  %3918 = vmatpush1.msra.mxu0 0.0
  %3919 = vmatprep.subr.mxu0 0.0
  %3920 = vmatpush1.msra.mxu0 0.0
  %3921 = vmatprep.subr.mxu0 0.0
  %3922 = vmatpush1.msra.mxu0 0.0
  %3923 = vmatprep.subr.mxu0 0.0
  %3924 = vmatpush1.msra.mxu0 0.0
  %3925 = vmatprep.subr.mxu0 0.0
  %3926 = vmatpush1.msra.mxu0 0.0
  %3927 = vmatprep.mubr.f32.mxu0 0.0
  %3928 = vmatmul.mubr.f32.gmra.mrb[0].mxu0 %v3725
  %v3929 = vpop.f32.mrb[0].mxu0
  %v3930 = vadd.f32 %v3856, %v3929
  %v3931 = vpop.f32.mrb[0].mxu0
  %v3932 = vadd.f32 %v3860, %v3931
  %3933 = vdwg.mxu0
  %v3934 = vtanh.pop %v3816
  %v3935 = vmul.f32 %v3934, 10.0
  %v3936 = vld [vmem:[%s11] sm:$0x1]
  %v3938 = vlaneseq
  %v3939 = vshrl.u32 %v3938, 7
  %v3940 = vsub.s32 0, %v3939
  %v3941 = vrot.slane %v3936, %v3940
  %v3943 = vadd.f32 %v3935, %v3941
  %v3944 = vtanh.pop %v3930
  %v3945 = vtanh.pop %v3932
  %v3946 = vmul.f32 %v3944, 10.0
  %v3947 = vmul.f32 %v3945, 10.0
  %v3948 = vld [vmem:[%s12] sm:$0x3]
  %v3950 = vlaneseq
  %v3951 = vshrl.u32 %v3950, 7
  %v3952 = vsub.s32 0, %v3951
  %v3953 = vrot.slane %v3948, %v3952
  %v3954 = vlaneseq
  %v3955 = vshrl.u32 %v3954, 7
  %v3956 = vsub.s32 1, %v3955
  %v3957 = vrot.slane %v3948, %v3956
  %v3960 = vadd.f32 %v3946, %v3953
  %v3961 = vadd.f32 %v3947, %v3957
  %v3962 = vld [vmem:[%s13] sm:$0xff]
  %v3963 = vld [vmem:[%s13 + $0x8] sm:$0xff]
  %v3964 = vld [vmem:[%s13 + $0x10] sm:$0xff]
  %v3965 = vld [vmem:[%s13 + $0x18] sm:$0xff]
  %v3966 = vld [vmem:[%s13 + $0x20] sm:$0xff]
  %v3967 = vld [vmem:[%s13 + $0x28] sm:$0xff]
  %v3968 = vld [vmem:[%s13 + $0x30] sm:$0xff]
  %v3969 = vld [vmem:[%s13 + $0x38] sm:$0xff]
  %v3970 = vld [vmem:[%s13 + $0x40] sm:$0xff]
  %v3971 = vld [vmem:[%s13 + $0x48] sm:$0xff]
  %v3972 = vld [vmem:[%s13 + $0x50] sm:$0xff]
  %v3973 = vld [vmem:[%s13 + $0x58] sm:$0xff]
  %v3974 = vld [vmem:[%s13 + $0x60] sm:$0xff]
  %v3975 = vld [vmem:[%s13 + $0x68] sm:$0xff]
  %v3976 = vld [vmem:[%s13 + $0x70] sm:$0xff]
  %v3977 = vld [vmem:[%s13 + $0x78] sm:$0xff]
  %v3978 = vld [vmem:[%s13 + $0x80] sm:$0xff]
  %v3979 = vld [vmem:[%s13 + $0x88] sm:$0xff]
  %v3980 = vld [vmem:[%s13 + $0x90] sm:$0xff]
  %v3981 = vld [vmem:[%s13 + $0x98] sm:$0xff]
  %v3982 = vld [vmem:[%s13 + $0xa0] sm:$0xff]
  %v3983 = vld [vmem:[%s13 + $0xa8] sm:$0xff]
  %v3984 = vld [vmem:[%s13 + $0xb0] sm:$0xff]
  %v3985 = vld [vmem:[%s13 + $0xb8] sm:$0xff]
  %v3986 = vld [vmem:[%s13 + $0xc0] sm:$0xff]
  %v3987 = vld [vmem:[%s13 + $0xc8] sm:$0xff]
  %v3988 = vld [vmem:[%s13 + $0xd0] sm:$0xff]
  %v3989 = vld [vmem:[%s13 + $0xd8] sm:$0xff]
  %v3990 = vld [vmem:[%s13 + $0xe0] sm:$0xff]
  %v3991 = vld [vmem:[%s13 + $0xe8] sm:$0xff]
  %v3992 = vld [vmem:[%s13 + $0xf0] sm:$0xff]
  %v3993 = vld [vmem:[%s13 + $0xf8] sm:$0xff]
  %3994 = vmatprep.subr.mxu0 0.0
  %3995 = vmatpush1.msra.mxu0 %v3962
  %3996 = vmatprep.subr.mxu0 0.0
  %3997 = vmatpush1.msra.mxu0 %v3963
  %3998 = vmatprep.subr.mxu0 0.0
  %3999 = vmatpush1.msra.mxu0 %v3964
  %4000 = vmatprep.subr.mxu0 0.0
  %4001 = vmatpush1.msra.mxu0 %v3965
  %4002 = vmatprep.subr.mxu0 0.0
  %4003 = vmatpush1.msra.mxu0 %v3966
  %4004 = vmatprep.subr.mxu0 0.0
  %4005 = vmatpush1.msra.mxu0 %v3967
  %4006 = vmatprep.subr.mxu0 0.0
  %4007 = vmatpush1.msra.mxu0 %v3968
  %4008 = vmatprep.subr.mxu0 0.0
  %4009 = vmatpush1.msra.mxu0 %v3969
  %4010 = vmatprep.subr.mxu0 0.0
  %4011 = vmatpush1.msra.mxu0 %v3970
  %4012 = vmatprep.subr.mxu0 0.0
  %4013 = vmatpush1.msra.mxu0 %v3971
  %4014 = vmatprep.subr.mxu0 0.0
  %4015 = vmatpush1.msra.mxu0 %v3972
  %4016 = vmatprep.subr.mxu0 0.0
  %4017 = vmatpush1.msra.mxu0 %v3973
  %4018 = vmatprep.subr.mxu0 0.0
  %4019 = vmatpush1.msra.mxu0 %v3974
  %4020 = vmatprep.subr.mxu0 0.0
  %4021 = vmatpush1.msra.mxu0 %v3975
  %4022 = vmatprep.subr.mxu0 0.0
  %4023 = vmatpush1.msra.mxu0 %v3976
  %4024 = vmatprep.subr.mxu0 0.0
  %4025 = vmatpush1.msra.mxu0 %v3977
  %4026 = vmatprep.subr.mxu0 0.0
  %4027 = vmatpush1.msra.mxu0 %v3978
  %4028 = vmatprep.subr.mxu0 0.0
  %4029 = vmatpush1.msra.mxu0 %v3979
  %4030 = vmatprep.subr.mxu0 0.0
  %4031 = vmatpush1.msra.mxu0 %v3980
  %4032 = vmatprep.subr.mxu0 0.0
  %4033 = vmatpush1.msra.mxu0 %v3981
  %4034 = vmatprep.subr.mxu0 0.0
  %4035 = vmatpush1.msra.mxu0 %v3982
  %4036 = vmatprep.subr.mxu0 0.0
  %4037 = vmatpush1.msra.mxu0 %v3983
  %4038 = vmatprep.subr.mxu0 0.0
  %4039 = vmatpush1.msra.mxu0 %v3984
  %4040 = vmatprep.subr.mxu0 0.0
  %4041 = vmatpush1.msra.mxu0 %v3985
  %4042 = vmatprep.subr.mxu0 0.0
  %4043 = vmatpush1.msra.mxu0 %v3986
  %4044 = vmatprep.subr.mxu0 0.0
  %4045 = vmatpush1.msra.mxu0 %v3987
  %4046 = vmatprep.subr.mxu0 0.0
  %4047 = vmatpush1.msra.mxu0 %v3988
  %4048 = vmatprep.subr.mxu0 0.0
  %4049 = vmatpush1.msra.mxu0 %v3989
  %4050 = vmatprep.subr.mxu0 0.0
  %4051 = vmatpush1.msra.mxu0 %v3990
  %4052 = vmatprep.subr.mxu0 0.0
  %4053 = vmatpush1.msra.mxu0 %v3991
  %4054 = vmatprep.subr.mxu0 0.0
  %4055 = vmatpush1.msra.mxu0 %v3992
  %4056 = vmatprep.subr.mxu0 0.0
  %4057 = vmatpush1.msra.mxu0 %v3993
  %4058 = vmatprep.mubr.f32.mxu0 %v3961
  %4059 = vmatmul.mubr.f32.gmra.mrb[0].mxu0 %v3960
  %v4060 = vpop.f32.mrb[0].mxu0
  %v4061 = vadd.f32 0.0, %v4060
  %v4062 = vpop.f32.mrb[0].mxu0
  %4063 = vdwg.mxu0
  %v4064 = vsub.f32 %v3943, %v4061
  %v4065 = vld [vmem:[%s14] sm:$0xff]
  %v4066 = vld [vmem:[%s14 + $0x8] sm:$0xff]
  %v4067 = vld [vmem:[%s14 + $0x10] sm:$0xff]
  %v4068 = vld [vmem:[%s14 + $0x18] sm:$0xff]
  %v4069 = vld [vmem:[%s14 + $0x20] sm:$0xff]
  %v4070 = vld [vmem:[%s14 + $0x28] sm:$0xff]
  %v4071 = vld [vmem:[%s14 + $0x30] sm:$0xff]
  %v4072 = vld [vmem:[%s14 + $0x38] sm:$0xff]
  %v4073 = vld [vmem:[%s14 + $0x40] sm:$0xff]
  %v4074 = vld [vmem:[%s14 + $0x48] sm:$0xff]
  %v4075 = vld [vmem:[%s14 + $0x50] sm:$0xff]
  %v4076 = vld [vmem:[%s14 + $0x58] sm:$0xff]
  %v4077 = vld [vmem:[%s14 + $0x60] sm:$0xff]
  %v4078 = vld [vmem:[%s14 + $0x68] sm:$0xff]
  %v4079 = vld [vmem:[%s14 + $0x70] sm:$0xff]
  %v4080 = vld [vmem:[%s14 + $0x78] sm:$0xff]
  %v4082 = vsel %vm3334, %v4064, 0
  %4084 = vmatprep.subr.mxu0 %v4066
  %4085 = vmatpush1.msra.mxu0 %v4065
  %4086 = vmatprep.subr.mxu0 %v4068
  %4087 = vmatpush1.msra.mxu0 %v4067
  %4088 = vmatprep.subr.mxu0 %v4070
  %4089 = vmatpush1.msra.mxu0 %v4069
  %4090 = vmatprep.subr.mxu0 %v4072
  %4091 = vmatpush1.msra.mxu0 %v4071
  %4092 = vmatprep.subr.mxu0 %v4074
  %4093 = vmatpush1.msra.mxu0 %v4073
  %4094 = vmatprep.subr.mxu0 %v4076
  %4095 = vmatpush1.msra.mxu0 %v4075
  %4096 = vmatprep.subr.mxu0 %v4078
  %4097 = vmatpush1.msra.mxu0 %v4077
  %4098 = vmatprep.subr.mxu0 %v4080
  %4099 = vmatpush1.msra.mxu0 %v4079
  %4100 = vmatprep.subr.mxu0 0.0
  %4101 = vmatpush1.msra.mxu0 0.0
  %4102 = vmatprep.subr.mxu0 0.0
  %4103 = vmatpush1.msra.mxu0 0.0
  %4104 = vmatprep.subr.mxu0 0.0
  %4105 = vmatpush1.msra.mxu0 0.0
  %4106 = vmatprep.subr.mxu0 0.0
  %4107 = vmatpush1.msra.mxu0 0.0
  %4108 = vmatprep.subr.mxu0 0.0
  %4109 = vmatpush1.msra.mxu0 0.0
  %4110 = vmatprep.subr.mxu0 0.0
  %4111 = vmatpush1.msra.mxu0 0.0
  %4112 = vmatprep.subr.mxu0 0.0
  %4113 = vmatpush1.msra.mxu0 0.0
  %4114 = vmatprep.subr.mxu0 0.0
  %4115 = vmatpush1.msra.mxu0 0.0
  %4116 = vmatprep.subr.mxu0 0.0
  %4117 = vmatpush1.msra.mxu0 0.0
  %4118 = vmatprep.subr.mxu0 0.0
  %4119 = vmatpush1.msra.mxu0 0.0
  %4120 = vmatprep.subr.mxu0 0.0
  %4121 = vmatpush1.msra.mxu0 0.0
  %4122 = vmatprep.subr.mxu0 0.0
  %4123 = vmatpush1.msra.mxu0 0.0
  %4124 = vmatprep.subr.mxu0 0.0
  %4125 = vmatpush1.msra.mxu0 0.0
  %4126 = vmatprep.subr.mxu0 0.0
  %4127 = vmatpush1.msra.mxu0 0.0
  %4128 = vmatprep.subr.mxu0 0.0
  %4129 = vmatpush1.msra.mxu0 0.0
  %4130 = vmatprep.subr.mxu0 0.0
  %4131 = vmatpush1.msra.mxu0 0.0
  %4132 = vmatprep.subr.mxu0 0.0
  %4133 = vmatpush1.msra.mxu0 0.0
  %4134 = vmatprep.subr.mxu0 0.0
  %4135 = vmatpush1.msra.mxu0 0.0
  %4136 = vmatprep.subr.mxu0 0.0
  %4137 = vmatpush1.msra.mxu0 0.0
  %4138 = vmatprep.subr.mxu0 0.0
  %4139 = vmatpush1.msra.mxu0 0.0
  %4140 = vmatprep.subr.mxu0 0.0
  %4141 = vmatpush1.msra.mxu0 0.0
  %4142 = vmatprep.subr.mxu0 0.0
  %4143 = vmatpush1.msra.mxu0 0.0
  %4144 = vmatprep.subr.mxu0 0.0
  %4145 = vmatpush1.msra.mxu0 0.0
  %4146 = vmatprep.subr.mxu0 0.0
  %4147 = vmatpush1.msra.mxu0 0.0
  %4148 = vmatprep.mubr.f32.mxu0 0.0
  %4149 = vmatmul.mubr.f32.gmra.mrb[0].mxu0 %v4082
  %v4150 = vpop.f32.mrb[0].mxu0
  %v4151 = vadd.f32 0.0, %v4150
  %v4152 = vpop.f32.mrb[0].mxu0
  %v4153 = vadd.f32 0.0, %v4152
  %4154 = vdwg.mxu0
  %v4155 = vadd.f32 %v3960, %v4151
  %v4156 = vadd.f32 %v3961, %v4153
  %v4159 = vcombine.low %v4155, %v4156
  %v4161 = vunpack.c.l.s4 1983009808
  %v4162 = vunpack.c.0.s8 %v4161
  %v4163 = vlaneseq
  %v4164 = vshrl.u32 %v4163, 7
  %v4165 = vsub.s32 %v4162, %v4164
  %v4166 = vrot.slane %v4159, %v4165
  %4168 = vst [vmem:[%s15] sm:$0xf] %v4166
  // Predicated region
  $region62: #{vector_dqn_forward.1} parent=0 // pred_check
    _
  $region63: #{vector_dqn_forward.1} parent=0 // pred_check_branch
    %4170 = sbr.rel (0) target = $region65
  $region64: #{vector_dqn_forward.1} parent=0 // pred_region
    _
  $region65: #{vector_dqn_forward.1} parent=0 // pred_fallthru
    _
  // Predicated region
  $region66: #{vector_dqn_forward.1} parent=0 // pred_check
    _
  $region67: #{vector_dqn_forward.1} parent=0 // pred_check_branch
    %4172 = sbr.rel (0) target = $region69
  $region68: #{vector_dqn_forward.1} parent=0 // pred_region
    _
  $region69: #{vector_dqn_forward.1} parent=0 // pred_fallthru
    _

</llo_original>
